<compile_context>
chip_gen: v7x
topology: tpu7x:2x2x1
jax: 0.10.0
libtpu: 0.0.40
codegen_flags: <defaults>
</compile_context>

<pallas_src>
import jax
import jax.numpy as jnp
from jax.experimental import pallas as pl
from jax.experimental.pallas import tpu as pltpu

BN_EPS = 1e-5


def _bn_relu(h, bn):
    # bn: (2, d_out) f32 -> row 0 = gamma, row 1 = beta.
    gamma = bn[0:1, :]
    beta = bn[1:2, :]
    # BatchNorm1d (training mode): per-feature batch mean / biased variance, f32.
    mean = jnp.mean(h, axis=0, keepdims=True)
    var = jnp.mean((h - mean) * (h - mean), axis=0, keepdims=True)
    h_hat = (h - mean) * jax.lax.rsqrt(var + BN_EPS)
    return jnp.maximum(h_hat * gamma + beta, 0.0)


def _dot_bf16(h, w_ref):
    # bf16 x bf16 on the MXU, f32 accumulation.
    return jnp.dot(h.astype(jnp.bfloat16), w_ref[...],
                   preferred_element_type=jnp.float32)


def locnet_kernel(
    x_ref,
    w1_ref, bn1_ref,
    w2_ref, bn2_ref,
    w3_ref, bn3_ref,
    w4_ref, b4_ref,
    o_ref,
):
    x = x_ref[...]  # (B, ch) f32

    # layer1 -> bn1 -> relu (bias dropped: cancelled by batch-mean subtraction)
    h = _dot_bf16(x, w1_ref)
    h = _bn_relu(h, bn1_ref[...])

    # layer2 -> bn2 -> relu
    h = _dot_bf16(h, w2_ref)
    h = _bn_relu(h, bn2_ref[...])

    # layer3 -> bn3 -> relu
    h = _dot_bf16(h, w3_ref)
    h = _bn_relu(h, bn3_ref[...])

    # layer4 (bias kept: no BN after it)
    o_ref[...] = _dot_bf16(h, w4_ref) + b4_ref[...]


def locnet_forward(x, params):
    """x: (B, ch) float32.  params: [w1, bn1, w2, bn2, w3, bn3, w4, b4]."""
    w1, bn1, w2, bn2, w3, bn3, w4, b4 = params
    batch = x.shape[0]

    flops = 2 * batch * (
        w1.shape[0] * w1.shape[1]
        + w2.shape[0] * w2.shape[1]
        + w3.shape[0] * w3.shape[1]
        + w4.shape[0] * w4.shape[1]
    )
    transcendentals = w1.shape[1] + w2.shape[1] + w3.shape[1]  # rsqrt per BN feature
    bytes_accessed = sum(int(p.size) * p.dtype.itemsize for p in params)
    bytes_accessed += int(x.size) * x.dtype.itemsize + batch * 6 * 4

    vmem_spec = pl.BlockSpec(memory_space=pltpu.MemorySpace.VMEM)
    out = pl.pallas_call(
        locnet_kernel,
        out_shape=jax.ShapeDtypeStruct((batch, 6), jnp.float32),
        in_specs=[vmem_spec] * (1 + len(params)),
        out_specs=vmem_spec,
        cost_estimate=pl.CostEstimate(
            flops=flops,
            transcendentals=transcendentals,
            bytes_accessed=bytes_accessed,
        ),
    )(x, *params)
    return out


def init_locnet_params(key, p_size=7, s_size=9):
    """Deterministic synthetic init.

    Linear weights stored pre-transposed as (in, out) in bfloat16.
    Per-layer BN params packed as (2, d_out) f32 (row 0 gamma, row 1 beta).
    Pre-BN linear biases are omitted (mathematically dead under training-mode BN).
    """
    ch = s_size ** 2 * 3 + p_size ** 2 * 3  # 390
    dims = [(ch, 2 * ch), (2 * ch, 2 * ch), (2 * ch, ch), (ch, 6)]
    params = []
    for li, (d_in, d_out) in enumerate(dims):
        kw, kb, kg, kbe, key = jax.random.split(key, 5)
        scale = 1.0 / jnp.sqrt(jnp.float32(d_in))
        w = jax.random.uniform(kw, (d_in, d_out), jnp.float32, -scale, scale)
        params.append(w.astype(jnp.bfloat16))
        if li < 3:
            # BatchNorm affine params: gamma=1, beta=0 (PyTorch default init),
            # perturbed slightly (deterministically) so the affine path is exercised.
            gamma = 1.0 + 0.01 * jax.random.normal(kg, (d_out,), jnp.float32)
            beta = 0.01 * jax.random.normal(kbe, (d_out,), jnp.float32)
            params.append(jnp.stack([gamma, beta], axis=0))  # (2, d_out) f32
        else:
            b = jax.random.uniform(kb, (1, d_out), jnp.float32, -scale, scale)
            params.append(b)  # (1, 6) f32
    return params, ch


def locnet_reference(x, params):
    """Pure-JAX f32 reference of the same forward (same bf16 weight values,
    upcast to f32), for a sanity check."""
    w1, bn1, w2, bn2, w3, bn3, w4, b4 = params

    def bn_relu(h, bn):
        g, be = bn[0:1, :], bn[1:2, :]
        mean = jnp.mean(h, axis=0, keepdims=True)
        var = jnp.mean((h - mean) ** 2, axis=0, keepdims=True)
        return jnp.maximum((h - mean) / jnp.sqrt(var + BN_EPS) * g + be, 0.0)

    h = bn_relu(x @ w1.astype(jnp.float32), bn1)
    h = bn_relu(h @ w2.astype(jnp.float32), bn2)
    h = bn_relu(h @ w3.astype(jnp.float32), bn3)
    return h @ w4.astype(jnp.float32) + b4


if __name__ == "__main__":
    key = jax.random.PRNGKey(0)
    kp, kx = jax.random.split(key)

    params, ch = init_locnet_params(kp, p_size=7, s_size=9)  # ch = 390
    batch = 8
    x = jax.random.normal(kx, (batch, ch), jnp.float32)

    out = jax.block_until_ready(locnet_forward(x, params))
    ref = jax.block_until_ready(locnet_reference(x, params))

    assert out.shape == (batch, 6), out.shape
    # bf16 matmul operands (f32 accumulation) -> slightly looser tolerance.
    assert jnp.allclose(out, ref, atol=5e-2, rtol=5e-2), (
        float(jnp.max(jnp.abs(out - ref)))
    )
    print("KERNEL_OK")
</pallas_src>

<mosaic_0001>
module attributes {stable_mosaic.version = 11 : i64} {
  func.func @locnet_kernel(%arg0: memref<8x390xf32, #tpu.memory_space<vmem>>, %arg1: memref<390x780xbf16, #tpu.memory_space<vmem>>, %arg2: memref<2x780xf32, #tpu.memory_space<vmem>>, %arg3: memref<780x780xbf16, #tpu.memory_space<vmem>>, %arg4: memref<2x780xf32, #tpu.memory_space<vmem>>, %arg5: memref<780x390xbf16, #tpu.memory_space<vmem>>, %arg6: memref<2x390xf32, #tpu.memory_space<vmem>>, %arg7: memref<390x6xbf16, #tpu.memory_space<vmem>>, %arg8: memref<1x6xf32, #tpu.memory_space<vmem>>, %arg9: memref<8x6xf32, #tpu.memory_space<vmem>>) attributes {dimension_semantics = [], scalar_prefetch = 0 : i64, scratch_operands = 0 : i64, tpu.core_type = #tpu.core_type<tc>} {
    %c0 = arith.constant 0 : index
    %c0_0 = arith.constant 0 : index
    %0 = vector.load %arg0[%c0, %c0_0] : memref<8x390xf32, #tpu.memory_space<vmem>>, vector<8x390xf32>
    %1 = arith.truncf %0 : vector<8x390xf32> to vector<8x390xbf16>
    %c0_1 = arith.constant 0 : index
    %c0_2 = arith.constant 0 : index
    %2 = vector.load %arg1[%c0_1, %c0_2] : memref<390x780xbf16, #tpu.memory_space<vmem>>, vector<390x780xbf16>
    %cst = arith.constant dense<0.000000e+00> : vector<8x780xf32>
    %3 = tpu.matmul %1, %2, %cst {dimension_numbers = #tpu.dot_dimension_numbers<[1], [0], [0], [1], [0, 0, 1, 1], [], []>} : vector<8x390xbf16>, vector<390x780xbf16>, vector<8x780xf32> -> vector<8x780xf32>
    %c0_3 = arith.constant 0 : index
    %c0_4 = arith.constant 0 : index
    %4 = vector.load %arg2[%c0_3, %c0_4] : memref<2x780xf32, #tpu.memory_space<vmem>>, vector<2x780xf32>
    %5 = vector.extract_strided_slice %4 {offsets = [0, 0], sizes = [1, 780], strides = [1, 1]} : vector<2x780xf32> to vector<1x780xf32>
    %6 = vector.extract_strided_slice %4 {offsets = [1, 0], sizes = [1, 780], strides = [1, 1]} : vector<2x780xf32> to vector<1x780xf32>
    %cst_5 = arith.constant dense<0.000000e+00> : vector<780xf32>
    %7 = vector.multi_reduction <add>, %3, %cst_5 [0] : vector<8x780xf32> to vector<780xf32>
    %8 = vector.shape_cast %7 : vector<780xf32> to vector<1x780xf32>
    %cst_6 = arith.constant 8.000000e+00 : f32
    %9 = vector.broadcast %cst_6 : f32 to vector<1x780xf32>
    %10 = arith.divf %8, %9 : vector<1x780xf32>
    %11 = vector.broadcast %10 : vector<1x780xf32> to vector<8x780xf32>
    %12 = arith.subf %3, %11 : vector<8x780xf32>
    %13 = vector.broadcast %10 : vector<1x780xf32> to vector<8x780xf32>
    %14 = arith.subf %3, %13 : vector<8x780xf32>
    %15 = arith.mulf %12, %14 : vector<8x780xf32>
    %cst_7 = arith.constant dense<0.000000e+00> : vector<780xf32>
    %16 = vector.multi_reduction <add>, %15, %cst_7 [0] : vector<8x780xf32> to vector<780xf32>
    %17 = vector.shape_cast %16 : vector<780xf32> to vector<1x780xf32>
    %cst_8 = arith.constant 8.000000e+00 : f32
    %18 = vector.broadcast %cst_8 : f32 to vector<1x780xf32>
    %19 = arith.divf %17, %18 : vector<1x780xf32>
    %20 = vector.broadcast %10 : vector<1x780xf32> to vector<8x780xf32>
    %21 = arith.subf %3, %20 : vector<8x780xf32>
    %cst_9 = arith.constant 9.99999974E-6 : f32
    %22 = vector.broadcast %cst_9 : f32 to vector<1x780xf32>
    %23 = arith.addf %19, %22 : vector<1x780xf32>
    %24 = math.rsqrt %23 : vector<1x780xf32>
    %25 = vector.broadcast %24 : vector<1x780xf32> to vector<8x780xf32>
    %26 = arith.mulf %21, %25 : vector<8x780xf32>
    %27 = vector.broadcast %5 : vector<1x780xf32> to vector<8x780xf32>
    %28 = arith.mulf %26, %27 : vector<8x780xf32>
    %29 = vector.broadcast %6 : vector<1x780xf32> to vector<8x780xf32>
    %30 = arith.addf %28, %29 : vector<8x780xf32>
    %cst_10 = arith.constant 0.000000e+00 : f32
    %31 = vector.broadcast %cst_10 : f32 to vector<8x780xf32>
    %32 = arith.maximumf %30, %31 : vector<8x780xf32>
    %33 = arith.truncf %32 : vector<8x780xf32> to vector<8x780xbf16>
    %c0_11 = arith.constant 0 : index
    %c0_12 = arith.constant 0 : index
    %34 = vector.load %arg3[%c0_11, %c0_12] : memref<780x780xbf16, #tpu.memory_space<vmem>>, vector<780x780xbf16>
    %cst_13 = arith.constant dense<0.000000e+00> : vector<8x780xf32>
    %35 = tpu.matmul %33, %34, %cst_13 {dimension_numbers = #tpu.dot_dimension_numbers<[1], [0], [0], [1], [0, 0, 1, 1], [], []>} : vector<8x780xbf16>, vector<780x780xbf16>, vector<8x780xf32> -> vector<8x780xf32>
    %c0_14 = arith.constant 0 : index
    %c0_15 = arith.constant 0 : index
    %36 = vector.load %arg4[%c0_14, %c0_15] : memref<2x780xf32, #tpu.memory_space<vmem>>, vector<2x780xf32>
    %37 = vector.extract_strided_slice %36 {offsets = [0, 0], sizes = [1, 780], strides = [1, 1]} : vector<2x780xf32> to vector<1x780xf32>
    %38 = vector.extract_strided_slice %36 {offsets = [1, 0], sizes = [1, 780], strides = [1, 1]} : vector<2x780xf32> to vector<1x780xf32>
    %cst_16 = arith.constant dense<0.000000e+00> : vector<780xf32>
    %39 = vector.multi_reduction <add>, %35, %cst_16 [0] : vector<8x780xf32> to vector<780xf32>
    %40 = vector.shape_cast %39 : vector<780xf32> to vector<1x780xf32>
    %cst_17 = arith.constant 8.000000e+00 : f32
    %41 = vector.broadcast %cst_17 : f32 to vector<1x780xf32>
    %42 = arith.divf %40, %41 : vector<1x780xf32>
    %43 = vector.broadcast %42 : vector<1x780xf32> to vector<8x780xf32>
    %44 = arith.subf %35, %43 : vector<8x780xf32>
    %45 = vector.broadcast %42 : vector<1x780xf32> to vector<8x780xf32>
    %46 = arith.subf %35, %45 : vector<8x780xf32>
    %47 = arith.mulf %44, %46 : vector<8x780xf32>
    %cst_18 = arith.constant dense<0.000000e+00> : vector<780xf32>
    %48 = vector.multi_reduction <add>, %47, %cst_18 [0] : vector<8x780xf32> to vector<780xf32>
    %49 = vector.shape_cast %48 : vector<780xf32> to vector<1x780xf32>
    %cst_19 = arith.constant 8.000000e+00 : f32
    %50 = vector.broadcast %cst_19 : f32 to vector<1x780xf32>
    %51 = arith.divf %49, %50 : vector<1x780xf32>
    %52 = vector.broadcast %42 : vector<1x780xf32> to vector<8x780xf32>
    %53 = arith.subf %35, %52 : vector<8x780xf32>
    %cst_20 = arith.constant 9.99999974E-6 : f32
    %54 = vector.broadcast %cst_20 : f32 to vector<1x780xf32>
    %55 = arith.addf %51, %54 : vector<1x780xf32>
    %56 = math.rsqrt %55 : vector<1x780xf32>
    %57 = vector.broadcast %56 : vector<1x780xf32> to vector<8x780xf32>
    %58 = arith.mulf %53, %57 : vector<8x780xf32>
    %59 = vector.broadcast %37 : vector<1x780xf32> to vector<8x780xf32>
    %60 = arith.mulf %58, %59 : vector<8x780xf32>
    %61 = vector.broadcast %38 : vector<1x780xf32> to vector<8x780xf32>
    %62 = arith.addf %60, %61 : vector<8x780xf32>
    %cst_21 = arith.constant 0.000000e+00 : f32
    %63 = vector.broadcast %cst_21 : f32 to vector<8x780xf32>
    %64 = arith.maximumf %62, %63 : vector<8x780xf32>
    %65 = arith.truncf %64 : vector<8x780xf32> to vector<8x780xbf16>
    %c0_22 = arith.constant 0 : index
    %c0_23 = arith.constant 0 : index
    %66 = vector.load %arg5[%c0_22, %c0_23] : memref<780x390xbf16, #tpu.memory_space<vmem>>, vector<780x390xbf16>
    %cst_24 = arith.constant dense<0.000000e+00> : vector<8x390xf32>
    %67 = tpu.matmul %65, %66, %cst_24 {dimension_numbers = #tpu.dot_dimension_numbers<[1], [0], [0], [1], [0, 0, 1, 1], [], []>} : vector<8x780xbf16>, vector<780x390xbf16>, vector<8x390xf32> -> vector<8x390xf32>
    %c0_25 = arith.constant 0 : index
    %c0_26 = arith.constant 0 : index
    %68 = vector.load %arg6[%c0_25, %c0_26] : memref<2x390xf32, #tpu.memory_space<vmem>>, vector<2x390xf32>
    %69 = vector.extract_strided_slice %68 {offsets = [0, 0], sizes = [1, 390], strides = [1, 1]} : vector<2x390xf32> to vector<1x390xf32>
    %70 = vector.extract_strided_slice %68 {offsets = [1, 0], sizes = [1, 390], strides = [1, 1]} : vector<2x390xf32> to vector<1x390xf32>
    %cst_27 = arith.constant dense<0.000000e+00> : vector<390xf32>
    %71 = vector.multi_reduction <add>, %67, %cst_27 [0] : vector<8x390xf32> to vector<390xf32>
    %72 = vector.shape_cast %71 : vector<390xf32> to vector<1x390xf32>
    %cst_28 = arith.constant 8.000000e+00 : f32
    %73 = vector.broadcast %cst_28 : f32 to vector<1x390xf32>
    %74 = arith.divf %72, %73 : vector<1x390xf32>
    %75 = vector.broadcast %74 : vector<1x390xf32> to vector<8x390xf32>
    %76 = arith.subf %67, %75 : vector<8x390xf32>
    %77 = vector.broadcast %74 : vector<1x390xf32> to vector<8x390xf32>
    %78 = arith.subf %67, %77 : vector<8x390xf32>
    %79 = arith.mulf %76, %78 : vector<8x390xf32>
    %cst_29 = arith.constant dense<0.000000e+00> : vector<390xf32>
    %80 = vector.multi_reduction <add>, %79, %cst_29 [0] : vector<8x390xf32> to vector<390xf32>
    %81 = vector.shape_cast %80 : vector<390xf32> to vector<1x390xf32>
    %cst_30 = arith.constant 8.000000e+00 : f32
    %82 = vector.broadcast %cst_30 : f32 to vector<1x390xf32>
    %83 = arith.divf %81, %82 : vector<1x390xf32>
    %84 = vector.broadcast %74 : vector<1x390xf32> to vector<8x390xf32>
    %85 = arith.subf %67, %84 : vector<8x390xf32>
    %cst_31 = arith.constant 9.99999974E-6 : f32
    %86 = vector.broadcast %cst_31 : f32 to vector<1x390xf32>
    %87 = arith.addf %83, %86 : vector<1x390xf32>
    %88 = math.rsqrt %87 : vector<1x390xf32>
    %89 = vector.broadcast %88 : vector<1x390xf32> to vector<8x390xf32>
    %90 = arith.mulf %85, %89 : vector<8x390xf32>
    %91 = vector.broadcast %69 : vector<1x390xf32> to vector<8x390xf32>
    %92 = arith.mulf %90, %91 : vector<8x390xf32>
    %93 = vector.broadcast %70 : vector<1x390xf32> to vector<8x390xf32>
    %94 = arith.addf %92, %93 : vector<8x390xf32>
    %cst_32 = arith.constant 0.000000e+00 : f32
    %95 = vector.broadcast %cst_32 : f32 to vector<8x390xf32>
    %96 = arith.maximumf %94, %95 : vector<8x390xf32>
    %97 = arith.truncf %96 : vector<8x390xf32> to vector<8x390xbf16>
    %c0_33 = arith.constant 0 : index
    %c0_34 = arith.constant 0 : index
    %98 = vector.load %arg7[%c0_33, %c0_34] : memref<390x6xbf16, #tpu.memory_space<vmem>>, vector<390x6xbf16>
    %cst_35 = arith.constant dense<0.000000e+00> : vector<8x6xf32>
    %99 = tpu.matmul %97, %98, %cst_35 {dimension_numbers = #tpu.dot_dimension_numbers<[1], [0], [0], [1], [0, 0, 1, 1], [], []>} : vector<8x390xbf16>, vector<390x6xbf16>, vector<8x6xf32> -> vector<8x6xf32>
    %c0_36 = arith.constant 0 : index
    %c0_37 = arith.constant 0 : index
    %100 = vector.load %arg8[%c0_36, %c0_37] : memref<1x6xf32, #tpu.memory_space<vmem>>, vector<1x6xf32>
    %101 = vector.broadcast %100 : vector<1x6xf32> to vector<8x6xf32>
    %102 = arith.addf %99, %101 : vector<8x6xf32>
    %c0_38 = arith.constant 0 : index
    %c0_39 = arith.constant 0 : index
    %103 = vector.load %arg9[%c0_38, %c0_39] : memref<8x6xf32, #tpu.memory_space<vmem>>, vector<8x6xf32>
    tpu.vector_store %arg9[%c0_38, %c0_39], %102 {strides = array<i32>} : memref<8x6xf32, #tpu.memory_space<vmem>>, vector<8x6xf32>,
    return
  }
}

</mosaic_0001>

<llo_original>
// kernel: tpu_custom_call.1
$region0: #{tpu_custom_call.1}
  #allocation0 [shape = 'u32[]', space=smem, size = 0x4, offset = 0x4, fixed_abs, tag = 'smem constant byte address 0x4 - core index']
  #allocation1 [shape = 'u32[144,128]{1,0:T(1,128)}', space=vmem, size = 0x12000, scoped, tag = 'internal scratch']
  %s0 = inlined_call_operand.vmem [shape: f32[8,390], index: 0, kind: input, shape index: {}]
  %s1 = inlined_call_operand.hbm [shape: bf16[390,780], index: 1, kind: input, shape index: {}]
  %s2 = inlined_call_operand.vmem [shape: f32[2,780], index: 2, kind: input, shape index: {}]
  %s3 = inlined_call_operand.vmem [shape: bf16[780,780], index: 3, kind: input, shape index: {}]
  %s4 = inlined_call_operand.vmem [shape: f32[2,780], index: 4, kind: input, shape index: {}]
  %s5 = inlined_call_operand.vmem [shape: bf16[780,390], index: 5, kind: input, shape index: {}]
  %s6 = inlined_call_operand.vmem [shape: f32[2,390], index: 6, kind: input, shape index: {}]
  %s7 = inlined_call_operand.vmem [shape: bf16[390,6], index: 7, kind: input, shape index: {}]
  %s8 = inlined_call_operand.vmem [shape: f32[1,6], index: 8, kind: input, shape index: {}]
  %s9 = inlined_call_operand.hbm [shape: f32[8,6], index: 9, kind: output, shape index: {}]
  %s10 = sld [smem:[#allocation0]]
  $region50: #{tpu_custom_call.1} parent=0
    _
  %s12 = ssub.s32 1, %s10
  %s13 = scalar_select 0, %s12, %s10
  $region1: #{tpu_custom_call.1} parent=0
    #allocation2 [shape = 'u8[702464]{0}', space=vmem, size = 0xab800, scoped, tag = 'input window, operand 1, single buffered']
    #allocation3 [shape = 's32[1]{0}', space=sflag, size = 0x4, scoped, tag = 'scoped memory for tpu_custom_call.1']
    #allocation4 [shape = 's32[1]{0}', space=sflag, size = 0x4, scoped, tag = 'scoped memory for tpu_custom_call.1']
    #allocation5 [shape = 'u8[4096]{0}', space=vmem, size = 0x1000, scoped, tag = 'output window, operand 0, single buffered']
    %14 = vsyncpa [#allocation3], 0
    %15 = vsyncpa [#allocation4], 0
    // Predicated region
    $region2: #{tpu_custom_call.1} parent=1 // pred_check
      _
    $region3: #{tpu_custom_call.1} parent=1 // pred_check_branch
      %17 = sbr.rel (0) target = $region5
    $region4: #{tpu_custom_call.1} parent=1 // pred_region
      _
    $region5: #{tpu_custom_call.1} parent=1 // pred_fallthru
      _
    // Predicated region
    $region6: #{tpu_custom_call.1} parent=1 // pred_check
      _
    $region7: #{tpu_custom_call.1} parent=1 // pred_check_branch
      %19 = sbr.rel (0) target = $region9
    $region8: #{tpu_custom_call.1} parent=1 // pred_region
      %s21 = ssub.s32 21952, 21952
      %22 = vsyncadd [#allocation3], %s21
      %s23 = sshll.u32 [#allocation2], 4
      %s24 = int_to_ptr.vmem [resolvable:$true] %s23
      %29 = dma.hbm_to_vmem [thread:$0]  %s1, 21952, %s24, [#allocation3], 448, 448, 28
    $region9: #{tpu_custom_call.1} parent=1 // pred_fallthru
      _
    // Predicated region
    $region10: #{tpu_custom_call.1} parent=1 // pred_check
      _
    $region11: #{tpu_custom_call.1} parent=1 // pred_check_branch
      %31 = sbr.rel (0) target = $region13
    $region12: #{tpu_custom_call.1} parent=1 // pred_region
      _
    $region13: #{tpu_custom_call.1} parent=1 // pred_fallthru
      _
    // Predicated region
    $region14: #{tpu_custom_call.1} parent=1 // pred_check
      _
    $region15: #{tpu_custom_call.1} parent=1 // pred_check_branch
      %33 = sbr.rel (0) target = $region17
    $region16: #{tpu_custom_call.1} parent=1 // pred_region
      _
    $region17: #{tpu_custom_call.1} parent=1 // pred_fallthru
      _
    // Predicated region
    $region18: #{tpu_custom_call.1} parent=1 // pred_check
      _
    $region19: #{tpu_custom_call.1} parent=1 // pred_check_branch
      %35 = sbr.rel (0) target = $region21
    $region20: #{tpu_custom_call.1} parent=1 // pred_region
      _
    $region21: #{tpu_custom_call.1} parent=1 // pred_fallthru
      _
    // Predicated region
    $region22: #{tpu_custom_call.1} parent=1 // pred_check
      _
    $region23: #{tpu_custom_call.1} parent=1 // pred_check_branch
      %37 = sbr.rel (0) target = $region25
    $region24: #{tpu_custom_call.1} parent=1 // pred_region
      _
    $region25: #{tpu_custom_call.1} parent=1 // pred_fallthru
      _
    // Predicated region
    $region26: #{tpu_custom_call.1} parent=1 // pred_check
      _
    $region27: #{tpu_custom_call.1} parent=1 // pred_check_branch
      %39 = sbr.rel (0) target = $region29
    $region28: #{tpu_custom_call.1} parent=1 // pred_region
      _
    $region29: #{tpu_custom_call.1} parent=1 // pred_fallthru
      _
    // Predicated region
    $region30: #{tpu_custom_call.1} parent=1 // pred_check
      _
    $region31: #{tpu_custom_call.1} parent=1 // pred_check_branch
      %41 = sbr.rel (0) target = $region33
    $region32: #{tpu_custom_call.1} parent=1 // pred_region
      _
    $region33: #{tpu_custom_call.1} parent=1 // pred_fallthru
      _
    // Predicated region
    $region34: #{tpu_custom_call.1} parent=1 // pred_check
      _
    $region35: #{tpu_custom_call.1} parent=1 // pred_check_branch
      %43 = sbr.rel (0) target = $region37
    $region36: #{tpu_custom_call.1} parent=1 // pred_region
      _
    $region37: #{tpu_custom_call.1} parent=1 // pred_fallthru
      _
    // Predicated region
    $region38: #{tpu_custom_call.1} parent=1 // pred_check
      _
    $region39: #{tpu_custom_call.1} parent=1 // pred_check_branch
      %45 = sbr.rel (0) target = $region41
    $region40: #{tpu_custom_call.1} parent=1 // pred_region
      %46 = dma.done [#allocation3], 21952
    $region41: #{tpu_custom_call.1} parent=1 // pred_fallthru
      _
    %v48 = vld [vmem:[%s0] sm:$0xff]
    %v49 = vld [vmem:[%s0 + $0x8] sm:$0xff]
    %v50 = vld [vmem:[%s0 + $0x10] sm:$0xff]
    %v51 = vld [vmem:[%s0 + $0x18] sm:$0xff]
    %v52 = vpack.c.bf16 %v48, %v48
    %v53 = vpack.c.bf16 %v49, %v49
    %v54 = vpack.c.bf16 %v50, %v50
    %v55 = vpack.c.bf16 %v51, %v51
    %v56 = vld [vmem:[#allocation2] sm:$0xff]
    %v57 = vld [vmem:[#allocation2 + $0x8] sm:$0xff]
    %v58 = vld [vmem:[#allocation2 + $0x10] sm:$0xff]
    %v59 = vld [vmem:[#allocation2 + $0x18] sm:$0xf]
    %v60 = vld [vmem:[#allocation2 + $0x1c] sm:$0xff]
    %v61 = vld [vmem:[#allocation2 + $0x24] sm:$0xff]
    %v62 = vld [vmem:[#allocation2 + $0x2c] sm:$0xff]
    %v63 = vld [vmem:[#allocation2 + $0x34] sm:$0xf]
    %v64 = vld [vmem:[#allocation2 + $0x38] sm:$0xff]
    %v65 = vld [vmem:[#allocation2 + $0x40] sm:$0xff]
    %v66 = vld [vmem:[#allocation2 + $0x48] sm:$0xff]
    %v67 = vld [vmem:[#allocation2 + $0x50] sm:$0xf]
    %v68 = vld [vmem:[#allocation2 + $0x54] sm:$0xff]
    %v69 = vld [vmem:[#allocation2 + $0x5c] sm:$0xff]
    %v70 = vld [vmem:[#allocation2 + $0x64] sm:$0xff]
    %v71 = vld [vmem:[#allocation2 + $0x6c] sm:$0xf]
    %v72 = vld [vmem:[#allocation2 + $0x70] sm:$0xff]
    %v73 = vld [vmem:[#allocation2 + $0x78] sm:$0xff]
    %v74 = vld [vmem:[#allocation2 + $0x80] sm:$0xff]
    %v75 = vld [vmem:[#allocation2 + $0x88] sm:$0xf]
    %v76 = vld [vmem:[#allocation2 + $0x8c] sm:$0xff]
    %v77 = vld [vmem:[#allocation2 + $0x94] sm:$0xff]
    %v78 = vld [vmem:[#allocation2 + $0x9c] sm:$0xff]
    %v79 = vld [vmem:[#allocation2 + $0xa4] sm:$0xf]
    %v80 = vld [vmem:[#allocation2 + $0xa8] sm:$0xff]
    %v81 = vld [vmem:[#allocation2 + $0xb0] sm:$0xff]
    %v82 = vld [vmem:[#allocation2 + $0xb8] sm:$0xff]
    %v83 = vld [vmem:[#allocation2 + $0xc0] sm:$0xf]
    %v84 = vld [vmem:[#allocation2 + $0xc4] sm:$0xff]
    %v85 = vld [vmem:[#allocation2 + $0xcc] sm:$0xff]
    %v86 = vld [vmem:[#allocation2 + $0xd4] sm:$0xff]
    %v87 = vld [vmem:[#allocation2 + $0xdc] sm:$0xf]
    %v88 = vld [vmem:[#allocation2 + $0xe0] sm:$0xff]
    %v89 = vld [vmem:[#allocation2 + $0xe8] sm:$0xff]
    %v90 = vld [vmem:[#allocation2 + $0xf0] sm:$0xff]
    %v91 = vld [vmem:[#allocation2 + $0xf8] sm:$0xf]
    %v92 = vld [vmem:[#allocation2 + $0xfc] sm:$0xff]
    %v93 = vld [vmem:[#allocation2 + $0x104] sm:$0xff]
    %v94 = vld [vmem:[#allocation2 + $0x10c] sm:$0xff]
    %v95 = vld [vmem:[#allocation2 + $0x114] sm:$0xf]
    %v96 = vld [vmem:[#allocation2 + $0x118] sm:$0xff]
    %v97 = vld [vmem:[#allocation2 + $0x120] sm:$0xff]
    %v98 = vld [vmem:[#allocation2 + $0x128] sm:$0xff]
    %v99 = vld [vmem:[#allocation2 + $0x130] sm:$0xf]
    %v100 = vld [vmem:[#allocation2 + $0x134] sm:$0xff]
    %v101 = vld [vmem:[#allocation2 + $0x13c] sm:$0xff]
    %v102 = vld [vmem:[#allocation2 + $0x144] sm:$0xff]
    %v103 = vld [vmem:[#allocation2 + $0x14c] sm:$0xf]
    %v104 = vld [vmem:[#allocation2 + $0x150] sm:$0xff]
    %v105 = vld [vmem:[#allocation2 + $0x158] sm:$0xff]
    %v106 = vld [vmem:[#allocation2 + $0x160] sm:$0xff]
    %v107 = vld [vmem:[#allocation2 + $0x168] sm:$0xf]
    %v108 = vld [vmem:[#allocation2 + $0x16c] sm:$0xff]
    %v109 = vld [vmem:[#allocation2 + $0x174] sm:$0xff]
    %v110 = vld [vmem:[#allocation2 + $0x17c] sm:$0xff]
    %v111 = vld [vmem:[#allocation2 + $0x184] sm:$0xf]
    %v112 = vld [vmem:[#allocation2 + $0x188] sm:$0xff]
    %v113 = vld [vmem:[#allocation2 + $0x190] sm:$0xff]
    %v114 = vld [vmem:[#allocation2 + $0x198] sm:$0xff]
    %v115 = vld [vmem:[#allocation2 + $0x1a0] sm:$0xf]
    %v116 = vld [vmem:[#allocation2 + $0x1a4] sm:$0xff]
    %v117 = vld [vmem:[#allocation2 + $0x1ac] sm:$0xff]
    %v118 = vld [vmem:[#allocation2 + $0x1b4] sm:$0xff]
    %v119 = vld [vmem:[#allocation2 + $0x1bc] sm:$0xf]
    %v120 = vld [vmem:[#allocation2 + $0x1c0] sm:$0xff]
    %v121 = vld [vmem:[#allocation2 + $0x1c8] sm:$0xff]
    %v122 = vld [vmem:[#allocation2 + $0x1d0] sm:$0xff]
    %v123 = vld [vmem:[#allocation2 + $0x1d8] sm:$0xf]
    %v124 = vld [vmem:[#allocation2 + $0x1dc] sm:$0xff]
    %v125 = vld [vmem:[#allocation2 + $0x1e4] sm:$0xff]
    %v126 = vld [vmem:[#allocation2 + $0x1ec] sm:$0xff]
    %v127 = vld [vmem:[#allocation2 + $0x1f4] sm:$0xf]
    %v128 = vld [vmem:[#allocation2 + $0x1f8] sm:$0xff]
    %v129 = vld [vmem:[#allocation2 + $0x200] sm:$0xff]
    %v130 = vld [vmem:[#allocation2 + $0x208] sm:$0xff]
    %v131 = vld [vmem:[#allocation2 + $0x210] sm:$0xf]
    %v132 = vld [vmem:[#allocation2 + $0x214] sm:$0xff]
    %v133 = vld [vmem:[#allocation2 + $0x21c] sm:$0xff]
    %v134 = vld [vmem:[#allocation2 + $0x224] sm:$0xff]
    %v135 = vld [vmem:[#allocation2 + $0x22c] sm:$0xf]
    %v136 = vld [vmem:[#allocation2 + $0x230] sm:$0xff]
    %v137 = vld [vmem:[#allocation2 + $0x238] sm:$0xff]
    %v138 = vld [vmem:[#allocation2 + $0x240] sm:$0xff]
    %v139 = vld [vmem:[#allocation2 + $0x248] sm:$0xf]
    %v140 = vld [vmem:[#allocation2 + $0x24c] sm:$0xff]
    %v141 = vld [vmem:[#allocation2 + $0x254] sm:$0xff]
    %v142 = vld [vmem:[#allocation2 + $0x25c] sm:$0xff]
    %v143 = vld [vmem:[#allocation2 + $0x264] sm:$0xf]
    %v144 = vld [vmem:[#allocation2 + $0x268] sm:$0xff]
    %v145 = vld [vmem:[#allocation2 + $0x270] sm:$0xff]
    %v146 = vld [vmem:[#allocation2 + $0x278] sm:$0xff]
    %v147 = vld [vmem:[#allocation2 + $0x280] sm:$0xf]
    %v148 = vld [vmem:[#allocation2 + $0x284] sm:$0xff]
    %v149 = vld [vmem:[#allocation2 + $0x28c] sm:$0xff]
    %v150 = vld [vmem:[#allocation2 + $0x294] sm:$0xff]
    %v151 = vld [vmem:[#allocation2 + $0x29c] sm:$0xf]
    %v152 = vld [vmem:[#allocation2 + $0x2a0] sm:$0xff]
    %v153 = vld [vmem:[#allocation2 + $0x2a8] sm:$0xff]
    %v154 = vld [vmem:[#allocation2 + $0x2b0] sm:$0xff]
    %v155 = vld [vmem:[#allocation2 + $0x2b8] sm:$0xf]
    %v156 = vld [vmem:[#allocation2 + $0x2bc] sm:$0xff]
    %v157 = vld [vmem:[#allocation2 + $0x2c4] sm:$0xff]
    %v158 = vld [vmem:[#allocation2 + $0x2cc] sm:$0xff]
    %v159 = vld [vmem:[#allocation2 + $0x2d4] sm:$0xf]
    %v160 = vld [vmem:[#allocation2 + $0x2d8] sm:$0xff]
    %v161 = vld [vmem:[#allocation2 + $0x2e0] sm:$0xff]
    %v162 = vld [vmem:[#allocation2 + $0x2e8] sm:$0xff]
    %v163 = vld [vmem:[#allocation2 + $0x2f0] sm:$0xf]
    %v164 = vld [vmem:[#allocation2 + $0x2f4] sm:$0xff]
    %v165 = vld [vmem:[#allocation2 + $0x2fc] sm:$0xff]
    %v166 = vld [vmem:[#allocation2 + $0x304] sm:$0xff]
    %v167 = vld [vmem:[#allocation2 + $0x30c] sm:$0xf]
    %v168 = vld [vmem:[#allocation2 + $0x310] sm:$0xff]
    %v169 = vld [vmem:[#allocation2 + $0x318] sm:$0xff]
    %v170 = vld [vmem:[#allocation2 + $0x320] sm:$0xff]
    %v171 = vld [vmem:[#allocation2 + $0x328] sm:$0xf]
    %v172 = vld [vmem:[#allocation2 + $0x32c] sm:$0xff]
    %v173 = vld [vmem:[#allocation2 + $0x334] sm:$0xff]
    %v174 = vld [vmem:[#allocation2 + $0x33c] sm:$0xff]
    %v175 = vld [vmem:[#allocation2 + $0x344] sm:$0xf]
    %v176 = vld [vmem:[#allocation2 + $0x348] sm:$0xff]
    %v177 = vld [vmem:[#allocation2 + $0x350] sm:$0xff]
    %v178 = vld [vmem:[#allocation2 + $0x358] sm:$0xff]
    %v179 = vld [vmem:[#allocation2 + $0x360] sm:$0xf]
    %v180 = vld [vmem:[#allocation2 + $0x364] sm:$0xff]
    %v181 = vld [vmem:[#allocation2 + $0x36c] sm:$0xff]
    %v182 = vld [vmem:[#allocation2 + $0x374] sm:$0xff]
    %v183 = vld [vmem:[#allocation2 + $0x37c] sm:$0xf]
    %v184 = vld [vmem:[#allocation2 + $0x380] sm:$0xff]
    %v185 = vld [vmem:[#allocation2 + $0x388] sm:$0xff]
    %v186 = vld [vmem:[#allocation2 + $0x390] sm:$0xff]
    %v187 = vld [vmem:[#allocation2 + $0x398] sm:$0xf]
    %v188 = vld [vmem:[#allocation2 + $0x39c] sm:$0xff]
    %v189 = vld [vmem:[#allocation2 + $0x3a4] sm:$0xff]
    %v190 = vld [vmem:[#allocation2 + $0x3ac] sm:$0xff]
    %v191 = vld [vmem:[#allocation2 + $0x3b4] sm:$0xf]
    %v192 = vld [vmem:[#allocation2 + $0x3b8] sm:$0xff]
    %v193 = vld [vmem:[#allocation2 + $0x3c0] sm:$0xff]
    %v194 = vld [vmem:[#allocation2 + $0x3c8] sm:$0xff]
    %v195 = vld [vmem:[#allocation2 + $0x3d0] sm:$0xf]
    %v196 = vld [vmem:[#allocation2 + $0x3d4] sm:$0xff]
    %v197 = vld [vmem:[#allocation2 + $0x3dc] sm:$0xff]
    %v198 = vld [vmem:[#allocation2 + $0x3e4] sm:$0xff]
    %v199 = vld [vmem:[#allocation2 + $0x3ec] sm:$0xf]
    %v200 = vld [vmem:[#allocation2 + $0x3f0] sm:$0xff]
    %v201 = vld [vmem:[#allocation2 + $0x3f8] sm:$0xff]
    %v202 = vld [vmem:[#allocation2 + $0x400] sm:$0xff]
    %v203 = vld [vmem:[#allocation2 + $0x408] sm:$0xf]
    %v204 = vld [vmem:[#allocation2 + $0x40c] sm:$0xff]
    %v205 = vld [vmem:[#allocation2 + $0x414] sm:$0xff]
    %v206 = vld [vmem:[#allocation2 + $0x41c] sm:$0xff]
    %v207 = vld [vmem:[#allocation2 + $0x424] sm:$0xf]
    %v208 = vld [vmem:[#allocation2 + $0x428] sm:$0xff]
    %v209 = vld [vmem:[#allocation2 + $0x430] sm:$0xff]
    %v210 = vld [vmem:[#allocation2 + $0x438] sm:$0xff]
    %v211 = vld [vmem:[#allocation2 + $0x440] sm:$0xf]
    %v212 = vld [vmem:[#allocation2 + $0x444] sm:$0xff]
    %v213 = vld [vmem:[#allocation2 + $0x44c] sm:$0xff]
    %v214 = vld [vmem:[#allocation2 + $0x454] sm:$0xff]
    %v215 = vld [vmem:[#allocation2 + $0x45c] sm:$0xf]
    %v216 = vld [vmem:[#allocation2 + $0x460] sm:$0xff]
    %v217 = vld [vmem:[#allocation2 + $0x468] sm:$0xff]
    %v218 = vld [vmem:[#allocation2 + $0x470] sm:$0xff]
    %v219 = vld [vmem:[#allocation2 + $0x478] sm:$0xf]
    %v220 = vld [vmem:[#allocation2 + $0x47c] sm:$0xff]
    %v221 = vld [vmem:[#allocation2 + $0x484] sm:$0xff]
    %v222 = vld [vmem:[#allocation2 + $0x48c] sm:$0xff]
    %v223 = vld [vmem:[#allocation2 + $0x494] sm:$0xf]
    %v224 = vld [vmem:[#allocation2 + $0x498] sm:$0xff]
    %v225 = vld [vmem:[#allocation2 + $0x4a0] sm:$0xff]
    %v226 = vld [vmem:[#allocation2 + $0x4a8] sm:$0xff]
    %v227 = vld [vmem:[#allocation2 + $0x4b0] sm:$0xf]
    %v228 = vld [vmem:[#allocation2 + $0x4b4] sm:$0xff]
    %v229 = vld [vmem:[#allocation2 + $0x4bc] sm:$0xff]
    %v230 = vld [vmem:[#allocation2 + $0x4c4] sm:$0xff]
    %v231 = vld [vmem:[#allocation2 + $0x4cc] sm:$0xf]
    %v232 = vld [vmem:[#allocation2 + $0x4d0] sm:$0xff]
    %v233 = vld [vmem:[#allocation2 + $0x4d8] sm:$0xff]
    %v234 = vld [vmem:[#allocation2 + $0x4e0] sm:$0xff]
    %v235 = vld [vmem:[#allocation2 + $0x4e8] sm:$0xf]
    %v236 = vld [vmem:[#allocation2 + $0x4ec] sm:$0xff]
    %v237 = vld [vmem:[#allocation2 + $0x4f4] sm:$0xff]
    %v238 = vld [vmem:[#allocation2 + $0x4fc] sm:$0xff]
    %v239 = vld [vmem:[#allocation2 + $0x504] sm:$0xf]
    %v240 = vld [vmem:[#allocation2 + $0x508] sm:$0xff]
    %v241 = vld [vmem:[#allocation2 + $0x510] sm:$0xff]
    %v242 = vld [vmem:[#allocation2 + $0x518] sm:$0xff]
    %v243 = vld [vmem:[#allocation2 + $0x520] sm:$0xf]
    %v244 = vld [vmem:[#allocation2 + $0x524] sm:$0xff]
    %v245 = vld [vmem:[#allocation2 + $0x52c] sm:$0xff]
    %v246 = vld [vmem:[#allocation2 + $0x534] sm:$0xff]
    %v247 = vld [vmem:[#allocation2 + $0x53c] sm:$0xf]
    %v248 = vld [vmem:[#allocation2 + $0x540] sm:$0x77]
    %v249 = vld [vmem:[#allocation2 + $0x548] sm:$0x77]
    %v250 = vld [vmem:[#allocation2 + $0x550] sm:$0x77]
    %v251 = vld [vmem:[#allocation2 + $0x558] sm:$0x7]
    %v448 = vunpack.c.l.b16 %v56
    %v449 = vunpack.c.h.b16 %v56
    %v450 = vunpack.c.l.b16 %v57
    %v451 = vunpack.c.h.b16 %v57
    %v452 = vunpack.c.l.b16 %v58
    %v453 = vunpack.c.h.b16 %v58
    %v454 = vunpack.c.l.b16 %v59
    %v455 = vunpack.c.l.b16 %v60
    %v456 = vunpack.c.h.b16 %v60
    %v457 = vunpack.c.l.b16 %v61
    %v458 = vunpack.c.h.b16 %v61
    %v459 = vunpack.c.l.b16 %v62
    %v460 = vunpack.c.h.b16 %v62
    %v461 = vunpack.c.l.b16 %v63
    %v462 = vunpack.c.l.b16 %v64
    %v463 = vunpack.c.h.b16 %v64
    %v464 = vunpack.c.l.b16 %v65
    %v465 = vunpack.c.h.b16 %v65
    %v466 = vunpack.c.l.b16 %v66
    %v467 = vunpack.c.h.b16 %v66
    %v468 = vunpack.c.l.b16 %v67
    %v469 = vunpack.c.l.b16 %v68
    %v470 = vunpack.c.h.b16 %v68
    %v471 = vunpack.c.l.b16 %v69
    %v472 = vunpack.c.h.b16 %v69
    %v473 = vunpack.c.l.b16 %v70
    %v474 = vunpack.c.h.b16 %v70
    %v475 = vunpack.c.l.b16 %v71
    %v476 = vunpack.c.l.b16 %v72
    %v477 = vunpack.c.h.b16 %v72
    %v478 = vunpack.c.l.b16 %v73
    %v479 = vunpack.c.h.b16 %v73
    %v480 = vunpack.c.l.b16 %v74
    %v481 = vunpack.c.h.b16 %v74
    %v482 = vunpack.c.l.b16 %v75
    %v483 = vunpack.c.l.b16 %v76
    %v484 = vunpack.c.h.b16 %v76
    %v485 = vunpack.c.l.b16 %v77
    %v486 = vunpack.c.h.b16 %v77
    %v487 = vunpack.c.l.b16 %v78
    %v488 = vunpack.c.h.b16 %v78
    %v489 = vunpack.c.l.b16 %v79
    %v490 = vunpack.c.l.b16 %v80
    %v491 = vunpack.c.h.b16 %v80
    %v492 = vunpack.c.l.b16 %v81
    %v493 = vunpack.c.h.b16 %v81
    %v494 = vunpack.c.l.b16 %v82
    %v495 = vunpack.c.h.b16 %v82
    %v496 = vunpack.c.l.b16 %v83
    %v497 = vunpack.c.l.b16 %v84
    %v498 = vunpack.c.h.b16 %v84
    %v499 = vunpack.c.l.b16 %v85
    %v500 = vunpack.c.h.b16 %v85
    %v501 = vunpack.c.l.b16 %v86
    %v502 = vunpack.c.h.b16 %v86
    %v503 = vunpack.c.l.b16 %v87
    %v504 = vunpack.c.l.b16 %v88
    %v505 = vunpack.c.h.b16 %v88
    %v506 = vunpack.c.l.b16 %v89
    %v507 = vunpack.c.h.b16 %v89
    %v508 = vunpack.c.l.b16 %v90
    %v509 = vunpack.c.h.b16 %v90
    %v510 = vunpack.c.l.b16 %v91
    %v511 = vunpack.c.l.b16 %v92
    %v512 = vunpack.c.h.b16 %v92
    %v513 = vunpack.c.l.b16 %v93
    %v514 = vunpack.c.h.b16 %v93
    %v515 = vunpack.c.l.b16 %v94
    %v516 = vunpack.c.h.b16 %v94
    %v517 = vunpack.c.l.b16 %v95
    %v518 = vunpack.c.l.b16 %v96
    %v519 = vunpack.c.h.b16 %v96
    %v520 = vunpack.c.l.b16 %v97
    %v521 = vunpack.c.h.b16 %v97
    %v522 = vunpack.c.l.b16 %v98
    %v523 = vunpack.c.h.b16 %v98
    %v524 = vunpack.c.l.b16 %v99
    %v525 = vunpack.c.l.b16 %v100
    %v526 = vunpack.c.h.b16 %v100
    %v527 = vunpack.c.l.b16 %v101
    %v528 = vunpack.c.h.b16 %v101
    %v529 = vunpack.c.l.b16 %v102
    %v530 = vunpack.c.h.b16 %v102
    %v531 = vunpack.c.l.b16 %v103
    %v532 = vunpack.c.l.b16 %v104
    %v533 = vunpack.c.h.b16 %v104
    %v534 = vunpack.c.l.b16 %v105
    %v535 = vunpack.c.h.b16 %v105
    %v536 = vunpack.c.l.b16 %v106
    %v537 = vunpack.c.h.b16 %v106
    %v538 = vunpack.c.l.b16 %v107
    %v539 = vunpack.c.l.b16 %v108
    %v540 = vunpack.c.h.b16 %v108
    %v541 = vunpack.c.l.b16 %v109
    %v542 = vunpack.c.h.b16 %v109
    %v543 = vunpack.c.l.b16 %v110
    %v544 = vunpack.c.h.b16 %v110
    %v545 = vunpack.c.l.b16 %v111
    %v546 = vunpack.c.l.b16 %v112
    %v547 = vunpack.c.h.b16 %v112
    %v548 = vunpack.c.l.b16 %v113
    %v549 = vunpack.c.h.b16 %v113
    %v550 = vunpack.c.l.b16 %v114
    %v551 = vunpack.c.h.b16 %v114
    %v552 = vunpack.c.l.b16 %v115
    %v553 = vunpack.c.l.b16 %v116
    %v554 = vunpack.c.h.b16 %v116
    %v555 = vunpack.c.l.b16 %v117
    %v556 = vunpack.c.h.b16 %v117
    %v557 = vunpack.c.l.b16 %v118
    %v558 = vunpack.c.h.b16 %v118
    %v559 = vunpack.c.l.b16 %v119
    %v560 = vunpack.c.l.b16 %v120
    %v561 = vunpack.c.h.b16 %v120
    %v562 = vunpack.c.l.b16 %v121
    %v563 = vunpack.c.h.b16 %v121
    %v564 = vunpack.c.l.b16 %v122
    %v565 = vunpack.c.h.b16 %v122
    %v566 = vunpack.c.l.b16 %v123
    %v567 = vunpack.c.l.b16 %v124
    %v568 = vunpack.c.h.b16 %v124
    %v569 = vunpack.c.l.b16 %v125
    %v570 = vunpack.c.h.b16 %v125
    %v571 = vunpack.c.l.b16 %v126
    %v572 = vunpack.c.h.b16 %v126
    %v573 = vunpack.c.l.b16 %v127
    %v574 = vunpack.c.l.b16 %v128
    %v575 = vunpack.c.h.b16 %v128
    %v576 = vunpack.c.l.b16 %v129
    %v577 = vunpack.c.h.b16 %v129
    %v578 = vunpack.c.l.b16 %v130
    %v579 = vunpack.c.h.b16 %v130
    %v580 = vunpack.c.l.b16 %v131
    %v581 = vunpack.c.l.b16 %v132
    %v582 = vunpack.c.h.b16 %v132
    %v583 = vunpack.c.l.b16 %v133
    %v584 = vunpack.c.h.b16 %v133
    %v585 = vunpack.c.l.b16 %v134
    %v586 = vunpack.c.h.b16 %v134
    %v587 = vunpack.c.l.b16 %v135
    %v588 = vunpack.c.l.b16 %v136
    %v589 = vunpack.c.h.b16 %v136
    %v590 = vunpack.c.l.b16 %v137
    %v591 = vunpack.c.h.b16 %v137
    %v592 = vunpack.c.l.b16 %v138
    %v593 = vunpack.c.h.b16 %v138
    %v594 = vunpack.c.l.b16 %v139
    %v595 = vunpack.c.l.b16 %v140
    %v596 = vunpack.c.h.b16 %v140
    %v597 = vunpack.c.l.b16 %v141
    %v598 = vunpack.c.h.b16 %v141
    %v599 = vunpack.c.l.b16 %v142
    %v600 = vunpack.c.h.b16 %v142
    %v601 = vunpack.c.l.b16 %v143
    %v602 = vunpack.c.l.b16 %v144
    %v603 = vunpack.c.h.b16 %v144
    %v604 = vunpack.c.l.b16 %v145
    %v605 = vunpack.c.h.b16 %v145
    %v606 = vunpack.c.l.b16 %v146
    %v607 = vunpack.c.h.b16 %v146
    %v608 = vunpack.c.l.b16 %v147
    %v609 = vunpack.c.l.b16 %v148
    %v610 = vunpack.c.h.b16 %v148
    %v611 = vunpack.c.l.b16 %v149
    %v612 = vunpack.c.h.b16 %v149
    %v613 = vunpack.c.l.b16 %v150
    %v614 = vunpack.c.h.b16 %v150
    %v615 = vunpack.c.l.b16 %v151
    %v616 = vunpack.c.l.b16 %v152
    %v617 = vunpack.c.h.b16 %v152
    %v618 = vunpack.c.l.b16 %v153
    %v619 = vunpack.c.h.b16 %v153
    %v620 = vunpack.c.l.b16 %v154
    %v621 = vunpack.c.h.b16 %v154
    %v622 = vunpack.c.l.b16 %v155
    %v623 = vunpack.c.l.b16 %v156
    %v624 = vunpack.c.h.b16 %v156
    %v625 = vunpack.c.l.b16 %v157
    %v626 = vunpack.c.h.b16 %v157
    %v627 = vunpack.c.l.b16 %v158
    %v628 = vunpack.c.h.b16 %v158
    %v629 = vunpack.c.l.b16 %v159
    %v630 = vunpack.c.l.b16 %v160
    %v631 = vunpack.c.h.b16 %v160
    %v632 = vunpack.c.l.b16 %v161
    %v633 = vunpack.c.h.b16 %v161
    %v634 = vunpack.c.l.b16 %v162
    %v635 = vunpack.c.h.b16 %v162
    %v636 = vunpack.c.l.b16 %v163
    %v637 = vunpack.c.l.b16 %v164
    %v638 = vunpack.c.h.b16 %v164
    %v639 = vunpack.c.l.b16 %v165
    %v640 = vunpack.c.h.b16 %v165
    %v641 = vunpack.c.l.b16 %v166
    %v642 = vunpack.c.h.b16 %v166
    %v643 = vunpack.c.l.b16 %v167
    %v644 = vunpack.c.l.b16 %v168
    %v645 = vunpack.c.h.b16 %v168
    %v646 = vunpack.c.l.b16 %v169
    %v647 = vunpack.c.h.b16 %v169
    %v648 = vunpack.c.l.b16 %v170
    %v649 = vunpack.c.h.b16 %v170
    %v650 = vunpack.c.l.b16 %v171
    %v651 = vunpack.c.l.b16 %v172
    %v652 = vunpack.c.h.b16 %v172
    %v653 = vunpack.c.l.b16 %v173
    %v654 = vunpack.c.h.b16 %v173
    %v655 = vunpack.c.l.b16 %v174
    %v656 = vunpack.c.h.b16 %v174
    %v657 = vunpack.c.l.b16 %v175
    %v658 = vunpack.c.l.b16 %v176
    %v659 = vunpack.c.h.b16 %v176
    %v660 = vunpack.c.l.b16 %v177
    %v661 = vunpack.c.h.b16 %v177
    %v662 = vunpack.c.l.b16 %v178
    %v663 = vunpack.c.h.b16 %v178
    %v664 = vunpack.c.l.b16 %v179
    %v665 = vunpack.c.l.b16 %v180
    %v666 = vunpack.c.h.b16 %v180
    %v667 = vunpack.c.l.b16 %v181
    %v668 = vunpack.c.h.b16 %v181
    %v669 = vunpack.c.l.b16 %v182
    %v670 = vunpack.c.h.b16 %v182
    %v671 = vunpack.c.l.b16 %v183
    %v672 = vunpack.c.l.b16 %v184
    %v673 = vunpack.c.h.b16 %v184
    %v674 = vunpack.c.l.b16 %v185
    %v675 = vunpack.c.h.b16 %v185
    %v676 = vunpack.c.l.b16 %v186
    %v677 = vunpack.c.h.b16 %v186
    %v678 = vunpack.c.l.b16 %v187
    %v679 = vunpack.c.l.b16 %v188
    %v680 = vunpack.c.h.b16 %v188
    %v681 = vunpack.c.l.b16 %v189
    %v682 = vunpack.c.h.b16 %v189
    %v683 = vunpack.c.l.b16 %v190
    %v684 = vunpack.c.h.b16 %v190
    %v685 = vunpack.c.l.b16 %v191
    %v686 = vunpack.c.l.b16 %v192
    %v687 = vunpack.c.h.b16 %v192
    %v688 = vunpack.c.l.b16 %v193
    %v689 = vunpack.c.h.b16 %v193
    %v690 = vunpack.c.l.b16 %v194
    %v691 = vunpack.c.h.b16 %v194
    %v692 = vunpack.c.l.b16 %v195
    %v693 = vunpack.c.l.b16 %v196
    %v694 = vunpack.c.h.b16 %v196
    %v695 = vunpack.c.l.b16 %v197
    %v696 = vunpack.c.h.b16 %v197
    %v697 = vunpack.c.l.b16 %v198
    %v698 = vunpack.c.h.b16 %v198
    %v699 = vunpack.c.l.b16 %v199
    %v700 = vunpack.c.l.b16 %v200
    %v701 = vunpack.c.h.b16 %v200
    %v702 = vunpack.c.l.b16 %v201
    %v703 = vunpack.c.h.b16 %v201
    %v704 = vunpack.c.l.b16 %v202
    %v705 = vunpack.c.h.b16 %v202
    %v706 = vunpack.c.l.b16 %v203
    %v707 = vunpack.c.l.b16 %v204
    %v708 = vunpack.c.h.b16 %v204
    %v709 = vunpack.c.l.b16 %v205
    %v710 = vunpack.c.h.b16 %v205
    %v711 = vunpack.c.l.b16 %v206
    %v712 = vunpack.c.h.b16 %v206
    %v713 = vunpack.c.l.b16 %v207
    %v714 = vunpack.c.l.b16 %v208
    %v715 = vunpack.c.h.b16 %v208
    %v716 = vunpack.c.l.b16 %v209
    %v717 = vunpack.c.h.b16 %v209
    %v718 = vunpack.c.l.b16 %v210
    %v719 = vunpack.c.h.b16 %v210
    %v720 = vunpack.c.l.b16 %v211
    %v721 = vunpack.c.l.b16 %v212
    %v722 = vunpack.c.h.b16 %v212
    %v723 = vunpack.c.l.b16 %v213
    %v724 = vunpack.c.h.b16 %v213
    %v725 = vunpack.c.l.b16 %v214
    %v726 = vunpack.c.h.b16 %v214
    %v727 = vunpack.c.l.b16 %v215
    %v728 = vunpack.c.l.b16 %v216
    %v729 = vunpack.c.h.b16 %v216
    %v730 = vunpack.c.l.b16 %v217
    %v731 = vunpack.c.h.b16 %v217
    %v732 = vunpack.c.l.b16 %v218
    %v733 = vunpack.c.h.b16 %v218
    %v734 = vunpack.c.l.b16 %v219
    %v735 = vunpack.c.l.b16 %v220
    %v736 = vunpack.c.h.b16 %v220
    %v737 = vunpack.c.l.b16 %v221
    %v738 = vunpack.c.h.b16 %v221
    %v739 = vunpack.c.l.b16 %v222
    %v740 = vunpack.c.h.b16 %v222
    %v741 = vunpack.c.l.b16 %v223
    %v742 = vunpack.c.l.b16 %v224
    %v743 = vunpack.c.h.b16 %v224
    %v744 = vunpack.c.l.b16 %v225
    %v745 = vunpack.c.h.b16 %v225
    %v746 = vunpack.c.l.b16 %v226
    %v747 = vunpack.c.h.b16 %v226
    %v748 = vunpack.c.l.b16 %v227
    %v749 = vunpack.c.l.b16 %v228
    %v750 = vunpack.c.h.b16 %v228
    %v751 = vunpack.c.l.b16 %v229
    %v752 = vunpack.c.h.b16 %v229
    %v753 = vunpack.c.l.b16 %v230
    %v754 = vunpack.c.h.b16 %v230
    %v755 = vunpack.c.l.b16 %v231
    %v756 = vunpack.c.l.b16 %v232
    %v757 = vunpack.c.h.b16 %v232
    %v758 = vunpack.c.l.b16 %v233
    %v759 = vunpack.c.h.b16 %v233
    %v760 = vunpack.c.l.b16 %v234
    %v761 = vunpack.c.h.b16 %v234
    %v762 = vunpack.c.l.b16 %v235
    %v763 = vunpack.c.l.b16 %v236
    %v764 = vunpack.c.h.b16 %v236
    %v765 = vunpack.c.l.b16 %v237
    %v766 = vunpack.c.h.b16 %v237
    %v767 = vunpack.c.l.b16 %v238
    %v768 = vunpack.c.h.b16 %v238
    %v769 = vunpack.c.l.b16 %v239
    %v770 = vunpack.c.l.b16 %v240
    %v771 = vunpack.c.h.b16 %v240
    %v772 = vunpack.c.l.b16 %v241
    %v773 = vunpack.c.h.b16 %v241
    %v774 = vunpack.c.l.b16 %v242
    %v775 = vunpack.c.h.b16 %v242
    %v776 = vunpack.c.l.b16 %v243
    %v777 = vunpack.c.l.b16 %v244
    %v778 = vunpack.c.h.b16 %v244
    %v779 = vunpack.c.l.b16 %v245
    %v780 = vunpack.c.h.b16 %v245
    %v781 = vunpack.c.l.b16 %v246
    %v782 = vunpack.c.h.b16 %v246
    %v783 = vunpack.c.l.b16 %v247
    %v784 = vunpack.c.l.b16 %v248
    %v785 = vunpack.c.h.b16 %v248
    %v786 = vunpack.c.l.b16 %v249
    %v787 = vunpack.c.h.b16 %v249
    %v788 = vunpack.c.l.b16 %v250
    %v789 = vunpack.c.h.b16 %v250
    %v790 = vunpack.c.l.b16 %v251
    %v791 = vpack.c.b16 %v455, %v448
    %v792 = vpack.c.b16 %v456, %v449
    %v793 = vpack.c.b16 %v457, %v450
    %v794 = vpack.c.b16 %v458, %v451
    %v795 = vpack.c.b16 %v459, %v452
    %v796 = vpack.c.b16 %v460, %v453
    %v797 = vpack.c.b16 %v461, %v454
    %v798 = vpack.c.b16 %v469, %v462
    %v799 = vpack.c.b16 %v470, %v463
    %v800 = vpack.c.b16 %v471, %v464
    %v801 = vpack.c.b16 %v472, %v465
    %v802 = vpack.c.b16 %v473, %v466
    %v803 = vpack.c.b16 %v474, %v467
    %v804 = vpack.c.b16 %v475, %v468
    %v805 = vpack.c.b16 %v483, %v476
    %v806 = vpack.c.b16 %v484, %v477
    %v807 = vpack.c.b16 %v485, %v478
    %v808 = vpack.c.b16 %v486, %v479
    %v809 = vpack.c.b16 %v487, %v480
    %v810 = vpack.c.b16 %v488, %v481
    %v811 = vpack.c.b16 %v489, %v482
    %v812 = vpack.c.b16 %v497, %v490
    %v813 = vpack.c.b16 %v498, %v491
    %v814 = vpack.c.b16 %v499, %v492
    %v815 = vpack.c.b16 %v500, %v493
    %v816 = vpack.c.b16 %v501, %v494
    %v817 = vpack.c.b16 %v502, %v495
    %v818 = vpack.c.b16 %v503, %v496
    %v819 = vpack.c.b16 %v511, %v504
    %v820 = vpack.c.b16 %v512, %v505
    %v821 = vpack.c.b16 %v513, %v506
    %v822 = vpack.c.b16 %v514, %v507
    %v823 = vpack.c.b16 %v515, %v508
    %v824 = vpack.c.b16 %v516, %v509
    %v825 = vpack.c.b16 %v517, %v510
    %v826 = vpack.c.b16 %v525, %v518
    %v827 = vpack.c.b16 %v526, %v519
    %v828 = vpack.c.b16 %v527, %v520
    %v829 = vpack.c.b16 %v528, %v521
    %v830 = vpack.c.b16 %v529, %v522
    %v831 = vpack.c.b16 %v530, %v523
    %v832 = vpack.c.b16 %v531, %v524
    %v833 = vpack.c.b16 %v539, %v532
    %v834 = vpack.c.b16 %v540, %v533
    %v835 = vpack.c.b16 %v541, %v534
    %v836 = vpack.c.b16 %v542, %v535
    %v837 = vpack.c.b16 %v543, %v536
    %v838 = vpack.c.b16 %v544, %v537
    %v839 = vpack.c.b16 %v545, %v538
    %v840 = vpack.c.b16 %v553, %v546
    %v841 = vpack.c.b16 %v554, %v547
    %v842 = vpack.c.b16 %v555, %v548
    %v843 = vpack.c.b16 %v556, %v549
    %v844 = vpack.c.b16 %v557, %v550
    %v845 = vpack.c.b16 %v558, %v551
    %v846 = vpack.c.b16 %v559, %v552
    %v847 = vpack.c.b16 %v567, %v560
    %v848 = vpack.c.b16 %v568, %v561
    %v849 = vpack.c.b16 %v569, %v562
    %v850 = vpack.c.b16 %v570, %v563
    %v851 = vpack.c.b16 %v571, %v564
    %v852 = vpack.c.b16 %v572, %v565
    %v853 = vpack.c.b16 %v573, %v566
    %v854 = vpack.c.b16 %v581, %v574
    %v855 = vpack.c.b16 %v582, %v575
    %v856 = vpack.c.b16 %v583, %v576
    %v857 = vpack.c.b16 %v584, %v577
    %v858 = vpack.c.b16 %v585, %v578
    %v859 = vpack.c.b16 %v586, %v579
    %v860 = vpack.c.b16 %v587, %v580
    %v861 = vpack.c.b16 %v595, %v588
    %v862 = vpack.c.b16 %v596, %v589
    %v863 = vpack.c.b16 %v597, %v590
    %v864 = vpack.c.b16 %v598, %v591
    %v865 = vpack.c.b16 %v599, %v592
    %v866 = vpack.c.b16 %v600, %v593
    %v867 = vpack.c.b16 %v601, %v594
    %v868 = vpack.c.b16 %v609, %v602
    %v869 = vpack.c.b16 %v610, %v603
    %v870 = vpack.c.b16 %v611, %v604
    %v871 = vpack.c.b16 %v612, %v605
    %v872 = vpack.c.b16 %v613, %v606
    %v873 = vpack.c.b16 %v614, %v607
    %v874 = vpack.c.b16 %v615, %v608
    %v875 = vpack.c.b16 %v623, %v616
    %v876 = vpack.c.b16 %v624, %v617
    %v877 = vpack.c.b16 %v625, %v618
    %v878 = vpack.c.b16 %v626, %v619
    %v879 = vpack.c.b16 %v627, %v620
    %v880 = vpack.c.b16 %v628, %v621
    %v881 = vpack.c.b16 %v629, %v622
    %v882 = vpack.c.b16 %v637, %v630
    %v883 = vpack.c.b16 %v638, %v631
    %v884 = vpack.c.b16 %v639, %v632
    %v885 = vpack.c.b16 %v640, %v633
    %v886 = vpack.c.b16 %v641, %v634
    %v887 = vpack.c.b16 %v642, %v635
    %v888 = vpack.c.b16 %v643, %v636
    %v889 = vpack.c.b16 %v651, %v644
    %v890 = vpack.c.b16 %v652, %v645
    %v891 = vpack.c.b16 %v653, %v646
    %v892 = vpack.c.b16 %v654, %v647
    %v893 = vpack.c.b16 %v655, %v648
    %v894 = vpack.c.b16 %v656, %v649
    %v895 = vpack.c.b16 %v657, %v650
    %v896 = vpack.c.b16 %v665, %v658
    %v897 = vpack.c.b16 %v666, %v659
    %v898 = vpack.c.b16 %v667, %v660
    %v899 = vpack.c.b16 %v668, %v661
    %v900 = vpack.c.b16 %v669, %v662
    %v901 = vpack.c.b16 %v670, %v663
    %v902 = vpack.c.b16 %v671, %v664
    %v903 = vpack.c.b16 %v679, %v672
    %v904 = vpack.c.b16 %v680, %v673
    %v905 = vpack.c.b16 %v681, %v674
    %v906 = vpack.c.b16 %v682, %v675
    %v907 = vpack.c.b16 %v683, %v676
    %v908 = vpack.c.b16 %v684, %v677
    %v909 = vpack.c.b16 %v685, %v678
    %v910 = vpack.c.b16 %v693, %v686
    %v911 = vpack.c.b16 %v694, %v687
    %v912 = vpack.c.b16 %v695, %v688
    %v913 = vpack.c.b16 %v696, %v689
    %v914 = vpack.c.b16 %v697, %v690
    %v915 = vpack.c.b16 %v698, %v691
    %v916 = vpack.c.b16 %v699, %v692
    %v917 = vpack.c.b16 %v707, %v700
    %v918 = vpack.c.b16 %v708, %v701
    %v919 = vpack.c.b16 %v709, %v702
    %v920 = vpack.c.b16 %v710, %v703
    %v921 = vpack.c.b16 %v711, %v704
    %v922 = vpack.c.b16 %v712, %v705
    %v923 = vpack.c.b16 %v713, %v706
    %v924 = vpack.c.b16 %v721, %v714
    %v925 = vpack.c.b16 %v722, %v715
    %v926 = vpack.c.b16 %v723, %v716
    %v927 = vpack.c.b16 %v724, %v717
    %v928 = vpack.c.b16 %v725, %v718
    %v929 = vpack.c.b16 %v726, %v719
    %v930 = vpack.c.b16 %v727, %v720
    %v931 = vpack.c.b16 %v735, %v728
    %v932 = vpack.c.b16 %v736, %v729
    %v933 = vpack.c.b16 %v737, %v730
    %v934 = vpack.c.b16 %v738, %v731
    %v935 = vpack.c.b16 %v739, %v732
    %v936 = vpack.c.b16 %v740, %v733
    %v937 = vpack.c.b16 %v741, %v734
    %v938 = vpack.c.b16 %v749, %v742
    %v939 = vpack.c.b16 %v750, %v743
    %v940 = vpack.c.b16 %v751, %v744
    %v941 = vpack.c.b16 %v752, %v745
    %v942 = vpack.c.b16 %v753, %v746
    %v943 = vpack.c.b16 %v754, %v747
    %v944 = vpack.c.b16 %v755, %v748
    %v945 = vpack.c.b16 %v763, %v756
    %v946 = vpack.c.b16 %v764, %v757
    %v947 = vpack.c.b16 %v765, %v758
    %v948 = vpack.c.b16 %v766, %v759
    %v949 = vpack.c.b16 %v767, %v760
    %v950 = vpack.c.b16 %v768, %v761
    %v951 = vpack.c.b16 %v769, %v762
    %v952 = vpack.c.b16 %v777, %v770
    %v953 = vpack.c.b16 %v778, %v771
    %v954 = vpack.c.b16 %v779, %v772
    %v955 = vpack.c.b16 %v780, %v773
    %v956 = vpack.c.b16 %v781, %v774
    %v957 = vpack.c.b16 %v782, %v775
    %v958 = vpack.c.b16 %v783, %v776
    %v959 = vpack.c.b16 %v784, %v784
    %v960 = vpack.c.b16 %v785, %v785
    %v961 = vpack.c.b16 %v786, %v786
    %v962 = vpack.c.b16 %v787, %v787
    %v963 = vpack.c.b16 %v788, %v788
    %v964 = vpack.c.b16 %v789, %v789
    %v965 = vpack.c.b16 %v790, %v790
    %vm1134 = vcmask 48128
    %v1136 = vsel %vm1134, %v55, 0
    %vm1138 = vcmask 1042432
    %v1140 = vsel %vm1138, %v959, 0
    %v1143 = vsel %vm1138, %v960, 0
    %v1146 = vsel %vm1138, %v961, 0
    %v1149 = vsel %vm1138, %v962, 0
    %v1152 = vsel %vm1138, %v963, 0
    %v1155 = vsel %vm1138, %v964, 0
    %v1158 = vsel %vm1138, %v965, 0
    %1160 = vmatprep.subr.bf16.mxu0 %v792
    %1161 = vmatpush1.bf16.msra.mxu0 %v791
    %1162 = vmatprep.subr.bf16.mxu0 %v799
    %1163 = vmatpush1.bf16.msra.mxu0 %v798
    %1164 = vmatprep.subr.bf16.mxu0 %v806
    %1165 = vmatpush1.bf16.msra.mxu0 %v805
    %1166 = vmatprep.subr.bf16.mxu0 %v813
    %1167 = vmatpush1.bf16.msra.mxu0 %v812
    %1168 = vmatprep.subr.bf16.mxu0 %v820
    %1169 = vmatpush1.bf16.msra.mxu0 %v819
    %1170 = vmatprep.subr.bf16.mxu0 %v827
    %1171 = vmatpush1.bf16.msra.mxu0 %v826
    %1172 = vmatprep.subr.bf16.mxu0 %v834
    %1173 = vmatpush1.bf16.msra.mxu0 %v833
    %1174 = vmatprep.subr.bf16.mxu0 %v841
    %1175 = vmatpush1.bf16.msra.mxu0 %v840
    %1176 = vmatprep.subr.bf16.mxu0 %v848
    %1177 = vmatpush1.bf16.msra.mxu0 %v847
    %1178 = vmatprep.subr.bf16.mxu0 %v855
    %1179 = vmatpush1.bf16.msra.mxu0 %v854
    %1180 = vmatprep.subr.bf16.mxu0 %v862
    %1181 = vmatpush1.bf16.msra.mxu0 %v861
    %1182 = vmatprep.subr.bf16.mxu0 %v869
    %1183 = vmatpush1.bf16.msra.mxu0 %v868
    %1184 = vmatprep.subr.bf16.mxu0 %v876
    %1185 = vmatpush1.bf16.msra.mxu0 %v875
    %1186 = vmatprep.subr.bf16.mxu0 %v883
    %1187 = vmatpush1.bf16.msra.mxu0 %v882
    %1188 = vmatprep.subr.bf16.mxu0 %v890
    %1189 = vmatpush1.bf16.msra.mxu0 %v889
    %1190 = vmatprep.subr.bf16.mxu0 %v897
    %1191 = vmatpush1.bf16.msra.mxu0 %v896
    %1192 = vmatprep.mubr.bf16.mxu0 %v53
    %1193 = vmatmul.mubr.bf16.gmra.mrb[0].mxu0 %v52
    %v1194 = vpop.f32.mrb[0].mxu0
    %v1195 = vadd.f32 0.0, %v1194
    %v1196 = vpop.f32.mrb[0].mxu0
    %v1197 = vadd.f32 0.0, %v1196
    %v1198 = vpop.f32.mrb[0].mxu0
    %v1199 = vpop.f32.mrb[0].mxu0
    %1200 = vdwg.mxu0
    %1201 = vmatprep.subr.bf16.mxu0 %v904
    %1202 = vmatpush1.bf16.msra.mxu0 %v903
    %1203 = vmatprep.subr.bf16.mxu0 %v911
    %1204 = vmatpush1.bf16.msra.mxu0 %v910
    %1205 = vmatprep.subr.bf16.mxu0 %v918
    %1206 = vmatpush1.bf16.msra.mxu0 %v917
    %1207 = vmatprep.subr.bf16.mxu0 %v925
    %1208 = vmatpush1.bf16.msra.mxu0 %v924
    %1209 = vmatprep.subr.bf16.mxu0 %v932
    %1210 = vmatpush1.bf16.msra.mxu0 %v931
    %1211 = vmatprep.subr.bf16.mxu0 %v939
    %1212 = vmatpush1.bf16.msra.mxu0 %v938
    %1213 = vmatprep.subr.bf16.mxu0 %v946
    %1214 = vmatpush1.bf16.msra.mxu0 %v945
    %1215 = vmatprep.subr.bf16.mxu0 %v953
    %1216 = vmatpush1.bf16.msra.mxu0 %v952
    %1217 = vmatprep.subr.bf16.mxu0 %v1143
    %1218 = vmatpush1.bf16.msra.mxu0 %v1140
    %1219 = vmatprep.subr.bf16.mxu0 0
    %1220 = vmatpush1.bf16.msra.mxu0 0
    %1221 = vmatprep.subr.bf16.mxu0 0
    %1222 = vmatpush1.bf16.msra.mxu0 0
    %1223 = vmatprep.subr.bf16.mxu0 0
    %1224 = vmatpush1.bf16.msra.mxu0 0
    %1225 = vmatprep.subr.bf16.mxu0 0
    %1226 = vmatpush1.bf16.msra.mxu0 0
    %1227 = vmatprep.subr.bf16.mxu0 0
    %1228 = vmatpush1.bf16.msra.mxu0 0
    %1229 = vmatprep.subr.bf16.mxu0 0
    %1230 = vmatpush1.bf16.msra.mxu0 0
    %1231 = vmatprep.subr.bf16.mxu0 0
    %1232 = vmatpush1.bf16.msra.mxu0 0
    %1233 = vmatprep.mubr.bf16.mxu0 %v1136
    %1234 = vmatmul.mubr.bf16.gmra.mrb[0].mxu0 %v54
    %v1235 = vpop.f32.mrb[0].mxu0
    %v1236 = vadd.f32 %v1195, %v1235
    %v1237 = vpop.f32.mrb[0].mxu0
    %v1238 = vadd.f32 %v1197, %v1237
    %v1239 = vpop.f32.mrb[0].mxu0
    %v1240 = vpop.f32.mrb[0].mxu0
    %1241 = vdwg.mxu0
    %1242 = vmatprep.subr.bf16.mxu0 %v794
    %1243 = vmatpush1.bf16.msra.mxu0 %v793
    %1244 = vmatprep.subr.bf16.mxu0 %v801
    %1245 = vmatpush1.bf16.msra.mxu0 %v800
    %1246 = vmatprep.subr.bf16.mxu0 %v808
    %1247 = vmatpush1.bf16.msra.mxu0 %v807
    %1248 = vmatprep.subr.bf16.mxu0 %v815
    %1249 = vmatpush1.bf16.msra.mxu0 %v814
    %1250 = vmatprep.subr.bf16.mxu0 %v822
    %1251 = vmatpush1.bf16.msra.mxu0 %v821
    %1252 = vmatprep.subr.bf16.mxu0 %v829
    %1253 = vmatpush1.bf16.msra.mxu0 %v828
    %1254 = vmatprep.subr.bf16.mxu0 %v836
    %1255 = vmatpush1.bf16.msra.mxu0 %v835
    %1256 = vmatprep.subr.bf16.mxu0 %v843
    %1257 = vmatpush1.bf16.msra.mxu0 %v842
    %1258 = vmatprep.subr.bf16.mxu0 %v850
    %1259 = vmatpush1.bf16.msra.mxu0 %v849
    %1260 = vmatprep.subr.bf16.mxu0 %v857
    %1261 = vmatpush1.bf16.msra.mxu0 %v856
    %1262 = vmatprep.subr.bf16.mxu0 %v864
    %1263 = vmatpush1.bf16.msra.mxu0 %v863
    %1264 = vmatprep.subr.bf16.mxu0 %v871
    %1265 = vmatpush1.bf16.msra.mxu0 %v870
    %1266 = vmatprep.subr.bf16.mxu0 %v878
    %1267 = vmatpush1.bf16.msra.mxu0 %v877
    %1268 = vmatprep.subr.bf16.mxu0 %v885
    %1269 = vmatpush1.bf16.msra.mxu0 %v884
    %1270 = vmatprep.subr.bf16.mxu0 %v892
    %1271 = vmatpush1.bf16.msra.mxu0 %v891
    %1272 = vmatprep.subr.bf16.mxu0 %v899
    %1273 = vmatpush1.bf16.msra.mxu0 %v898
    %1274 = vmatprep.mubr.bf16.mxu0 %v53
    %1275 = vmatmul.mubr.bf16.gmra.mrb[0].mxu0 %v52
    %v1276 = vpop.f32.mrb[0].mxu0
    %v1277 = vadd.f32 0.0, %v1276
    %v1278 = vpop.f32.mrb[0].mxu0
    %v1279 = vadd.f32 0.0, %v1278
    %v1280 = vpop.f32.mrb[0].mxu0
    %v1281 = vpop.f32.mrb[0].mxu0
    %1282 = vdwg.mxu0
    %1283 = vmatprep.subr.bf16.mxu0 %v906
    %1284 = vmatpush1.bf16.msra.mxu0 %v905
    %1285 = vmatprep.subr.bf16.mxu0 %v913
    %1286 = vmatpush1.bf16.msra.mxu0 %v912
    %1287 = vmatprep.subr.bf16.mxu0 %v920
    %1288 = vmatpush1.bf16.msra.mxu0 %v919
    %1289 = vmatprep.subr.bf16.mxu0 %v927
    %1290 = vmatpush1.bf16.msra.mxu0 %v926
    %1291 = vmatprep.subr.bf16.mxu0 %v934
    %1292 = vmatpush1.bf16.msra.mxu0 %v933
    %1293 = vmatprep.subr.bf16.mxu0 %v941
    %1294 = vmatpush1.bf16.msra.mxu0 %v940
    %1295 = vmatprep.subr.bf16.mxu0 %v948
    %1296 = vmatpush1.bf16.msra.mxu0 %v947
    %1297 = vmatprep.subr.bf16.mxu0 %v955
    %1298 = vmatpush1.bf16.msra.mxu0 %v954
    %1299 = vmatprep.subr.bf16.mxu0 %v1149
    %1300 = vmatpush1.bf16.msra.mxu0 %v1146
    %1301 = vmatprep.subr.bf16.mxu0 0
    %1302 = vmatpush1.bf16.msra.mxu0 0
    %1303 = vmatprep.subr.bf16.mxu0 0
    %1304 = vmatpush1.bf16.msra.mxu0 0
    %1305 = vmatprep.subr.bf16.mxu0 0
    %1306 = vmatpush1.bf16.msra.mxu0 0
    %1307 = vmatprep.subr.bf16.mxu0 0
    %1308 = vmatpush1.bf16.msra.mxu0 0
    %1309 = vmatprep.subr.bf16.mxu0 0
    %1310 = vmatpush1.bf16.msra.mxu0 0
    %1311 = vmatprep.subr.bf16.mxu0 0
    %1312 = vmatpush1.bf16.msra.mxu0 0
    %1313 = vmatprep.subr.bf16.mxu0 0
    %1314 = vmatpush1.bf16.msra.mxu0 0
    %1315 = vmatprep.mubr.bf16.mxu0 %v1136
    %1316 = vmatmul.mubr.bf16.gmra.mrb[0].mxu0 %v54
    %v1317 = vpop.f32.mrb[0].mxu0
    %v1318 = vadd.f32 %v1277, %v1317
    %v1319 = vpop.f32.mrb[0].mxu0
    %v1320 = vadd.f32 %v1279, %v1319
    %v1321 = vpop.f32.mrb[0].mxu0
    %v1322 = vpop.f32.mrb[0].mxu0
    %1323 = vdwg.mxu0
    %1324 = vmatprep.subr.bf16.mxu0 %v796
    %1325 = vmatpush1.bf16.msra.mxu0 %v795
    %1326 = vmatprep.subr.bf16.mxu0 %v803
    %1327 = vmatpush1.bf16.msra.mxu0 %v802
    %1328 = vmatprep.subr.bf16.mxu0 %v810
    %1329 = vmatpush1.bf16.msra.mxu0 %v809
    %1330 = vmatprep.subr.bf16.mxu0 %v817
    %1331 = vmatpush1.bf16.msra.mxu0 %v816
    %1332 = vmatprep.subr.bf16.mxu0 %v824
    %1333 = vmatpush1.bf16.msra.mxu0 %v823
    %1334 = vmatprep.subr.bf16.mxu0 %v831
    %1335 = vmatpush1.bf16.msra.mxu0 %v830
    %1336 = vmatprep.subr.bf16.mxu0 %v838
    %1337 = vmatpush1.bf16.msra.mxu0 %v837
    %1338 = vmatprep.subr.bf16.mxu0 %v845
    %1339 = vmatpush1.bf16.msra.mxu0 %v844
    %1340 = vmatprep.subr.bf16.mxu0 %v852
    %1341 = vmatpush1.bf16.msra.mxu0 %v851
    %1342 = vmatprep.subr.bf16.mxu0 %v859
    %1343 = vmatpush1.bf16.msra.mxu0 %v858
    %1344 = vmatprep.subr.bf16.mxu0 %v866
    %1345 = vmatpush1.bf16.msra.mxu0 %v865
    %1346 = vmatprep.subr.bf16.mxu0 %v873
    %1347 = vmatpush1.bf16.msra.mxu0 %v872
    %1348 = vmatprep.subr.bf16.mxu0 %v880
    %1349 = vmatpush1.bf16.msra.mxu0 %v879
    %1350 = vmatprep.subr.bf16.mxu0 %v887
    %1351 = vmatpush1.bf16.msra.mxu0 %v886
    %1352 = vmatprep.subr.bf16.mxu0 %v894
    %1353 = vmatpush1.bf16.msra.mxu0 %v893
    %1354 = vmatprep.subr.bf16.mxu0 %v901
    %1355 = vmatpush1.bf16.msra.mxu0 %v900
    %1356 = vmatprep.mubr.bf16.mxu0 %v53
    %1357 = vmatmul.mubr.bf16.gmra.mrb[0].mxu0 %v52
    %v1358 = vpop.f32.mrb[0].mxu0
    %v1359 = vadd.f32 0.0, %v1358
    %v1360 = vpop.f32.mrb[0].mxu0
    %v1361 = vadd.f32 0.0, %v1360
    %v1362 = vpop.f32.mrb[0].mxu0
    %v1363 = vpop.f32.mrb[0].mxu0
    %1364 = vdwg.mxu0
    %1365 = vmatprep.subr.bf16.mxu0 %v908
    %1366 = vmatpush1.bf16.msra.mxu0 %v907
    %1367 = vmatprep.subr.bf16.mxu0 %v915
    %1368 = vmatpush1.bf16.msra.mxu0 %v914
    %1369 = vmatprep.subr.bf16.mxu0 %v922
    %1370 = vmatpush1.bf16.msra.mxu0 %v921
    %1371 = vmatprep.subr.bf16.mxu0 %v929
    %1372 = vmatpush1.bf16.msra.mxu0 %v928
    %1373 = vmatprep.subr.bf16.mxu0 %v936
    %1374 = vmatpush1.bf16.msra.mxu0 %v935
    %1375 = vmatprep.subr.bf16.mxu0 %v943
    %1376 = vmatpush1.bf16.msra.mxu0 %v942
    %1377 = vmatprep.subr.bf16.mxu0 %v950
    %1378 = vmatpush1.bf16.msra.mxu0 %v949
    %1379 = vmatprep.subr.bf16.mxu0 %v957
    %1380 = vmatpush1.bf16.msra.mxu0 %v956
    %1381 = vmatprep.subr.bf16.mxu0 %v1155
    %1382 = vmatpush1.bf16.msra.mxu0 %v1152
    %1383 = vmatprep.subr.bf16.mxu0 0
    %1384 = vmatpush1.bf16.msra.mxu0 0
    %1385 = vmatprep.subr.bf16.mxu0 0
    %1386 = vmatpush1.bf16.msra.mxu0 0
    %1387 = vmatprep.subr.bf16.mxu0 0
    %1388 = vmatpush1.bf16.msra.mxu0 0
    %1389 = vmatprep.subr.bf16.mxu0 0
    %1390 = vmatpush1.bf16.msra.mxu0 0
    %1391 = vmatprep.subr.bf16.mxu0 0
    %1392 = vmatpush1.bf16.msra.mxu0 0
    %1393 = vmatprep.subr.bf16.mxu0 0
    %1394 = vmatpush1.bf16.msra.mxu0 0
    %1395 = vmatprep.subr.bf16.mxu0 0
    %1396 = vmatpush1.bf16.msra.mxu0 0
    %1397 = vmatprep.mubr.bf16.mxu0 %v1136
    %1398 = vmatmul.mubr.bf16.gmra.mrb[0].mxu0 %v54
    %v1399 = vpop.f32.mrb[0].mxu0
    %v1400 = vadd.f32 %v1359, %v1399
    %v1401 = vpop.f32.mrb[0].mxu0
    %v1402 = vadd.f32 %v1361, %v1401
    %v1403 = vpop.f32.mrb[0].mxu0
    %v1404 = vpop.f32.mrb[0].mxu0
    %1405 = vdwg.mxu0
    %1406 = vmatprep.subr.bf16.mxu0 0
    %1407 = vmatpush1.bf16.msra.mxu0 %v797
    %1408 = vmatprep.subr.bf16.mxu0 0
    %1409 = vmatpush1.bf16.msra.mxu0 %v804
    %1410 = vmatprep.subr.bf16.mxu0 0
    %1411 = vmatpush1.bf16.msra.mxu0 %v811
    %1412 = vmatprep.subr.bf16.mxu0 0
    %1413 = vmatpush1.bf16.msra.mxu0 %v818
    %1414 = vmatprep.subr.bf16.mxu0 0
    %1415 = vmatpush1.bf16.msra.mxu0 %v825
    %1416 = vmatprep.subr.bf16.mxu0 0
    %1417 = vmatpush1.bf16.msra.mxu0 %v832
    %1418 = vmatprep.subr.bf16.mxu0 0
    %1419 = vmatpush1.bf16.msra.mxu0 %v839
    %1420 = vmatprep.subr.bf16.mxu0 0
    %1421 = vmatpush1.bf16.msra.mxu0 %v846
    %1422 = vmatprep.subr.bf16.mxu0 0
    %1423 = vmatpush1.bf16.msra.mxu0 %v853
    %1424 = vmatprep.subr.bf16.mxu0 0
    %1425 = vmatpush1.bf16.msra.mxu0 %v860
    %1426 = vmatprep.subr.bf16.mxu0 0
    %1427 = vmatpush1.bf16.msra.mxu0 %v867
    %1428 = vmatprep.subr.bf16.mxu0 0
    %1429 = vmatpush1.bf16.msra.mxu0 %v874
    %1430 = vmatprep.subr.bf16.mxu0 0
    %1431 = vmatpush1.bf16.msra.mxu0 %v881
    %1432 = vmatprep.subr.bf16.mxu0 0
    %1433 = vmatpush1.bf16.msra.mxu0 %v888
    %1434 = vmatprep.subr.bf16.mxu0 0
    %1435 = vmatpush1.bf16.msra.mxu0 %v895
    %1436 = vmatprep.subr.bf16.mxu0 0
    %1437 = vmatpush1.bf16.msra.mxu0 %v902
    %1438 = vmatprep.mubr.bf16.mxu0 %v53
    %1439 = vmatmul.mubr.bf16.gmra.mrb[0].mxu0 %v52
    %v1440 = vpop.f32.mrb[0].mxu0
    %v1441 = vadd.f32 0.0, %v1440
    %v1442 = vpop.f32.mrb[0].mxu0
    %v1443 = vpop.f32.mrb[0].mxu0
    %v1444 = vpop.f32.mrb[0].mxu0
    %1445 = vdwg.mxu0
    %1446 = vmatprep.subr.bf16.mxu0 0
    %1447 = vmatpush1.bf16.msra.mxu0 %v909
    %1448 = vmatprep.subr.bf16.mxu0 0
    %1449 = vmatpush1.bf16.msra.mxu0 %v916
    %1450 = vmatprep.subr.bf16.mxu0 0
    %1451 = vmatpush1.bf16.msra.mxu0 %v923
    %1452 = vmatprep.subr.bf16.mxu0 0
    %1453 = vmatpush1.bf16.msra.mxu0 %v930
    %1454 = vmatprep.subr.bf16.mxu0 0
    %1455 = vmatpush1.bf16.msra.mxu0 %v937
    %1456 = vmatprep.subr.bf16.mxu0 0
    %1457 = vmatpush1.bf16.msra.mxu0 %v944
    %1458 = vmatprep.subr.bf16.mxu0 0
    %1459 = vmatpush1.bf16.msra.mxu0 %v951
    %1460 = vmatprep.subr.bf16.mxu0 0
    %1461 = vmatpush1.bf16.msra.mxu0 %v958
    %1462 = vmatprep.subr.bf16.mxu0 0
    %1463 = vmatpush1.bf16.msra.mxu0 %v1158
    %1464 = vmatprep.subr.bf16.mxu0 0
    %1465 = vmatpush1.bf16.msra.mxu0 0
    %1466 = vmatprep.subr.bf16.mxu0 0
    %1467 = vmatpush1.bf16.msra.mxu0 0
    %1468 = vmatprep.subr.bf16.mxu0 0
    %1469 = vmatpush1.bf16.msra.mxu0 0
    %1470 = vmatprep.subr.bf16.mxu0 0
    %1471 = vmatpush1.bf16.msra.mxu0 0
    %1472 = vmatprep.subr.bf16.mxu0 0
    %1473 = vmatpush1.bf16.msra.mxu0 0
    %1474 = vmatprep.subr.bf16.mxu0 0
    %1475 = vmatpush1.bf16.msra.mxu0 0
    %1476 = vmatprep.subr.bf16.mxu0 0
    %1477 = vmatpush1.bf16.msra.mxu0 0
    %1478 = vmatprep.mubr.bf16.mxu0 %v1136
    %1479 = vmatmul.mubr.bf16.gmra.mrb[0].mxu0 %v54
    %v1480 = vpop.f32.mrb[0].mxu0
    %v1481 = vadd.f32 %v1441, %v1480
    %v1482 = vpop.f32.mrb[0].mxu0
    %v1483 = vpop.f32.mrb[0].mxu0
    %v1484 = vpop.f32.mrb[0].mxu0
    %1485 = vdwg.mxu0
    %v1486 = vld [vmem:[%s2] sm:$0xff]
    %v1487 = vld [vmem:[%s2 + $0x8] sm:$0x3f]
    %v1488 = vrot.slane %v1236, 4
    %v1489 = vadd.f32 %v1236, %v1488
    %v1490 = vrot.slane %v1489, 2
    %v1491 = vadd.f32 %v1489, %v1490
    %v1492 = vrot.slane %v1491, 1
    %v1493 = vadd.f32 %v1491, %v1492
    %v1494 = vrot.slane %v1238, 4
    %v1495 = vadd.f32 %v1238, %v1494
    %v1496 = vrot.slane %v1495, 2
    %v1497 = vadd.f32 %v1495, %v1496
    %v1498 = vrot.slane %v1497, 1
    %v1499 = vadd.f32 %v1497, %v1498
    %v1500 = vrot.slane %v1318, 4
    %v1501 = vadd.f32 %v1318, %v1500
    %v1502 = vrot.slane %v1501, 2
    %v1503 = vadd.f32 %v1501, %v1502
    %v1504 = vrot.slane %v1503, 1
    %v1505 = vadd.f32 %v1503, %v1504
    %v1506 = vrot.slane %v1320, 4
    %v1507 = vadd.f32 %v1320, %v1506
    %v1508 = vrot.slane %v1507, 2
    %v1509 = vadd.f32 %v1507, %v1508
    %v1510 = vrot.slane %v1509, 1
    %v1511 = vadd.f32 %v1509, %v1510
    %v1512 = vrot.slane %v1400, 4
    %v1513 = vadd.f32 %v1400, %v1512
    %v1514 = vrot.slane %v1513, 2
    %v1515 = vadd.f32 %v1513, %v1514
    %v1516 = vrot.slane %v1515, 1
    %v1517 = vadd.f32 %v1515, %v1516
    %v1518 = vrot.slane %v1402, 4
    %v1519 = vadd.f32 %v1402, %v1518
    %v1520 = vrot.slane %v1519, 2
    %v1521 = vadd.f32 %v1519, %v1520
    %v1522 = vrot.slane %v1521, 1
    %v1523 = vadd.f32 %v1521, %v1522
    %vm1524 = vcmask 97280
    %v1525 = vsel %vm1524, %v1481, 0.0
    %v1526 = vrot.slane %v1525, 4
    %v1527 = vadd.f32 %v1525, %v1526
    %v1528 = vrot.slane %v1527, 2
    %v1529 = vadd.f32 %v1527, %v1528
    %v1530 = vrot.slane %v1529, 1
    %v1531 = vadd.f32 %v1529, %v1530
    %v1532 = vrcp.pop 8.0
    %v1533 = vmul.f32 %v1493, %v1532
    %v1534 = vmul.f32 %v1499, %v1532
    %v1535 = vmul.f32 %v1505, %v1532
    %v1536 = vmul.f32 %v1511, %v1532
    %v1537 = vmul.f32 %v1517, %v1532
    %v1538 = vmul.f32 %v1523, %v1532
    %v1539 = vmul.f32 %v1531, %v1532
    %v1540 = vsub.f32 %v1236, %v1533
    %v1541 = vsub.f32 %v1238, %v1534
    %v1542 = vsub.f32 %v1318, %v1535
    %v1543 = vsub.f32 %v1320, %v1536
    %v1544 = vsub.f32 %v1400, %v1537
    %v1545 = vsub.f32 %v1402, %v1538
    %v1546 = vsub.f32 %v1481, %v1539
    %v1547 = vmul.f32 %v1540, %v1540
    %v1548 = vmul.f32 %v1541, %v1541
    %v1549 = vmul.f32 %v1542, %v1542
    %v1550 = vmul.f32 %v1543, %v1543
    %v1551 = vmul.f32 %v1544, %v1544
    %v1552 = vmul.f32 %v1545, %v1545
    %v1553 = vmul.f32 %v1546, %v1546
    %v1554 = vrot.slane %v1547, 4
    %v1555 = vadd.f32 %v1547, %v1554
    %v1556 = vrot.slane %v1555, 2
    %v1557 = vadd.f32 %v1555, %v1556
    %v1558 = vrot.slane %v1557, 1
    %v1559 = vadd.f32 %v1557, %v1558
    %v1560 = vrot.slane %v1548, 4
    %v1561 = vadd.f32 %v1548, %v1560
    %v1562 = vrot.slane %v1561, 2
    %v1563 = vadd.f32 %v1561, %v1562
    %v1564 = vrot.slane %v1563, 1
    %v1565 = vadd.f32 %v1563, %v1564
    %v1566 = vrot.slane %v1549, 4
    %v1567 = vadd.f32 %v1549, %v1566
    %v1568 = vrot.slane %v1567, 2
    %v1569 = vadd.f32 %v1567, %v1568
    %v1570 = vrot.slane %v1569, 1
    %v1571 = vadd.f32 %v1569, %v1570
    %v1572 = vrot.slane %v1550, 4
    %v1573 = vadd.f32 %v1550, %v1572
    %v1574 = vrot.slane %v1573, 2
    %v1575 = vadd.f32 %v1573, %v1574
    %v1576 = vrot.slane %v1575, 1
    %v1577 = vadd.f32 %v1575, %v1576
    %v1578 = vrot.slane %v1551, 4
    %v1579 = vadd.f32 %v1551, %v1578
    %v1580 = vrot.slane %v1579, 2
    %v1581 = vadd.f32 %v1579, %v1580
    %v1582 = vrot.slane %v1581, 1
    %v1583 = vadd.f32 %v1581, %v1582
    %v1584 = vrot.slane %v1552, 4
    %v1585 = vadd.f32 %v1552, %v1584
    %v1586 = vrot.slane %v1585, 2
    %v1587 = vadd.f32 %v1585, %v1586
    %v1588 = vrot.slane %v1587, 1
    %v1589 = vadd.f32 %v1587, %v1588
    %v1590 = vsel %vm1524, %v1553, 0.0
    %v1591 = vrot.slane %v1590, 4
    %v1592 = vadd.f32 %v1590, %v1591
    %v1593 = vrot.slane %v1592, 2
    %v1594 = vadd.f32 %v1592, %v1593
    %v1595 = vrot.slane %v1594, 1
    %v1596 = vadd.f32 %v1594, %v1595
    %v1597 = vmul.f32 %v1559, %v1532
    %v1598 = vmul.f32 %v1565, %v1532
    %v1599 = vmul.f32 %v1571, %v1532
    %v1600 = vmul.f32 %v1577, %v1532
    %v1601 = vmul.f32 %v1583, %v1532
    %v1602 = vmul.f32 %v1589, %v1532
    %v1603 = vmul.f32 %v1596, %v1532
    %v1604 = vadd.f32 %v1597, 1e-05
    %v1605 = vadd.f32 %v1598, 1e-05
    %v1606 = vadd.f32 %v1599, 1e-05
    %v1607 = vadd.f32 %v1600, 1e-05
    %v1608 = vadd.f32 %v1601, 1e-05
    %v1609 = vadd.f32 %v1602, 1e-05
    %v1610 = vadd.f32 %v1603, 1e-05
    %v1611 = vrsqrt.pop %v1604
    %v1612 = vrsqrt.pop %v1605
    %v1613 = vrsqrt.pop %v1606
    %v1614 = vrsqrt.pop %v1607
    %v1615 = vrsqrt.pop %v1608
    %v1616 = vrsqrt.pop %v1609
    %v1617 = vrsqrt.pop %v1610
    %v1618 = vmul.f32 %v1540, %v1611
    %v1619 = vmul.f32 %v1541, %v1612
    %v1620 = vmul.f32 %v1542, %v1613
    %v1621 = vmul.f32 %v1543, %v1614
    %v1622 = vmul.f32 %v1544, %v1615
    %v1623 = vmul.f32 %v1545, %v1616
    %v1624 = vmul.f32 %v1546, %v1617
    %v1627 = vlaneseq
    %v1628 = vshrl.u32 %v1627, 7
    %v1629 = vsub.s32 0, %v1628
    %v1630 = vrot.slane %v1486, %v1629
    %v1631 = vlaneseq
    %v1632 = vshrl.u32 %v1631, 7
    %v1633 = vsub.s32 2, %v1632
    %v1634 = vrot.slane %v1486, %v1633
    %v1635 = vlaneseq
    %v1636 = vshrl.u32 %v1635, 7
    %v1637 = vsub.s32 4, %v1636
    %v1638 = vrot.slane %v1486, %v1637
    %v1639 = vlaneseq
    %v1640 = vshrl.u32 %v1639, 7
    %v1641 = vsub.s32 6, %v1640
    %v1642 = vrot.slane %v1486, %v1641
    %v1643 = vlaneseq
    %v1644 = vshrl.u32 %v1643, 7
    %v1645 = vsub.s32 0, %v1644
    %v1646 = vrot.slane %v1487, %v1645
    %v1647 = vlaneseq
    %v1648 = vshrl.u32 %v1647, 7
    %v1649 = vsub.s32 2, %v1648
    %v1650 = vrot.slane %v1487, %v1649
    %v1651 = vlaneseq
    %v1652 = vshrl.u32 %v1651, 7
    %v1653 = vsub.s32 4, %v1652
    %v1654 = vrot.slane %v1487, %v1653
    %v1662 = vlaneseq
    %v1663 = vshrl.u32 %v1662, 7
    %v1664 = vsub.s32 0, %v1663
    %v1665 = vrot.slane %v1630, %v1664
    %v1666 = vlaneseq
    %v1667 = vshrl.u32 %v1666, 7
    %v1668 = vsub.s32 0, %v1667
    %v1669 = vrot.slane %v1634, %v1668
    %v1670 = vlaneseq
    %v1671 = vshrl.u32 %v1670, 7
    %v1672 = vsub.s32 0, %v1671
    %v1673 = vrot.slane %v1638, %v1672
    %v1674 = vlaneseq
    %v1675 = vshrl.u32 %v1674, 7
    %v1676 = vsub.s32 0, %v1675
    %v1677 = vrot.slane %v1642, %v1676
    %v1678 = vlaneseq
    %v1679 = vshrl.u32 %v1678, 7
    %v1680 = vsub.s32 0, %v1679
    %v1681 = vrot.slane %v1646, %v1680
    %v1682 = vlaneseq
    %v1683 = vshrl.u32 %v1682, 7
    %v1684 = vsub.s32 0, %v1683
    %v1685 = vrot.slane %v1650, %v1684
    %v1686 = vlaneseq
    %v1687 = vshrl.u32 %v1686, 7
    %v1688 = vsub.s32 0, %v1687
    %v1689 = vrot.slane %v1654, %v1688
    %v1690 = vmul.f32 %v1618, %v1665
    %v1691 = vmul.f32 %v1619, %v1669
    %v1692 = vmul.f32 %v1620, %v1673
    %v1693 = vmul.f32 %v1621, %v1677
    %v1694 = vmul.f32 %v1622, %v1681
    %v1695 = vmul.f32 %v1623, %v1685
    %v1696 = vmul.f32 %v1624, %v1689
    %v1697 = vlaneseq
    %v1698 = vshrl.u32 %v1697, 7
    %v1699 = vsub.s32 1, %v1698
    %v1700 = vrot.slane %v1486, %v1699
    %v1701 = vlaneseq
    %v1702 = vshrl.u32 %v1701, 7
    %v1703 = vsub.s32 3, %v1702
    %v1704 = vrot.slane %v1486, %v1703
    %v1705 = vlaneseq
    %v1706 = vshrl.u32 %v1705, 7
    %v1707 = vsub.s32 5, %v1706
    %v1708 = vrot.slane %v1486, %v1707
    %v1709 = vlaneseq
    %v1710 = vshrl.u32 %v1709, 7
    %v1711 = vsub.s32 7, %v1710
    %v1712 = vrot.slane %v1486, %v1711
    %v1713 = vlaneseq
    %v1714 = vshrl.u32 %v1713, 7
    %v1715 = vsub.s32 1, %v1714
    %v1716 = vrot.slane %v1487, %v1715
    %v1717 = vlaneseq
    %v1718 = vshrl.u32 %v1717, 7
    %v1719 = vsub.s32 3, %v1718
    %v1720 = vrot.slane %v1487, %v1719
    %v1721 = vlaneseq
    %v1722 = vshrl.u32 %v1721, 7
    %v1723 = vsub.s32 5, %v1722
    %v1724 = vrot.slane %v1487, %v1723
    %v1732 = vlaneseq
    %v1733 = vshrl.u32 %v1732, 7
    %v1734 = vsub.s32 1, %v1733
    %v1735 = vrot.slane %v1700, %v1734
    %v1736 = vlaneseq
    %v1737 = vshrl.u32 %v1736, 7
    %v1738 = vsub.s32 1, %v1737
    %v1739 = vrot.slane %v1704, %v1738
    %v1740 = vlaneseq
    %v1741 = vshrl.u32 %v1740, 7
    %v1742 = vsub.s32 1, %v1741
    %v1743 = vrot.slane %v1708, %v1742
    %v1744 = vlaneseq
    %v1745 = vshrl.u32 %v1744, 7
    %v1746 = vsub.s32 1, %v1745
    %v1747 = vrot.slane %v1712, %v1746
    %v1748 = vlaneseq
    %v1749 = vshrl.u32 %v1748, 7
    %v1750 = vsub.s32 1, %v1749
    %v1751 = vrot.slane %v1716, %v1750
    %v1752 = vlaneseq
    %v1753 = vshrl.u32 %v1752, 7
    %v1754 = vsub.s32 1, %v1753
    %v1755 = vrot.slane %v1720, %v1754
    %v1756 = vlaneseq
    %v1757 = vshrl.u32 %v1756, 7
    %v1758 = vsub.s32 1, %v1757
    %v1759 = vrot.slane %v1724, %v1758
    %v1760 = vadd.f32 %v1690, %v1735
    %v1761 = vadd.f32 %v1691, %v1739
    %v1762 = vadd.f32 %v1692, %v1743
    %v1763 = vadd.f32 %v1693, %v1747
    %v1764 = vadd.f32 %v1694, %v1751
    %v1765 = vadd.f32 %v1695, %v1755
    %v1766 = vadd.f32 %v1696, %v1759
    %v1767 = vmax.f32 %v1760, 0.0
    %v1768 = vmax.f32 %v1761, 0.0
    %v1769 = vmax.f32 %v1762, 0.0
    %v1770 = vmax.f32 %v1763, 0.0
    %v1771 = vmax.f32 %v1764, 0.0
    %v1772 = vmax.f32 %v1765, 0.0
    %v1773 = vmax.f32 %v1766, 0.0
    %v1774 = vpack.c.bf16 %v1767, %v1767
    %v1775 = vpack.c.bf16 %v1768, %v1768
    %v1776 = vpack.c.bf16 %v1769, %v1769
    %v1777 = vpack.c.bf16 %v1770, %v1770
    %v1778 = vpack.c.bf16 %v1771, %v1771
    %v1779 = vpack.c.bf16 %v1772, %v1772
    %v1780 = vpack.c.bf16 %v1773, %v1773
    %v1781 = vld [vmem:[%s3] sm:$0xff]
    %v1782 = vld [vmem:[%s3 + $0x8] sm:$0xff]
    %v1783 = vld [vmem:[%s3 + $0x10] sm:$0xff]
    %v1784 = vld [vmem:[%s3 + $0x18] sm:$0xf]
    %v1785 = vld [vmem:[%s3 + $0x1c] sm:$0xff]
    %v1786 = vld [vmem:[%s3 + $0x24] sm:$0xff]
    %v1787 = vld [vmem:[%s3 + $0x2c] sm:$0xff]
    %v1788 = vld [vmem:[%s3 + $0x34] sm:$0xf]
    %v1789 = vld [vmem:[%s3 + $0x38] sm:$0xff]
    %v1790 = vld [vmem:[%s3 + $0x40] sm:$0xff]
    %v1791 = vld [vmem:[%s3 + $0x48] sm:$0xff]
    %v1792 = vld [vmem:[%s3 + $0x50] sm:$0xf]
    %v1793 = vld [vmem:[%s3 + $0x54] sm:$0xff]
    %v1794 = vld [vmem:[%s3 + $0x5c] sm:$0xff]
    %v1795 = vld [vmem:[%s3 + $0x64] sm:$0xff]
    %v1796 = vld [vmem:[%s3 + $0x6c] sm:$0xf]
    %v1797 = vld [vmem:[%s3 + $0x70] sm:$0xff]
    %v1798 = vld [vmem:[%s3 + $0x78] sm:$0xff]
    %v1799 = vld [vmem:[%s3 + $0x80] sm:$0xff]
    %v1800 = vld [vmem:[%s3 + $0x88] sm:$0xf]
    %v1801 = vld [vmem:[%s3 + $0x8c] sm:$0xff]
    %v1802 = vld [vmem:[%s3 + $0x94] sm:$0xff]
    %v1803 = vld [vmem:[%s3 + $0x9c] sm:$0xff]
    %v1804 = vld [vmem:[%s3 + $0xa4] sm:$0xf]
    %v1805 = vld [vmem:[%s3 + $0xa8] sm:$0xff]
    %v1806 = vld [vmem:[%s3 + $0xb0] sm:$0xff]
    %v1807 = vld [vmem:[%s3 + $0xb8] sm:$0xff]
    %v1808 = vld [vmem:[%s3 + $0xc0] sm:$0xf]
    %v1809 = vld [vmem:[%s3 + $0xc4] sm:$0xff]
    %v1810 = vld [vmem:[%s3 + $0xcc] sm:$0xff]
    %v1811 = vld [vmem:[%s3 + $0xd4] sm:$0xff]
    %v1812 = vld [vmem:[%s3 + $0xdc] sm:$0xf]
    %v1813 = vld [vmem:[%s3 + $0xe0] sm:$0xff]
    %v1814 = vld [vmem:[%s3 + $0xe8] sm:$0xff]
    %v1815 = vld [vmem:[%s3 + $0xf0] sm:$0xff]
    %v1816 = vld [vmem:[%s3 + $0xf8] sm:$0xf]
    %v1817 = vld [vmem:[%s3 + $0xfc] sm:$0xff]
    %v1818 = vld [vmem:[%s3 + $0x104] sm:$0xff]
    %v1819 = vld [vmem:[%s3 + $0x10c] sm:$0xff]
    %v1820 = vld [vmem:[%s3 + $0x114] sm:$0xf]
    %v1821 = vld [vmem:[%s3 + $0x118] sm:$0xff]
    %v1822 = vld [vmem:[%s3 + $0x120] sm:$0xff]
    %v1823 = vld [vmem:[%s3 + $0x128] sm:$0xff]
    %v1824 = vld [vmem:[%s3 + $0x130] sm:$0xf]
    %v1825 = vld [vmem:[%s3 + $0x134] sm:$0xff]
    %v1826 = vld [vmem:[%s3 + $0x13c] sm:$0xff]
    %v1827 = vld [vmem:[%s3 + $0x144] sm:$0xff]
    %v1828 = vld [vmem:[%s3 + $0x14c] sm:$0xf]
    %v1829 = vld [vmem:[%s3 + $0x150] sm:$0xff]
    %v1830 = vld [vmem:[%s3 + $0x158] sm:$0xff]
    %v1831 = vld [vmem:[%s3 + $0x160] sm:$0xff]
    %v1832 = vld [vmem:[%s3 + $0x168] sm:$0xf]
    %v1833 = vld [vmem:[%s3 + $0x16c] sm:$0xff]
    %v1834 = vld [vmem:[%s3 + $0x174] sm:$0xff]
    %v1835 = vld [vmem:[%s3 + $0x17c] sm:$0xff]
    %v1836 = vld [vmem:[%s3 + $0x184] sm:$0xf]
    %v1837 = vld [vmem:[%s3 + $0x188] sm:$0xff]
    %v1838 = vld [vmem:[%s3 + $0x190] sm:$0xff]
    %v1839 = vld [vmem:[%s3 + $0x198] sm:$0xff]
    %v1840 = vld [vmem:[%s3 + $0x1a0] sm:$0xf]
    %v1841 = vld [vmem:[%s3 + $0x1a4] sm:$0xff]
    %v1842 = vld [vmem:[%s3 + $0x1ac] sm:$0xff]
    %v1843 = vld [vmem:[%s3 + $0x1b4] sm:$0xff]
    %v1844 = vld [vmem:[%s3 + $0x1bc] sm:$0xf]
    %v1845 = vld [vmem:[%s3 + $0x1c0] sm:$0xff]
    %v1846 = vld [vmem:[%s3 + $0x1c8] sm:$0xff]
    %v1847 = vld [vmem:[%s3 + $0x1d0] sm:$0xff]
    %v1848 = vld [vmem:[%s3 + $0x1d8] sm:$0xf]
    %v1849 = vld [vmem:[%s3 + $0x1dc] sm:$0xff]
    %v1850 = vld [vmem:[%s3 + $0x1e4] sm:$0xff]
    %v1851 = vld [vmem:[%s3 + $0x1ec] sm:$0xff]
    %v1852 = vld [vmem:[%s3 + $0x1f4] sm:$0xf]
    %v1853 = vld [vmem:[%s3 + $0x1f8] sm:$0xff]
    %v1854 = vld [vmem:[%s3 + $0x200] sm:$0xff]
    %v1855 = vld [vmem:[%s3 + $0x208] sm:$0xff]
    %v1856 = vld [vmem:[%s3 + $0x210] sm:$0xf]
    %v1857 = vld [vmem:[%s3 + $0x214] sm:$0xff]
    %v1858 = vld [vmem:[%s3 + $0x21c] sm:$0xff]
    %v1859 = vld [vmem:[%s3 + $0x224] sm:$0xff]
    %v1860 = vld [vmem:[%s3 + $0x22c] sm:$0xf]
    %v1861 = vld [vmem:[%s3 + $0x230] sm:$0xff]
    %v1862 = vld [vmem:[%s3 + $0x238] sm:$0xff]
    %v1863 = vld [vmem:[%s3 + $0x240] sm:$0xff]
    %v1864 = vld [vmem:[%s3 + $0x248] sm:$0xf]
    %v1865 = vld [vmem:[%s3 + $0x24c] sm:$0xff]
    %v1866 = vld [vmem:[%s3 + $0x254] sm:$0xff]
    %v1867 = vld [vmem:[%s3 + $0x25c] sm:$0xff]
    %v1868 = vld [vmem:[%s3 + $0x264] sm:$0xf]
    %v1869 = vld [vmem:[%s3 + $0x268] sm:$0xff]
    %v1870 = vld [vmem:[%s3 + $0x270] sm:$0xff]
    %v1871 = vld [vmem:[%s3 + $0x278] sm:$0xff]
    %v1872 = vld [vmem:[%s3 + $0x280] sm:$0xf]
    %v1873 = vld [vmem:[%s3 + $0x284] sm:$0xff]
    %v1874 = vld [vmem:[%s3 + $0x28c] sm:$0xff]
    %v1875 = vld [vmem:[%s3 + $0x294] sm:$0xff]
    %v1876 = vld [vmem:[%s3 + $0x29c] sm:$0xf]
    %v1877 = vld [vmem:[%s3 + $0x2a0] sm:$0xff]
    %v1878 = vld [vmem:[%s3 + $0x2a8] sm:$0xff]
    %v1879 = vld [vmem:[%s3 + $0x2b0] sm:$0xff]
    %v1880 = vld [vmem:[%s3 + $0x2b8] sm:$0xf]
    %v1881 = vld [vmem:[%s3 + $0x2bc] sm:$0xff]
    %v1882 = vld [vmem:[%s3 + $0x2c4] sm:$0xff]
    %v1883 = vld [vmem:[%s3 + $0x2cc] sm:$0xff]
    %v1884 = vld [vmem:[%s3 + $0x2d4] sm:$0xf]
    %v1885 = vld [vmem:[%s3 + $0x2d8] sm:$0xff]
    %v1886 = vld [vmem:[%s3 + $0x2e0] sm:$0xff]
    %v1887 = vld [vmem:[%s3 + $0x2e8] sm:$0xff]
    %v1888 = vld [vmem:[%s3 + $0x2f0] sm:$0xf]
    %v1889 = vld [vmem:[%s3 + $0x2f4] sm:$0xff]
    %v1890 = vld [vmem:[%s3 + $0x2fc] sm:$0xff]
    %v1891 = vld [vmem:[%s3 + $0x304] sm:$0xff]
    %v1892 = vld [vmem:[%s3 + $0x30c] sm:$0xf]
    %v1893 = vld [vmem:[%s3 + $0x310] sm:$0xff]
    %v1894 = vld [vmem:[%s3 + $0x318] sm:$0xff]
    %v1895 = vld [vmem:[%s3 + $0x320] sm:$0xff]
    %v1896 = vld [vmem:[%s3 + $0x328] sm:$0xf]
    %v1897 = vld [vmem:[%s3 + $0x32c] sm:$0xff]
    %v1898 = vld [vmem:[%s3 + $0x334] sm:$0xff]
    %v1899 = vld [vmem:[%s3 + $0x33c] sm:$0xff]
    %v1900 = vld [vmem:[%s3 + $0x344] sm:$0xf]
    %v1901 = vld [vmem:[%s3 + $0x348] sm:$0xff]
    %v1902 = vld [vmem:[%s3 + $0x350] sm:$0xff]
    %v1903 = vld [vmem:[%s3 + $0x358] sm:$0xff]
    %v1904 = vld [vmem:[%s3 + $0x360] sm:$0xf]
    %v1905 = vld [vmem:[%s3 + $0x364] sm:$0xff]
    %v1906 = vld [vmem:[%s3 + $0x36c] sm:$0xff]
    %v1907 = vld [vmem:[%s3 + $0x374] sm:$0xff]
    %v1908 = vld [vmem:[%s3 + $0x37c] sm:$0xf]
    %v1909 = vld [vmem:[%s3 + $0x380] sm:$0xff]
    %v1910 = vld [vmem:[%s3 + $0x388] sm:$0xff]
    %v1911 = vld [vmem:[%s3 + $0x390] sm:$0xff]
    %v1912 = vld [vmem:[%s3 + $0x398] sm:$0xf]
    %v1913 = vld [vmem:[%s3 + $0x39c] sm:$0xff]
    %v1914 = vld [vmem:[%s3 + $0x3a4] sm:$0xff]
    %v1915 = vld [vmem:[%s3 + $0x3ac] sm:$0xff]
    %v1916 = vld [vmem:[%s3 + $0x3b4] sm:$0xf]
    %v1917 = vld [vmem:[%s3 + $0x3b8] sm:$0xff]
    %v1918 = vld [vmem:[%s3 + $0x3c0] sm:$0xff]
    %v1919 = vld [vmem:[%s3 + $0x3c8] sm:$0xff]
    %v1920 = vld [vmem:[%s3 + $0x3d0] sm:$0xf]
    %v1921 = vld [vmem:[%s3 + $0x3d4] sm:$0xff]
    %v1922 = vld [vmem:[%s3 + $0x3dc] sm:$0xff]
    %v1923 = vld [vmem:[%s3 + $0x3e4] sm:$0xff]
    %v1924 = vld [vmem:[%s3 + $0x3ec] sm:$0xf]
    %v1925 = vld [vmem:[%s3 + $0x3f0] sm:$0xff]
    %v1926 = vld [vmem:[%s3 + $0x3f8] sm:$0xff]
    %v1927 = vld [vmem:[%s3 + $0x400] sm:$0xff]
    %v1928 = vld [vmem:[%s3 + $0x408] sm:$0xf]
    %v1929 = vld [vmem:[%s3 + $0x40c] sm:$0xff]
    %v1930 = vld [vmem:[%s3 + $0x414] sm:$0xff]
    %v1931 = vld [vmem:[%s3 + $0x41c] sm:$0xff]
    %v1932 = vld [vmem:[%s3 + $0x424] sm:$0xf]
    %v1933 = vld [vmem:[%s3 + $0x428] sm:$0xff]
    %v1934 = vld [vmem:[%s3 + $0x430] sm:$0xff]
    %v1935 = vld [vmem:[%s3 + $0x438] sm:$0xff]
    %v1936 = vld [vmem:[%s3 + $0x440] sm:$0xf]
    %v1937 = vld [vmem:[%s3 + $0x444] sm:$0xff]
    %v1938 = vld [vmem:[%s3 + $0x44c] sm:$0xff]
    %v1939 = vld [vmem:[%s3 + $0x454] sm:$0xff]
    %v1940 = vld [vmem:[%s3 + $0x45c] sm:$0xf]
    %v1941 = vld [vmem:[%s3 + $0x460] sm:$0xff]
    %v1942 = vld [vmem:[%s3 + $0x468] sm:$0xff]
    %v1943 = vld [vmem:[%s3 + $0x470] sm:$0xff]
    %v1944 = vld [vmem:[%s3 + $0x478] sm:$0xf]
    %v1945 = vld [vmem:[%s3 + $0x47c] sm:$0xff]
    %v1946 = vld [vmem:[%s3 + $0x484] sm:$0xff]
    %v1947 = vld [vmem:[%s3 + $0x48c] sm:$0xff]
    %v1948 = vld [vmem:[%s3 + $0x494] sm:$0xf]
    %v1949 = vld [vmem:[%s3 + $0x498] sm:$0xff]
    %v1950 = vld [vmem:[%s3 + $0x4a0] sm:$0xff]
    %v1951 = vld [vmem:[%s3 + $0x4a8] sm:$0xff]
    %v1952 = vld [vmem:[%s3 + $0x4b0] sm:$0xf]
    %v1953 = vld [vmem:[%s3 + $0x4b4] sm:$0xff]
    %v1954 = vld [vmem:[%s3 + $0x4bc] sm:$0xff]
    %v1955 = vld [vmem:[%s3 + $0x4c4] sm:$0xff]
    %v1956 = vld [vmem:[%s3 + $0x4cc] sm:$0xf]
    %v1957 = vld [vmem:[%s3 + $0x4d0] sm:$0xff]
    %v1958 = vld [vmem:[%s3 + $0x4d8] sm:$0xff]
    %v1959 = vld [vmem:[%s3 + $0x4e0] sm:$0xff]
    %v1960 = vld [vmem:[%s3 + $0x4e8] sm:$0xf]
    %v1961 = vld [vmem:[%s3 + $0x4ec] sm:$0xff]
    %v1962 = vld [vmem:[%s3 + $0x4f4] sm:$0xff]
    %v1963 = vld [vmem:[%s3 + $0x4fc] sm:$0xff]
    %v1964 = vld [vmem:[%s3 + $0x504] sm:$0xf]
    %v1965 = vld [vmem:[%s3 + $0x508] sm:$0xff]
    %v1966 = vld [vmem:[%s3 + $0x510] sm:$0xff]
    %v1967 = vld [vmem:[%s3 + $0x518] sm:$0xff]
    %v1968 = vld [vmem:[%s3 + $0x520] sm:$0xf]
    %v1969 = vld [vmem:[%s3 + $0x524] sm:$0xff]
    %v1970 = vld [vmem:[%s3 + $0x52c] sm:$0xff]
    %v1971 = vld [vmem:[%s3 + $0x534] sm:$0xff]
    %v1972 = vld [vmem:[%s3 + $0x53c] sm:$0xf]
    %v1973 = vld [vmem:[%s3 + $0x540] sm:$0xff]
    %v1974 = vld [vmem:[%s3 + $0x548] sm:$0xff]
    %v1975 = vld [vmem:[%s3 + $0x550] sm:$0xff]
    %v1976 = vld [vmem:[%s3 + $0x558] sm:$0xf]
    %v1977 = vld [vmem:[%s3 + $0x55c] sm:$0xff]
    %v1978 = vld [vmem:[%s3 + $0x564] sm:$0xff]
    %v1979 = vld [vmem:[%s3 + $0x56c] sm:$0xff]
    %v1980 = vld [vmem:[%s3 + $0x574] sm:$0xf]
    %v1981 = vld [vmem:[%s3 + $0x578] sm:$0xff]
    %v1982 = vld [vmem:[%s3 + $0x580] sm:$0xff]
    %v1983 = vld [vmem:[%s3 + $0x588] sm:$0xff]
    %v1984 = vld [vmem:[%s3 + $0x590] sm:$0xf]
    %v1985 = vld [vmem:[%s3 + $0x594] sm:$0xff]
    %v1986 = vld [vmem:[%s3 + $0x59c] sm:$0xff]
    %v1987 = vld [vmem:[%s3 + $0x5a4] sm:$0xff]
    %v1988 = vld [vmem:[%s3 + $0x5ac] sm:$0xf]
    %v1989 = vld [vmem:[%s3 + $0x5b0] sm:$0xff]
    %v1990 = vld [vmem:[%s3 + $0x5b8] sm:$0xff]
    %v1991 = vld [vmem:[%s3 + $0x5c0] sm:$0xff]
    %v1992 = vld [vmem:[%s3 + $0x5c8] sm:$0xf]
    %v1993 = vld [vmem:[%s3 + $0x5cc] sm:$0xff]
    %v1994 = vld [vmem:[%s3 + $0x5d4] sm:$0xff]
    %v1995 = vld [vmem:[%s3 + $0x5dc] sm:$0xff]
    %v1996 = vld [vmem:[%s3 + $0x5e4] sm:$0xf]
    %v1997 = vld [vmem:[%s3 + $0x5e8] sm:$0xff]
    %v1998 = vld [vmem:[%s3 + $0x5f0] sm:$0xff]
    %v1999 = vld [vmem:[%s3 + $0x5f8] sm:$0xff]
    %v2000 = vld [vmem:[%s3 + $0x600] sm:$0xf]
    %v2001 = vld [vmem:[%s3 + $0x604] sm:$0xff]
    %v2002 = vld [vmem:[%s3 + $0x60c] sm:$0xff]
    %v2003 = vld [vmem:[%s3 + $0x614] sm:$0xff]
    %v2004 = vld [vmem:[%s3 + $0x61c] sm:$0xf]
    %v2005 = vld [vmem:[%s3 + $0x620] sm:$0xff]
    %v2006 = vld [vmem:[%s3 + $0x628] sm:$0xff]
    %v2007 = vld [vmem:[%s3 + $0x630] sm:$0xff]
    %v2008 = vld [vmem:[%s3 + $0x638] sm:$0xf]
    %v2009 = vld [vmem:[%s3 + $0x63c] sm:$0xff]
    %v2010 = vld [vmem:[%s3 + $0x644] sm:$0xff]
    %v2011 = vld [vmem:[%s3 + $0x64c] sm:$0xff]
    %v2012 = vld [vmem:[%s3 + $0x654] sm:$0xf]
    %v2013 = vld [vmem:[%s3 + $0x658] sm:$0xff]
    %v2014 = vld [vmem:[%s3 + $0x660] sm:$0xff]
    %v2015 = vld [vmem:[%s3 + $0x668] sm:$0xff]
    %v2016 = vld [vmem:[%s3 + $0x670] sm:$0xf]
    %v2017 = vld [vmem:[%s3 + $0x674] sm:$0xff]
    %v2018 = vld [vmem:[%s3 + $0x67c] sm:$0xff]
    %v2019 = vld [vmem:[%s3 + $0x684] sm:$0xff]
    %v2020 = vld [vmem:[%s3 + $0x68c] sm:$0xf]
    %v2021 = vld [vmem:[%s3 + $0x690] sm:$0xff]
    %v2022 = vld [vmem:[%s3 + $0x698] sm:$0xff]
    %v2023 = vld [vmem:[%s3 + $0x6a0] sm:$0xff]
    %v2024 = vld [vmem:[%s3 + $0x6a8] sm:$0xf]
    %v2025 = vld [vmem:[%s3 + $0x6ac] sm:$0xff]
    %v2026 = vld [vmem:[%s3 + $0x6b4] sm:$0xff]
    %v2027 = vld [vmem:[%s3 + $0x6bc] sm:$0xff]
    %v2028 = vld [vmem:[%s3 + $0x6c4] sm:$0xf]
    %v2029 = vld [vmem:[%s3 + $0x6c8] sm:$0xff]
    %v2030 = vld [vmem:[%s3 + $0x6d0] sm:$0xff]
    %v2031 = vld [vmem:[%s3 + $0x6d8] sm:$0xff]
    %v2032 = vld [vmem:[%s3 + $0x6e0] sm:$0xf]
    %v2033 = vld [vmem:[%s3 + $0x6e4] sm:$0xff]
    %v2034 = vld [vmem:[%s3 + $0x6ec] sm:$0xff]
    %v2035 = vld [vmem:[%s3 + $0x6f4] sm:$0xff]
    %v2036 = vld [vmem:[%s3 + $0x6fc] sm:$0xf]
    %v2037 = vld [vmem:[%s3 + $0x700] sm:$0xff]
    %v2038 = vld [vmem:[%s3 + $0x708] sm:$0xff]
    %v2039 = vld [vmem:[%s3 + $0x710] sm:$0xff]
    %v2040 = vld [vmem:[%s3 + $0x718] sm:$0xf]
    %v2041 = vld [vmem:[%s3 + $0x71c] sm:$0xff]
    %v2042 = vld [vmem:[%s3 + $0x724] sm:$0xff]
    %v2043 = vld [vmem:[%s3 + $0x72c] sm:$0xff]
    %v2044 = vld [vmem:[%s3 + $0x734] sm:$0xf]
    %v2045 = vld [vmem:[%s3 + $0x738] sm:$0xff]
    %v2046 = vld [vmem:[%s3 + $0x740] sm:$0xff]
    %v2047 = vld [vmem:[%s3 + $0x748] sm:$0xff]
    %v2048 = vld [vmem:[%s3 + $0x750] sm:$0xf]
    %v2049 = vld [vmem:[%s3 + $0x754] sm:$0xff]
    %v2050 = vld [vmem:[%s3 + $0x75c] sm:$0xff]
    %v2051 = vld [vmem:[%s3 + $0x764] sm:$0xff]
    %v2052 = vld [vmem:[%s3 + $0x76c] sm:$0xf]
    %v2053 = vld [vmem:[%s3 + $0x770] sm:$0xff]
    %v2054 = vld [vmem:[%s3 + $0x778] sm:$0xff]
    %v2055 = vld [vmem:[%s3 + $0x780] sm:$0xff]
    %v2056 = vld [vmem:[%s3 + $0x788] sm:$0xf]
    %v2057 = vld [vmem:[%s3 + $0x78c] sm:$0xff]
    %v2058 = vld [vmem:[%s3 + $0x794] sm:$0xff]
    %v2059 = vld [vmem:[%s3 + $0x79c] sm:$0xff]
    %v2060 = vld [vmem:[%s3 + $0x7a4] sm:$0xf]
    %v2061 = vld [vmem:[%s3 + $0x7a8] sm:$0xff]
    %v2062 = vld [vmem:[%s3 + $0x7b0] sm:$0xff]
    %v2063 = vld [vmem:[%s3 + $0x7b8] sm:$0xff]
    %v2064 = vld [vmem:[%s3 + $0x7c0] sm:$0xf]
    %v2065 = vld [vmem:[%s3 + $0x7c4] sm:$0xff]
    %v2066 = vld [vmem:[%s3 + $0x7cc] sm:$0xff]
    %v2067 = vld [vmem:[%s3 + $0x7d4] sm:$0xff]
    %v2068 = vld [vmem:[%s3 + $0x7dc] sm:$0xf]
    %v2069 = vld [vmem:[%s3 + $0x7e0] sm:$0xff]
    %v2070 = vld [vmem:[%s3 + $0x7e8] sm:$0xff]
    %v2071 = vld [vmem:[%s3 + $0x7f0] sm:$0xff]
    %v2072 = vld [vmem:[%s3 + $0x7f8] sm:$0xf]
    %v2073 = vld [vmem:[%s3 + $0x7fc] sm:$0xff]
    %v2074 = vld [vmem:[%s3 + $0x804] sm:$0xff]
    %v2075 = vld [vmem:[%s3 + $0x80c] sm:$0xff]
    %v2076 = vld [vmem:[%s3 + $0x814] sm:$0xf]
    %v2077 = vld [vmem:[%s3 + $0x818] sm:$0xff]
    %v2078 = vld [vmem:[%s3 + $0x820] sm:$0xff]
    %v2079 = vld [vmem:[%s3 + $0x828] sm:$0xff]
    %v2080 = vld [vmem:[%s3 + $0x830] sm:$0xf]
    %v2081 = vld [vmem:[%s3 + $0x834] sm:$0xff]
    %v2082 = vld [vmem:[%s3 + $0x83c] sm:$0xff]
    %v2083 = vld [vmem:[%s3 + $0x844] sm:$0xff]
    %v2084 = vld [vmem:[%s3 + $0x84c] sm:$0xf]
    %v2085 = vld [vmem:[%s3 + $0x850] sm:$0xff]
    %v2086 = vld [vmem:[%s3 + $0x858] sm:$0xff]
    %v2087 = vld [vmem:[%s3 + $0x860] sm:$0xff]
    %v2088 = vld [vmem:[%s3 + $0x868] sm:$0xf]
    %v2089 = vld [vmem:[%s3 + $0x86c] sm:$0xff]
    %v2090 = vld [vmem:[%s3 + $0x874] sm:$0xff]
    %v2091 = vld [vmem:[%s3 + $0x87c] sm:$0xff]
    %v2092 = vld [vmem:[%s3 + $0x884] sm:$0xf]
    %v2093 = vld [vmem:[%s3 + $0x888] sm:$0xff]
    %v2094 = vld [vmem:[%s3 + $0x890] sm:$0xff]
    %v2095 = vld [vmem:[%s3 + $0x898] sm:$0xff]
    %v2096 = vld [vmem:[%s3 + $0x8a0] sm:$0xf]
    %v2097 = vld [vmem:[%s3 + $0x8a4] sm:$0xff]
    %v2098 = vld [vmem:[%s3 + $0x8ac] sm:$0xff]
    %v2099 = vld [vmem:[%s3 + $0x8b4] sm:$0xff]
    %v2100 = vld [vmem:[%s3 + $0x8bc] sm:$0xf]
    %v2101 = vld [vmem:[%s3 + $0x8c0] sm:$0xff]
    %v2102 = vld [vmem:[%s3 + $0x8c8] sm:$0xff]
    %v2103 = vld [vmem:[%s3 + $0x8d0] sm:$0xff]
    %v2104 = vld [vmem:[%s3 + $0x8d8] sm:$0xf]
    %v2105 = vld [vmem:[%s3 + $0x8dc] sm:$0xff]
    %v2106 = vld [vmem:[%s3 + $0x8e4] sm:$0xff]
    %v2107 = vld [vmem:[%s3 + $0x8ec] sm:$0xff]
    %v2108 = vld [vmem:[%s3 + $0x8f4] sm:$0xf]
    %v2109 = vld [vmem:[%s3 + $0x8f8] sm:$0xff]
    %v2110 = vld [vmem:[%s3 + $0x900] sm:$0xff]
    %v2111 = vld [vmem:[%s3 + $0x908] sm:$0xff]
    %v2112 = vld [vmem:[%s3 + $0x910] sm:$0xf]
    %v2113 = vld [vmem:[%s3 + $0x914] sm:$0xff]
    %v2114 = vld [vmem:[%s3 + $0x91c] sm:$0xff]
    %v2115 = vld [vmem:[%s3 + $0x924] sm:$0xff]
    %v2116 = vld [vmem:[%s3 + $0x92c] sm:$0xf]
    %v2117 = vld [vmem:[%s3 + $0x930] sm:$0xff]
    %v2118 = vld [vmem:[%s3 + $0x938] sm:$0xff]
    %v2119 = vld [vmem:[%s3 + $0x940] sm:$0xff]
    %v2120 = vld [vmem:[%s3 + $0x948] sm:$0xf]
    %v2121 = vld [vmem:[%s3 + $0x94c] sm:$0xff]
    %v2122 = vld [vmem:[%s3 + $0x954] sm:$0xff]
    %v2123 = vld [vmem:[%s3 + $0x95c] sm:$0xff]
    %v2124 = vld [vmem:[%s3 + $0x964] sm:$0xf]
    %v2125 = vld [vmem:[%s3 + $0x968] sm:$0xff]
    %v2126 = vld [vmem:[%s3 + $0x970] sm:$0xff]
    %v2127 = vld [vmem:[%s3 + $0x978] sm:$0xff]
    %v2128 = vld [vmem:[%s3 + $0x980] sm:$0xf]
    %v2129 = vld [vmem:[%s3 + $0x984] sm:$0xff]
    %v2130 = vld [vmem:[%s3 + $0x98c] sm:$0xff]
    %v2131 = vld [vmem:[%s3 + $0x994] sm:$0xff]
    %v2132 = vld [vmem:[%s3 + $0x99c] sm:$0xf]
    %v2133 = vld [vmem:[%s3 + $0x9a0] sm:$0xff]
    %v2134 = vld [vmem:[%s3 + $0x9a8] sm:$0xff]
    %v2135 = vld [vmem:[%s3 + $0x9b0] sm:$0xff]
    %v2136 = vld [vmem:[%s3 + $0x9b8] sm:$0xf]
    %v2137 = vld [vmem:[%s3 + $0x9bc] sm:$0xff]
    %v2138 = vld [vmem:[%s3 + $0x9c4] sm:$0xff]
    %v2139 = vld [vmem:[%s3 + $0x9cc] sm:$0xff]
    %v2140 = vld [vmem:[%s3 + $0x9d4] sm:$0xf]
    %v2141 = vld [vmem:[%s3 + $0x9d8] sm:$0xff]
    %v2142 = vld [vmem:[%s3 + $0x9e0] sm:$0xff]
    %v2143 = vld [vmem:[%s3 + $0x9e8] sm:$0xff]
    %v2144 = vld [vmem:[%s3 + $0x9f0] sm:$0xf]
    %v2145 = vld [vmem:[%s3 + $0x9f4] sm:$0xff]
    %v2146 = vld [vmem:[%s3 + $0x9fc] sm:$0xff]
    %v2147 = vld [vmem:[%s3 + $0xa04] sm:$0xff]
    %v2148 = vld [vmem:[%s3 + $0xa0c] sm:$0xf]
    %v2149 = vld [vmem:[%s3 + $0xa10] sm:$0xff]
    %v2150 = vld [vmem:[%s3 + $0xa18] sm:$0xff]
    %v2151 = vld [vmem:[%s3 + $0xa20] sm:$0xff]
    %v2152 = vld [vmem:[%s3 + $0xa28] sm:$0xf]
    %v2153 = vld [vmem:[%s3 + $0xa2c] sm:$0xff]
    %v2154 = vld [vmem:[%s3 + $0xa34] sm:$0xff]
    %v2155 = vld [vmem:[%s3 + $0xa3c] sm:$0xff]
    %v2156 = vld [vmem:[%s3 + $0xa44] sm:$0xf]
    %v2157 = vld [vmem:[%s3 + $0xa48] sm:$0xff]
    %v2158 = vld [vmem:[%s3 + $0xa50] sm:$0xff]
    %v2159 = vld [vmem:[%s3 + $0xa58] sm:$0xff]
    %v2160 = vld [vmem:[%s3 + $0xa60] sm:$0xf]
    %v2161 = vld [vmem:[%s3 + $0xa64] sm:$0xff]
    %v2162 = vld [vmem:[%s3 + $0xa6c] sm:$0xff]
    %v2163 = vld [vmem:[%s3 + $0xa74] sm:$0xff]
    %v2164 = vld [vmem:[%s3 + $0xa7c] sm:$0xf]
    %v2165 = vld [vmem:[%s3 + $0xa80] sm:$0xff]
    %v2166 = vld [vmem:[%s3 + $0xa88] sm:$0xff]
    %v2167 = vld [vmem:[%s3 + $0xa90] sm:$0xff]
    %v2168 = vld [vmem:[%s3 + $0xa98] sm:$0xf]
    %v2169 = vld [vmem:[%s3 + $0xa9c] sm:$0x33]
    %v2170 = vld [vmem:[%s3 + $0xaa4] sm:$0x33]
    %v2171 = vld [vmem:[%s3 + $0xaac] sm:$0x33]
    %v2172 = vld [vmem:[%s3 + $0xab4] sm:$0x3]
    %v2565 = vunpack.c.l.b16 %v1781
    %v2566 = vunpack.c.h.b16 %v1781
    %v2567 = vunpack.c.l.b16 %v1782
    %v2568 = vunpack.c.h.b16 %v1782
    %v2569 = vunpack.c.l.b16 %v1783
    %v2570 = vunpack.c.h.b16 %v1783
    %v2571 = vunpack.c.l.b16 %v1784
    %v2572 = vunpack.c.l.b16 %v1785
    %v2573 = vunpack.c.h.b16 %v1785
    %v2574 = vunpack.c.l.b16 %v1786
    %v2575 = vunpack.c.h.b16 %v1786
    %v2576 = vunpack.c.l.b16 %v1787
    %v2577 = vunpack.c.h.b16 %v1787
    %v2578 = vunpack.c.l.b16 %v1788
    %v2579 = vunpack.c.l.b16 %v1789
    %v2580 = vunpack.c.h.b16 %v1789
    %v2581 = vunpack.c.l.b16 %v1790
    %v2582 = vunpack.c.h.b16 %v1790
    %v2583 = vunpack.c.l.b16 %v1791
    %v2584 = vunpack.c.h.b16 %v1791
    %v2585 = vunpack.c.l.b16 %v1792
    %v2586 = vunpack.c.l.b16 %v1793
    %v2587 = vunpack.c.h.b16 %v1793
    %v2588 = vunpack.c.l.b16 %v1794
    %v2589 = vunpack.c.h.b16 %v1794
    %v2590 = vunpack.c.l.b16 %v1795
    %v2591 = vunpack.c.h.b16 %v1795
    %v2592 = vunpack.c.l.b16 %v1796
    %v2593 = vunpack.c.l.b16 %v1797
    %v2594 = vunpack.c.h.b16 %v1797
    %v2595 = vunpack.c.l.b16 %v1798
    %v2596 = vunpack.c.h.b16 %v1798
    %v2597 = vunpack.c.l.b16 %v1799
    %v2598 = vunpack.c.h.b16 %v1799
    %v2599 = vunpack.c.l.b16 %v1800
    %v2600 = vunpack.c.l.b16 %v1801
    %v2601 = vunpack.c.h.b16 %v1801
    %v2602 = vunpack.c.l.b16 %v1802
    %v2603 = vunpack.c.h.b16 %v1802
    %v2604 = vunpack.c.l.b16 %v1803
    %v2605 = vunpack.c.h.b16 %v1803
    %v2606 = vunpack.c.l.b16 %v1804
    %v2607 = vunpack.c.l.b16 %v1805
    %v2608 = vunpack.c.h.b16 %v1805
    %v2609 = vunpack.c.l.b16 %v1806
    %v2610 = vunpack.c.h.b16 %v1806
    %v2611 = vunpack.c.l.b16 %v1807
    %v2612 = vunpack.c.h.b16 %v1807
    %v2613 = vunpack.c.l.b16 %v1808
    %v2614 = vunpack.c.l.b16 %v1809
    %v2615 = vunpack.c.h.b16 %v1809
    %v2616 = vunpack.c.l.b16 %v1810
    %v2617 = vunpack.c.h.b16 %v1810
    %v2618 = vunpack.c.l.b16 %v1811
    %v2619 = vunpack.c.h.b16 %v1811
    %v2620 = vunpack.c.l.b16 %v1812
    %v2621 = vunpack.c.l.b16 %v1813
    %v2622 = vunpack.c.h.b16 %v1813
    %v2623 = vunpack.c.l.b16 %v1814
    %v2624 = vunpack.c.h.b16 %v1814
    %v2625 = vunpack.c.l.b16 %v1815
    %v2626 = vunpack.c.h.b16 %v1815
    %v2627 = vunpack.c.l.b16 %v1816
    %v2628 = vunpack.c.l.b16 %v1817
    %v2629 = vunpack.c.h.b16 %v1817
    %v2630 = vunpack.c.l.b16 %v1818
    %v2631 = vunpack.c.h.b16 %v1818
    %v2632 = vunpack.c.l.b16 %v1819
    %v2633 = vunpack.c.h.b16 %v1819
    %v2634 = vunpack.c.l.b16 %v1820
    %v2635 = vunpack.c.l.b16 %v1821
    %v2636 = vunpack.c.h.b16 %v1821
    %v2637 = vunpack.c.l.b16 %v1822
    %v2638 = vunpack.c.h.b16 %v1822
    %v2639 = vunpack.c.l.b16 %v1823
    %v2640 = vunpack.c.h.b16 %v1823
    %v2641 = vunpack.c.l.b16 %v1824
    %v2642 = vunpack.c.l.b16 %v1825
    %v2643 = vunpack.c.h.b16 %v1825
    %v2644 = vunpack.c.l.b16 %v1826
    %v2645 = vunpack.c.h.b16 %v1826
    %v2646 = vunpack.c.l.b16 %v1827
    %v2647 = vunpack.c.h.b16 %v1827
    %v2648 = vunpack.c.l.b16 %v1828
    %v2649 = vunpack.c.l.b16 %v1829
    %v2650 = vunpack.c.h.b16 %v1829
    %v2651 = vunpack.c.l.b16 %v1830
    %v2652 = vunpack.c.h.b16 %v1830
    %v2653 = vunpack.c.l.b16 %v1831
    %v2654 = vunpack.c.h.b16 %v1831
    %v2655 = vunpack.c.l.b16 %v1832
    %v2656 = vunpack.c.l.b16 %v1833
    %v2657 = vunpack.c.h.b16 %v1833
    %v2658 = vunpack.c.l.b16 %v1834
    %v2659 = vunpack.c.h.b16 %v1834
    %v2660 = vunpack.c.l.b16 %v1835
    %v2661 = vunpack.c.h.b16 %v1835
    %v2662 = vunpack.c.l.b16 %v1836
    %v2663 = vunpack.c.l.b16 %v1837
    %v2664 = vunpack.c.h.b16 %v1837
    %v2665 = vunpack.c.l.b16 %v1838
    %v2666 = vunpack.c.h.b16 %v1838
    %v2667 = vunpack.c.l.b16 %v1839
    %v2668 = vunpack.c.h.b16 %v1839
    %v2669 = vunpack.c.l.b16 %v1840
    %v2670 = vunpack.c.l.b16 %v1841
    %v2671 = vunpack.c.h.b16 %v1841
    %v2672 = vunpack.c.l.b16 %v1842
    %v2673 = vunpack.c.h.b16 %v1842
    %v2674 = vunpack.c.l.b16 %v1843
    %v2675 = vunpack.c.h.b16 %v1843
    %v2676 = vunpack.c.l.b16 %v1844
    %v2677 = vunpack.c.l.b16 %v1845
    %v2678 = vunpack.c.h.b16 %v1845
    %v2679 = vunpack.c.l.b16 %v1846
    %v2680 = vunpack.c.h.b16 %v1846
    %v2681 = vunpack.c.l.b16 %v1847
    %v2682 = vunpack.c.h.b16 %v1847
    %v2683 = vunpack.c.l.b16 %v1848
    %v2684 = vunpack.c.l.b16 %v1849
    %v2685 = vunpack.c.h.b16 %v1849
    %v2686 = vunpack.c.l.b16 %v1850
    %v2687 = vunpack.c.h.b16 %v1850
    %v2688 = vunpack.c.l.b16 %v1851
    %v2689 = vunpack.c.h.b16 %v1851
    %v2690 = vunpack.c.l.b16 %v1852
    %v2691 = vunpack.c.l.b16 %v1853
    %v2692 = vunpack.c.h.b16 %v1853
    %v2693 = vunpack.c.l.b16 %v1854
    %v2694 = vunpack.c.h.b16 %v1854
    %v2695 = vunpack.c.l.b16 %v1855
    %v2696 = vunpack.c.h.b16 %v1855
    %v2697 = vunpack.c.l.b16 %v1856
    %v2698 = vunpack.c.l.b16 %v1857
    %v2699 = vunpack.c.h.b16 %v1857
    %v2700 = vunpack.c.l.b16 %v1858
    %v2701 = vunpack.c.h.b16 %v1858
    %v2702 = vunpack.c.l.b16 %v1859
    %v2703 = vunpack.c.h.b16 %v1859
    %v2704 = vunpack.c.l.b16 %v1860
    %v2705 = vunpack.c.l.b16 %v1861
    %v2706 = vunpack.c.h.b16 %v1861
    %v2707 = vunpack.c.l.b16 %v1862
    %v2708 = vunpack.c.h.b16 %v1862
    %v2709 = vunpack.c.l.b16 %v1863
    %v2710 = vunpack.c.h.b16 %v1863
    %v2711 = vunpack.c.l.b16 %v1864
    %v2712 = vunpack.c.l.b16 %v1865
    %v2713 = vunpack.c.h.b16 %v1865
    %v2714 = vunpack.c.l.b16 %v1866
    %v2715 = vunpack.c.h.b16 %v1866
    %v2716 = vunpack.c.l.b16 %v1867
    %v2717 = vunpack.c.h.b16 %v1867
    %v2718 = vunpack.c.l.b16 %v1868
    %v2719 = vunpack.c.l.b16 %v1869
    %v2720 = vunpack.c.h.b16 %v1869
    %v2721 = vunpack.c.l.b16 %v1870
    %v2722 = vunpack.c.h.b16 %v1870
    %v2723 = vunpack.c.l.b16 %v1871
    %v2724 = vunpack.c.h.b16 %v1871
    %v2725 = vunpack.c.l.b16 %v1872
    %v2726 = vunpack.c.l.b16 %v1873
    %v2727 = vunpack.c.h.b16 %v1873
    %v2728 = vunpack.c.l.b16 %v1874
    %v2729 = vunpack.c.h.b16 %v1874
    %v2730 = vunpack.c.l.b16 %v1875
    %v2731 = vunpack.c.h.b16 %v1875
    %v2732 = vunpack.c.l.b16 %v1876
    %v2733 = vunpack.c.l.b16 %v1877
    %v2734 = vunpack.c.h.b16 %v1877
    %v2735 = vunpack.c.l.b16 %v1878
    %v2736 = vunpack.c.h.b16 %v1878
    %v2737 = vunpack.c.l.b16 %v1879
    %v2738 = vunpack.c.h.b16 %v1879
    %v2739 = vunpack.c.l.b16 %v1880
    %v2740 = vunpack.c.l.b16 %v1881
    %v2741 = vunpack.c.h.b16 %v1881
    %v2742 = vunpack.c.l.b16 %v1882
    %v2743 = vunpack.c.h.b16 %v1882
    %v2744 = vunpack.c.l.b16 %v1883
    %v2745 = vunpack.c.h.b16 %v1883
    %v2746 = vunpack.c.l.b16 %v1884
    %v2747 = vunpack.c.l.b16 %v1885
    %v2748 = vunpack.c.h.b16 %v1885
    %v2749 = vunpack.c.l.b16 %v1886
    %v2750 = vunpack.c.h.b16 %v1886
    %v2751 = vunpack.c.l.b16 %v1887
    %v2752 = vunpack.c.h.b16 %v1887
    %v2753 = vunpack.c.l.b16 %v1888
    %v2754 = vunpack.c.l.b16 %v1889
    %v2755 = vunpack.c.h.b16 %v1889
    %v2756 = vunpack.c.l.b16 %v1890
    %v2757 = vunpack.c.h.b16 %v1890
    %v2758 = vunpack.c.l.b16 %v1891
    %v2759 = vunpack.c.h.b16 %v1891
    %v2760 = vunpack.c.l.b16 %v1892
    %v2761 = vunpack.c.l.b16 %v1893
    %v2762 = vunpack.c.h.b16 %v1893
    %v2763 = vunpack.c.l.b16 %v1894
    %v2764 = vunpack.c.h.b16 %v1894
    %v2765 = vunpack.c.l.b16 %v1895
    %v2766 = vunpack.c.h.b16 %v1895
    %v2767 = vunpack.c.l.b16 %v1896
    %v2768 = vunpack.c.l.b16 %v1897
    %v2769 = vunpack.c.h.b16 %v1897
    %v2770 = vunpack.c.l.b16 %v1898
    %v2771 = vunpack.c.h.b16 %v1898
    %v2772 = vunpack.c.l.b16 %v1899
    %v2773 = vunpack.c.h.b16 %v1899
    %v2774 = vunpack.c.l.b16 %v1900
    %v2775 = vunpack.c.l.b16 %v1901
    %v2776 = vunpack.c.h.b16 %v1901
    %v2777 = vunpack.c.l.b16 %v1902
    %v2778 = vunpack.c.h.b16 %v1902
    %v2779 = vunpack.c.l.b16 %v1903
    %v2780 = vunpack.c.h.b16 %v1903
    %v2781 = vunpack.c.l.b16 %v1904
    %v2782 = vunpack.c.l.b16 %v1905
    %v2783 = vunpack.c.h.b16 %v1905
    %v2784 = vunpack.c.l.b16 %v1906
    %v2785 = vunpack.c.h.b16 %v1906
    %v2786 = vunpack.c.l.b16 %v1907
    %v2787 = vunpack.c.h.b16 %v1907
    %v2788 = vunpack.c.l.b16 %v1908
    %v2789 = vunpack.c.l.b16 %v1909
    %v2790 = vunpack.c.h.b16 %v1909
    %v2791 = vunpack.c.l.b16 %v1910
    %v2792 = vunpack.c.h.b16 %v1910
    %v2793 = vunpack.c.l.b16 %v1911
    %v2794 = vunpack.c.h.b16 %v1911
    %v2795 = vunpack.c.l.b16 %v1912
    %v2796 = vunpack.c.l.b16 %v1913
    %v2797 = vunpack.c.h.b16 %v1913
    %v2798 = vunpack.c.l.b16 %v1914
    %v2799 = vunpack.c.h.b16 %v1914
    %v2800 = vunpack.c.l.b16 %v1915
    %v2801 = vunpack.c.h.b16 %v1915
    %v2802 = vunpack.c.l.b16 %v1916
    %v2803 = vunpack.c.l.b16 %v1917
    %v2804 = vunpack.c.h.b16 %v1917
    %v2805 = vunpack.c.l.b16 %v1918
    %v2806 = vunpack.c.h.b16 %v1918
    %v2807 = vunpack.c.l.b16 %v1919
    %v2808 = vunpack.c.h.b16 %v1919
    %v2809 = vunpack.c.l.b16 %v1920
    %v2810 = vunpack.c.l.b16 %v1921
    %v2811 = vunpack.c.h.b16 %v1921
    %v2812 = vunpack.c.l.b16 %v1922
    %v2813 = vunpack.c.h.b16 %v1922
    %v2814 = vunpack.c.l.b16 %v1923
    %v2815 = vunpack.c.h.b16 %v1923
    %v2816 = vunpack.c.l.b16 %v1924
    %v2817 = vunpack.c.l.b16 %v1925
    %v2818 = vunpack.c.h.b16 %v1925
    %v2819 = vunpack.c.l.b16 %v1926
    %v2820 = vunpack.c.h.b16 %v1926
    %v2821 = vunpack.c.l.b16 %v1927
    %v2822 = vunpack.c.h.b16 %v1927
    %v2823 = vunpack.c.l.b16 %v1928
    %v2824 = vunpack.c.l.b16 %v1929
    %v2825 = vunpack.c.h.b16 %v1929
    %v2826 = vunpack.c.l.b16 %v1930
    %v2827 = vunpack.c.h.b16 %v1930
    %v2828 = vunpack.c.l.b16 %v1931
    %v2829 = vunpack.c.h.b16 %v1931
    %v2830 = vunpack.c.l.b16 %v1932
    %v2831 = vunpack.c.l.b16 %v1933
    %v2832 = vunpack.c.h.b16 %v1933
    %v2833 = vunpack.c.l.b16 %v1934
    %v2834 = vunpack.c.h.b16 %v1934
    %v2835 = vunpack.c.l.b16 %v1935
    %v2836 = vunpack.c.h.b16 %v1935
    %v2837 = vunpack.c.l.b16 %v1936
    %v2838 = vunpack.c.l.b16 %v1937
    %v2839 = vunpack.c.h.b16 %v1937
    %v2840 = vunpack.c.l.b16 %v1938
    %v2841 = vunpack.c.h.b16 %v1938
    %v2842 = vunpack.c.l.b16 %v1939
    %v2843 = vunpack.c.h.b16 %v1939
    %v2844 = vunpack.c.l.b16 %v1940
    %v2845 = vunpack.c.l.b16 %v1941
    %v2846 = vunpack.c.h.b16 %v1941
    %v2847 = vunpack.c.l.b16 %v1942
    %v2848 = vunpack.c.h.b16 %v1942
    %v2849 = vunpack.c.l.b16 %v1943
    %v2850 = vunpack.c.h.b16 %v1943
    %v2851 = vunpack.c.l.b16 %v1944
    %v2852 = vunpack.c.l.b16 %v1945
    %v2853 = vunpack.c.h.b16 %v1945
    %v2854 = vunpack.c.l.b16 %v1946
    %v2855 = vunpack.c.h.b16 %v1946
    %v2856 = vunpack.c.l.b16 %v1947
    %v2857 = vunpack.c.h.b16 %v1947
    %v2858 = vunpack.c.l.b16 %v1948
    %v2859 = vunpack.c.l.b16 %v1949
    %v2860 = vunpack.c.h.b16 %v1949
    %v2861 = vunpack.c.l.b16 %v1950
    %v2862 = vunpack.c.h.b16 %v1950
    %v2863 = vunpack.c.l.b16 %v1951
    %v2864 = vunpack.c.h.b16 %v1951
    %v2865 = vunpack.c.l.b16 %v1952
    %v2866 = vunpack.c.l.b16 %v1953
    %v2867 = vunpack.c.h.b16 %v1953
    %v2868 = vunpack.c.l.b16 %v1954
    %v2869 = vunpack.c.h.b16 %v1954
    %v2870 = vunpack.c.l.b16 %v1955
    %v2871 = vunpack.c.h.b16 %v1955
    %v2872 = vunpack.c.l.b16 %v1956
    %v2873 = vunpack.c.l.b16 %v1957
    %v2874 = vunpack.c.h.b16 %v1957
    %v2875 = vunpack.c.l.b16 %v1958
    %v2876 = vunpack.c.h.b16 %v1958
    %v2877 = vunpack.c.l.b16 %v1959
    %v2878 = vunpack.c.h.b16 %v1959
    %v2879 = vunpack.c.l.b16 %v1960
    %v2880 = vunpack.c.l.b16 %v1961
    %v2881 = vunpack.c.h.b16 %v1961
    %v2882 = vunpack.c.l.b16 %v1962
    %v2883 = vunpack.c.h.b16 %v1962
    %v2884 = vunpack.c.l.b16 %v1963
    %v2885 = vunpack.c.h.b16 %v1963
    %v2886 = vunpack.c.l.b16 %v1964
    %v2887 = vunpack.c.l.b16 %v1965
    %v2888 = vunpack.c.h.b16 %v1965
    %v2889 = vunpack.c.l.b16 %v1966
    %v2890 = vunpack.c.h.b16 %v1966
    %v2891 = vunpack.c.l.b16 %v1967
    %v2892 = vunpack.c.h.b16 %v1967
    %v2893 = vunpack.c.l.b16 %v1968
    %v2894 = vunpack.c.l.b16 %v1969
    %v2895 = vunpack.c.h.b16 %v1969
    %v2896 = vunpack.c.l.b16 %v1970
    %v2897 = vunpack.c.h.b16 %v1970
    %v2898 = vunpack.c.l.b16 %v1971
    %v2899 = vunpack.c.h.b16 %v1971
    %v2900 = vunpack.c.l.b16 %v1972
    %v2901 = vunpack.c.l.b16 %v1973
    %v2902 = vunpack.c.h.b16 %v1973
    %v2903 = vunpack.c.l.b16 %v1974
    %v2904 = vunpack.c.h.b16 %v1974
    %v2905 = vunpack.c.l.b16 %v1975
    %v2906 = vunpack.c.h.b16 %v1975
    %v2907 = vunpack.c.l.b16 %v1976
    %v2908 = vunpack.c.l.b16 %v1977
    %v2909 = vunpack.c.h.b16 %v1977
    %v2910 = vunpack.c.l.b16 %v1978
    %v2911 = vunpack.c.h.b16 %v1978
    %v2912 = vunpack.c.l.b16 %v1979
    %v2913 = vunpack.c.h.b16 %v1979
    %v2914 = vunpack.c.l.b16 %v1980
    %v2915 = vunpack.c.l.b16 %v1981
    %v2916 = vunpack.c.h.b16 %v1981
    %v2917 = vunpack.c.l.b16 %v1982
    %v2918 = vunpack.c.h.b16 %v1982
    %v2919 = vunpack.c.l.b16 %v1983
    %v2920 = vunpack.c.h.b16 %v1983
    %v2921 = vunpack.c.l.b16 %v1984
    %v2922 = vunpack.c.l.b16 %v1985
    %v2923 = vunpack.c.h.b16 %v1985
    %v2924 = vunpack.c.l.b16 %v1986
    %v2925 = vunpack.c.h.b16 %v1986
    %v2926 = vunpack.c.l.b16 %v1987
    %v2927 = vunpack.c.h.b16 %v1987
    %v2928 = vunpack.c.l.b16 %v1988
    %v2929 = vunpack.c.l.b16 %v1989
    %v2930 = vunpack.c.h.b16 %v1989
    %v2931 = vunpack.c.l.b16 %v1990
    %v2932 = vunpack.c.h.b16 %v1990
    %v2933 = vunpack.c.l.b16 %v1991
    %v2934 = vunpack.c.h.b16 %v1991
    %v2935 = vunpack.c.l.b16 %v1992
    %v2936 = vunpack.c.l.b16 %v1993
    %v2937 = vunpack.c.h.b16 %v1993
    %v2938 = vunpack.c.l.b16 %v1994
    %v2939 = vunpack.c.h.b16 %v1994
    %v2940 = vunpack.c.l.b16 %v1995
    %v2941 = vunpack.c.h.b16 %v1995
    %v2942 = vunpack.c.l.b16 %v1996
    %v2943 = vunpack.c.l.b16 %v1997
    %v2944 = vunpack.c.h.b16 %v1997
    %v2945 = vunpack.c.l.b16 %v1998
    %v2946 = vunpack.c.h.b16 %v1998
    %v2947 = vunpack.c.l.b16 %v1999
    %v2948 = vunpack.c.h.b16 %v1999
    %v2949 = vunpack.c.l.b16 %v2000
    %v2950 = vunpack.c.l.b16 %v2001
    %v2951 = vunpack.c.h.b16 %v2001
    %v2952 = vunpack.c.l.b16 %v2002
    %v2953 = vunpack.c.h.b16 %v2002
    %v2954 = vunpack.c.l.b16 %v2003
    %v2955 = vunpack.c.h.b16 %v2003
    %v2956 = vunpack.c.l.b16 %v2004
    %v2957 = vunpack.c.l.b16 %v2005
    %v2958 = vunpack.c.h.b16 %v2005
    %v2959 = vunpack.c.l.b16 %v2006
    %v2960 = vunpack.c.h.b16 %v2006
    %v2961 = vunpack.c.l.b16 %v2007
    %v2962 = vunpack.c.h.b16 %v2007
    %v2963 = vunpack.c.l.b16 %v2008
    %v2964 = vunpack.c.l.b16 %v2009
    %v2965 = vunpack.c.h.b16 %v2009
    %v2966 = vunpack.c.l.b16 %v2010
    %v2967 = vunpack.c.h.b16 %v2010
    %v2968 = vunpack.c.l.b16 %v2011
    %v2969 = vunpack.c.h.b16 %v2011
    %v2970 = vunpack.c.l.b16 %v2012
    %v2971 = vunpack.c.l.b16 %v2013
    %v2972 = vunpack.c.h.b16 %v2013
    %v2973 = vunpack.c.l.b16 %v2014
    %v2974 = vunpack.c.h.b16 %v2014
    %v2975 = vunpack.c.l.b16 %v2015
    %v2976 = vunpack.c.h.b16 %v2015
    %v2977 = vunpack.c.l.b16 %v2016
    %v2978 = vunpack.c.l.b16 %v2017
    %v2979 = vunpack.c.h.b16 %v2017
    %v2980 = vunpack.c.l.b16 %v2018
    %v2981 = vunpack.c.h.b16 %v2018
    %v2982 = vunpack.c.l.b16 %v2019
    %v2983 = vunpack.c.h.b16 %v2019
    %v2984 = vunpack.c.l.b16 %v2020
    %v2985 = vunpack.c.l.b16 %v2021
    %v2986 = vunpack.c.h.b16 %v2021
    %v2987 = vunpack.c.l.b16 %v2022
    %v2988 = vunpack.c.h.b16 %v2022
    %v2989 = vunpack.c.l.b16 %v2023
    %v2990 = vunpack.c.h.b16 %v2023
    %v2991 = vunpack.c.l.b16 %v2024
    %v2992 = vunpack.c.l.b16 %v2025
    %v2993 = vunpack.c.h.b16 %v2025
    %v2994 = vunpack.c.l.b16 %v2026
    %v2995 = vunpack.c.h.b16 %v2026
    %v2996 = vunpack.c.l.b16 %v2027
    %v2997 = vunpack.c.h.b16 %v2027
    %v2998 = vunpack.c.l.b16 %v2028
    %v2999 = vunpack.c.l.b16 %v2029
    %v3000 = vunpack.c.h.b16 %v2029
    %v3001 = vunpack.c.l.b16 %v2030
    %v3002 = vunpack.c.h.b16 %v2030
    %v3003 = vunpack.c.l.b16 %v2031
    %v3004 = vunpack.c.h.b16 %v2031
    %v3005 = vunpack.c.l.b16 %v2032
    %v3006 = vunpack.c.l.b16 %v2033
    %v3007 = vunpack.c.h.b16 %v2033
    %v3008 = vunpack.c.l.b16 %v2034
    %v3009 = vunpack.c.h.b16 %v2034
    %v3010 = vunpack.c.l.b16 %v2035
    %v3011 = vunpack.c.h.b16 %v2035
    %v3012 = vunpack.c.l.b16 %v2036
    %v3013 = vunpack.c.l.b16 %v2037
    %v3014 = vunpack.c.h.b16 %v2037
    %v3015 = vunpack.c.l.b16 %v2038
    %v3016 = vunpack.c.h.b16 %v2038
    %v3017 = vunpack.c.l.b16 %v2039
    %v3018 = vunpack.c.h.b16 %v2039
    %v3019 = vunpack.c.l.b16 %v2040
    %v3020 = vunpack.c.l.b16 %v2041
    %v3021 = vunpack.c.h.b16 %v2041
    %v3022 = vunpack.c.l.b16 %v2042
    %v3023 = vunpack.c.h.b16 %v2042
    %v3024 = vunpack.c.l.b16 %v2043
    %v3025 = vunpack.c.h.b16 %v2043
    %v3026 = vunpack.c.l.b16 %v2044
    %v3027 = vunpack.c.l.b16 %v2045
    %v3028 = vunpack.c.h.b16 %v2045
    %v3029 = vunpack.c.l.b16 %v2046
    %v3030 = vunpack.c.h.b16 %v2046
    %v3031 = vunpack.c.l.b16 %v2047
    %v3032 = vunpack.c.h.b16 %v2047
    %v3033 = vunpack.c.l.b16 %v2048
    %v3034 = vunpack.c.l.b16 %v2049
    %v3035 = vunpack.c.h.b16 %v2049
    %v3036 = vunpack.c.l.b16 %v2050
    %v3037 = vunpack.c.h.b16 %v2050
    %v3038 = vunpack.c.l.b16 %v2051
    %v3039 = vunpack.c.h.b16 %v2051
    %v3040 = vunpack.c.l.b16 %v2052
    %v3041 = vunpack.c.l.b16 %v2053
    %v3042 = vunpack.c.h.b16 %v2053
    %v3043 = vunpack.c.l.b16 %v2054
    %v3044 = vunpack.c.h.b16 %v2054
    %v3045 = vunpack.c.l.b16 %v2055
    %v3046 = vunpack.c.h.b16 %v2055
    %v3047 = vunpack.c.l.b16 %v2056
    %v3048 = vunpack.c.l.b16 %v2057
    %v3049 = vunpack.c.h.b16 %v2057
    %v3050 = vunpack.c.l.b16 %v2058
    %v3051 = vunpack.c.h.b16 %v2058
    %v3052 = vunpack.c.l.b16 %v2059
    %v3053 = vunpack.c.h.b16 %v2059
    %v3054 = vunpack.c.l.b16 %v2060
    %v3055 = vunpack.c.l.b16 %v2061
    %v3056 = vunpack.c.h.b16 %v2061
    %v3057 = vunpack.c.l.b16 %v2062
    %v3058 = vunpack.c.h.b16 %v2062
    %v3059 = vunpack.c.l.b16 %v2063
    %v3060 = vunpack.c.h.b16 %v2063
    %v3061 = vunpack.c.l.b16 %v2064
    %v3062 = vunpack.c.l.b16 %v2065
    %v3063 = vunpack.c.h.b16 %v2065
    %v3064 = vunpack.c.l.b16 %v2066
    %v3065 = vunpack.c.h.b16 %v2066
    %v3066 = vunpack.c.l.b16 %v2067
    %v3067 = vunpack.c.h.b16 %v2067
    %v3068 = vunpack.c.l.b16 %v2068
    %v3069 = vunpack.c.l.b16 %v2069
    %v3070 = vunpack.c.h.b16 %v2069
    %v3071 = vunpack.c.l.b16 %v2070
    %v3072 = vunpack.c.h.b16 %v2070
    %v3073 = vunpack.c.l.b16 %v2071
    %v3074 = vunpack.c.h.b16 %v2071
    %v3075 = vunpack.c.l.b16 %v2072
    %v3076 = vunpack.c.l.b16 %v2073
    %v3077 = vunpack.c.h.b16 %v2073
    %v3078 = vunpack.c.l.b16 %v2074
    %v3079 = vunpack.c.h.b16 %v2074
    %v3080 = vunpack.c.l.b16 %v2075
    %v3081 = vunpack.c.h.b16 %v2075
    %v3082 = vunpack.c.l.b16 %v2076
    %v3083 = vunpack.c.l.b16 %v2077
    %v3084 = vunpack.c.h.b16 %v2077
    %v3085 = vunpack.c.l.b16 %v2078
    %v3086 = vunpack.c.h.b16 %v2078
    %v3087 = vunpack.c.l.b16 %v2079
    %v3088 = vunpack.c.h.b16 %v2079
    %v3089 = vunpack.c.l.b16 %v2080
    %v3090 = vunpack.c.l.b16 %v2081
    %v3091 = vunpack.c.h.b16 %v2081
    %v3092 = vunpack.c.l.b16 %v2082
    %v3093 = vunpack.c.h.b16 %v2082
    %v3094 = vunpack.c.l.b16 %v2083
    %v3095 = vunpack.c.h.b16 %v2083
    %v3096 = vunpack.c.l.b16 %v2084
    %v3097 = vunpack.c.l.b16 %v2085
    %v3098 = vunpack.c.h.b16 %v2085
    %v3099 = vunpack.c.l.b16 %v2086
    %v3100 = vunpack.c.h.b16 %v2086
    %v3101 = vunpack.c.l.b16 %v2087
    %v3102 = vunpack.c.h.b16 %v2087
    %v3103 = vunpack.c.l.b16 %v2088
    %v3104 = vunpack.c.l.b16 %v2089
    %v3105 = vunpack.c.h.b16 %v2089
    %v3106 = vunpack.c.l.b16 %v2090
    %v3107 = vunpack.c.h.b16 %v2090
    %v3108 = vunpack.c.l.b16 %v2091
    %v3109 = vunpack.c.h.b16 %v2091
    %v3110 = vunpack.c.l.b16 %v2092
    %v3111 = vunpack.c.l.b16 %v2093
    %v3112 = vunpack.c.h.b16 %v2093
    %v3113 = vunpack.c.l.b16 %v2094
    %v3114 = vunpack.c.h.b16 %v2094
    %v3115 = vunpack.c.l.b16 %v2095
    %v3116 = vunpack.c.h.b16 %v2095
    %v3117 = vunpack.c.l.b16 %v2096
    %v3118 = vunpack.c.l.b16 %v2097
    %v3119 = vunpack.c.h.b16 %v2097
    %v3120 = vunpack.c.l.b16 %v2098
    %v3121 = vunpack.c.h.b16 %v2098
    %v3122 = vunpack.c.l.b16 %v2099
    %v3123 = vunpack.c.h.b16 %v2099
    %v3124 = vunpack.c.l.b16 %v2100
    %v3125 = vunpack.c.l.b16 %v2101
    %v3126 = vunpack.c.h.b16 %v2101
    %v3127 = vunpack.c.l.b16 %v2102
    %v3128 = vunpack.c.h.b16 %v2102
    %v3129 = vunpack.c.l.b16 %v2103
    %v3130 = vunpack.c.h.b16 %v2103
    %v3131 = vunpack.c.l.b16 %v2104
    %v3132 = vunpack.c.l.b16 %v2105
    %v3133 = vunpack.c.h.b16 %v2105
    %v3134 = vunpack.c.l.b16 %v2106
    %v3135 = vunpack.c.h.b16 %v2106
    %v3136 = vunpack.c.l.b16 %v2107
    %v3137 = vunpack.c.h.b16 %v2107
    %v3138 = vunpack.c.l.b16 %v2108
    %v3139 = vunpack.c.l.b16 %v2109
    %v3140 = vunpack.c.h.b16 %v2109
    %v3141 = vunpack.c.l.b16 %v2110
    %v3142 = vunpack.c.h.b16 %v2110
    %v3143 = vunpack.c.l.b16 %v2111
    %v3144 = vunpack.c.h.b16 %v2111
    %v3145 = vunpack.c.l.b16 %v2112
    %v3146 = vunpack.c.l.b16 %v2113
    %v3147 = vunpack.c.h.b16 %v2113
    %v3148 = vunpack.c.l.b16 %v2114
    %v3149 = vunpack.c.h.b16 %v2114
    %v3150 = vunpack.c.l.b16 %v2115
    %v3151 = vunpack.c.h.b16 %v2115
    %v3152 = vunpack.c.l.b16 %v2116
    %v3153 = vunpack.c.l.b16 %v2117
    %v3154 = vunpack.c.h.b16 %v2117
    %v3155 = vunpack.c.l.b16 %v2118
    %v3156 = vunpack.c.h.b16 %v2118
    %v3157 = vunpack.c.l.b16 %v2119
    %v3158 = vunpack.c.h.b16 %v2119
    %v3159 = vunpack.c.l.b16 %v2120
    %v3160 = vunpack.c.l.b16 %v2121
    %v3161 = vunpack.c.h.b16 %v2121
    %v3162 = vunpack.c.l.b16 %v2122
    %v3163 = vunpack.c.h.b16 %v2122
    %v3164 = vunpack.c.l.b16 %v2123
    %v3165 = vunpack.c.h.b16 %v2123
    %v3166 = vunpack.c.l.b16 %v2124
    %v3167 = vunpack.c.l.b16 %v2125
    %v3168 = vunpack.c.h.b16 %v2125
    %v3169 = vunpack.c.l.b16 %v2126
    %v3170 = vunpack.c.h.b16 %v2126
    %v3171 = vunpack.c.l.b16 %v2127
    %v3172 = vunpack.c.h.b16 %v2127
    %v3173 = vunpack.c.l.b16 %v2128
    %v3174 = vunpack.c.l.b16 %v2129
    %v3175 = vunpack.c.h.b16 %v2129
    %v3176 = vunpack.c.l.b16 %v2130
    %v3177 = vunpack.c.h.b16 %v2130
    %v3178 = vunpack.c.l.b16 %v2131
    %v3179 = vunpack.c.h.b16 %v2131
    %v3180 = vunpack.c.l.b16 %v2132
    %v3181 = vunpack.c.l.b16 %v2133
    %v3182 = vunpack.c.h.b16 %v2133
    %v3183 = vunpack.c.l.b16 %v2134
    %v3184 = vunpack.c.h.b16 %v2134
    %v3185 = vunpack.c.l.b16 %v2135
    %v3186 = vunpack.c.h.b16 %v2135
    %v3187 = vunpack.c.l.b16 %v2136
    %v3188 = vunpack.c.l.b16 %v2137
    %v3189 = vunpack.c.h.b16 %v2137
    %v3190 = vunpack.c.l.b16 %v2138
    %v3191 = vunpack.c.h.b16 %v2138
    %v3192 = vunpack.c.l.b16 %v2139
    %v3193 = vunpack.c.h.b16 %v2139
    %v3194 = vunpack.c.l.b16 %v2140
    %v3195 = vunpack.c.l.b16 %v2141
    %v3196 = vunpack.c.h.b16 %v2141
    %v3197 = vunpack.c.l.b16 %v2142
    %v3198 = vunpack.c.h.b16 %v2142
    %v3199 = vunpack.c.l.b16 %v2143
    %v3200 = vunpack.c.h.b16 %v2143
    %v3201 = vunpack.c.l.b16 %v2144
    %v3202 = vunpack.c.l.b16 %v2145
    %v3203 = vunpack.c.h.b16 %v2145
    %v3204 = vunpack.c.l.b16 %v2146
    %v3205 = vunpack.c.h.b16 %v2146
    %v3206 = vunpack.c.l.b16 %v2147
    %v3207 = vunpack.c.h.b16 %v2147
    %v3208 = vunpack.c.l.b16 %v2148
    %v3209 = vunpack.c.l.b16 %v2149
    %v3210 = vunpack.c.h.b16 %v2149
    %v3211 = vunpack.c.l.b16 %v2150
    %v3212 = vunpack.c.h.b16 %v2150
    %v3213 = vunpack.c.l.b16 %v2151
    %v3214 = vunpack.c.h.b16 %v2151
    %v3215 = vunpack.c.l.b16 %v2152
    %v3216 = vunpack.c.l.b16 %v2153
    %v3217 = vunpack.c.h.b16 %v2153
    %v3218 = vunpack.c.l.b16 %v2154
    %v3219 = vunpack.c.h.b16 %v2154
    %v3220 = vunpack.c.l.b16 %v2155
    %v3221 = vunpack.c.h.b16 %v2155
    %v3222 = vunpack.c.l.b16 %v2156
    %v3223 = vunpack.c.l.b16 %v2157
    %v3224 = vunpack.c.h.b16 %v2157
    %v3225 = vunpack.c.l.b16 %v2158
    %v3226 = vunpack.c.h.b16 %v2158
    %v3227 = vunpack.c.l.b16 %v2159
    %v3228 = vunpack.c.h.b16 %v2159
    %v3229 = vunpack.c.l.b16 %v2160
    %v3230 = vunpack.c.l.b16 %v2161
    %v3231 = vunpack.c.h.b16 %v2161
    %v3232 = vunpack.c.l.b16 %v2162
    %v3233 = vunpack.c.h.b16 %v2162
    %v3234 = vunpack.c.l.b16 %v2163
    %v3235 = vunpack.c.h.b16 %v2163
    %v3236 = vunpack.c.l.b16 %v2164
    %v3237 = vunpack.c.l.b16 %v2165
    %v3238 = vunpack.c.h.b16 %v2165
    %v3239 = vunpack.c.l.b16 %v2166
    %v3240 = vunpack.c.h.b16 %v2166
    %v3241 = vunpack.c.l.b16 %v2167
    %v3242 = vunpack.c.h.b16 %v2167
    %v3243 = vunpack.c.l.b16 %v2168
    %v3244 = vunpack.c.l.b16 %v2169
    %v3245 = vunpack.c.h.b16 %v2169
    %v3246 = vunpack.c.l.b16 %v2170
    %v3247 = vunpack.c.h.b16 %v2170
    %v3248 = vunpack.c.l.b16 %v2171
    %v3249 = vunpack.c.h.b16 %v2171
    %v3250 = vunpack.c.l.b16 %v2172
    %v3251 = vpack.c.b16 %v2572, %v2565
    %v3252 = vpack.c.b16 %v2573, %v2566
    %v3253 = vpack.c.b16 %v2574, %v2567
    %v3254 = vpack.c.b16 %v2575, %v2568
    %v3255 = vpack.c.b16 %v2576, %v2569
    %v3256 = vpack.c.b16 %v2577, %v2570
    %v3257 = vpack.c.b16 %v2578, %v2571
    %v3258 = vpack.c.b16 %v2586, %v2579
    %v3259 = vpack.c.b16 %v2587, %v2580
    %v3260 = vpack.c.b16 %v2588, %v2581
    %v3261 = vpack.c.b16 %v2589, %v2582
    %v3262 = vpack.c.b16 %v2590, %v2583
    %v3263 = vpack.c.b16 %v2591, %v2584
    %v3264 = vpack.c.b16 %v2592, %v2585
    %v3265 = vpack.c.b16 %v2600, %v2593
    %v3266 = vpack.c.b16 %v2601, %v2594
    %v3267 = vpack.c.b16 %v2602, %v2595
    %v3268 = vpack.c.b16 %v2603, %v2596
    %v3269 = vpack.c.b16 %v2604, %v2597
    %v3270 = vpack.c.b16 %v2605, %v2598
    %v3271 = vpack.c.b16 %v2606, %v2599
    %v3272 = vpack.c.b16 %v2614, %v2607
    %v3273 = vpack.c.b16 %v2615, %v2608
    %v3274 = vpack.c.b16 %v2616, %v2609
    %v3275 = vpack.c.b16 %v2617, %v2610
    %v3276 = vpack.c.b16 %v2618, %v2611
    %v3277 = vpack.c.b16 %v2619, %v2612
    %v3278 = vpack.c.b16 %v2620, %v2613
    %v3279 = vpack.c.b16 %v2628, %v2621
    %v3280 = vpack.c.b16 %v2629, %v2622
    %v3281 = vpack.c.b16 %v2630, %v2623
    %v3282 = vpack.c.b16 %v2631, %v2624
    %v3283 = vpack.c.b16 %v2632, %v2625
    %v3284 = vpack.c.b16 %v2633, %v2626
    %v3285 = vpack.c.b16 %v2634, %v2627
    %v3286 = vpack.c.b16 %v2642, %v2635
    %v3287 = vpack.c.b16 %v2643, %v2636
    %v3288 = vpack.c.b16 %v2644, %v2637
    %v3289 = vpack.c.b16 %v2645, %v2638
    %v3290 = vpack.c.b16 %v2646, %v2639
    %v3291 = vpack.c.b16 %v2647, %v2640
    %v3292 = vpack.c.b16 %v2648, %v2641
    %v3293 = vpack.c.b16 %v2656, %v2649
    %v3294 = vpack.c.b16 %v2657, %v2650
    %v3295 = vpack.c.b16 %v2658, %v2651
    %v3296 = vpack.c.b16 %v2659, %v2652
    %v3297 = vpack.c.b16 %v2660, %v2653
    %v3298 = vpack.c.b16 %v2661, %v2654
    %v3299 = vpack.c.b16 %v2662, %v2655
    %v3300 = vpack.c.b16 %v2670, %v2663
    %v3301 = vpack.c.b16 %v2671, %v2664
    %v3302 = vpack.c.b16 %v2672, %v2665
    %v3303 = vpack.c.b16 %v2673, %v2666
    %v3304 = vpack.c.b16 %v2674, %v2667
    %v3305 = vpack.c.b16 %v2675, %v2668
    %v3306 = vpack.c.b16 %v2676, %v2669
    %v3307 = vpack.c.b16 %v2684, %v2677
    %v3308 = vpack.c.b16 %v2685, %v2678
    %v3309 = vpack.c.b16 %v2686, %v2679
    %v3310 = vpack.c.b16 %v2687, %v2680
    %v3311 = vpack.c.b16 %v2688, %v2681
    %v3312 = vpack.c.b16 %v2689, %v2682
    %v3313 = vpack.c.b16 %v2690, %v2683
    %v3314 = vpack.c.b16 %v2698, %v2691
    %v3315 = vpack.c.b16 %v2699, %v2692
    %v3316 = vpack.c.b16 %v2700, %v2693
    %v3317 = vpack.c.b16 %v2701, %v2694
    %v3318 = vpack.c.b16 %v2702, %v2695
    %v3319 = vpack.c.b16 %v2703, %v2696
    %v3320 = vpack.c.b16 %v2704, %v2697
    %v3321 = vpack.c.b16 %v2712, %v2705
    %v3322 = vpack.c.b16 %v2713, %v2706
    %v3323 = vpack.c.b16 %v2714, %v2707
    %v3324 = vpack.c.b16 %v2715, %v2708
    %v3325 = vpack.c.b16 %v2716, %v2709
    %v3326 = vpack.c.b16 %v2717, %v2710
    %v3327 = vpack.c.b16 %v2718, %v2711
    %v3328 = vpack.c.b16 %v2726, %v2719
    %v3329 = vpack.c.b16 %v2727, %v2720
    %v3330 = vpack.c.b16 %v2728, %v2721
    %v3331 = vpack.c.b16 %v2729, %v2722
    %v3332 = vpack.c.b16 %v2730, %v2723
    %v3333 = vpack.c.b16 %v2731, %v2724
    %v3334 = vpack.c.b16 %v2732, %v2725
    %v3335 = vpack.c.b16 %v2740, %v2733
    %v3336 = vpack.c.b16 %v2741, %v2734
    %v3337 = vpack.c.b16 %v2742, %v2735
    %v3338 = vpack.c.b16 %v2743, %v2736
    %v3339 = vpack.c.b16 %v2744, %v2737
    %v3340 = vpack.c.b16 %v2745, %v2738
    %v3341 = vpack.c.b16 %v2746, %v2739
    %v3342 = vpack.c.b16 %v2754, %v2747
    %v3343 = vpack.c.b16 %v2755, %v2748
    %v3344 = vpack.c.b16 %v2756, %v2749
    %v3345 = vpack.c.b16 %v2757, %v2750
    %v3346 = vpack.c.b16 %v2758, %v2751
    %v3347 = vpack.c.b16 %v2759, %v2752
    %v3348 = vpack.c.b16 %v2760, %v2753
    %v3349 = vpack.c.b16 %v2768, %v2761
    %v3350 = vpack.c.b16 %v2769, %v2762
    %v3351 = vpack.c.b16 %v2770, %v2763
    %v3352 = vpack.c.b16 %v2771, %v2764
    %v3353 = vpack.c.b16 %v2772, %v2765
    %v3354 = vpack.c.b16 %v2773, %v2766
    %v3355 = vpack.c.b16 %v2774, %v2767
    %v3356 = vpack.c.b16 %v2782, %v2775
    %v3357 = vpack.c.b16 %v2783, %v2776
    %v3358 = vpack.c.b16 %v2784, %v2777
    %v3359 = vpack.c.b16 %v2785, %v2778
    %v3360 = vpack.c.b16 %v2786, %v2779
    %v3361 = vpack.c.b16 %v2787, %v2780
    %v3362 = vpack.c.b16 %v2788, %v2781
    %v3363 = vpack.c.b16 %v2796, %v2789
    %v3364 = vpack.c.b16 %v2797, %v2790
    %v3365 = vpack.c.b16 %v2798, %v2791
    %v3366 = vpack.c.b16 %v2799, %v2792
    %v3367 = vpack.c.b16 %v2800, %v2793
    %v3368 = vpack.c.b16 %v2801, %v2794
    %v3369 = vpack.c.b16 %v2802, %v2795
    %v3370 = vpack.c.b16 %v2810, %v2803
    %v3371 = vpack.c.b16 %v2811, %v2804
    %v3372 = vpack.c.b16 %v2812, %v2805
    %v3373 = vpack.c.b16 %v2813, %v2806
    %v3374 = vpack.c.b16 %v2814, %v2807
    %v3375 = vpack.c.b16 %v2815, %v2808
    %v3376 = vpack.c.b16 %v2816, %v2809
    %v3377 = vpack.c.b16 %v2824, %v2817
    %v3378 = vpack.c.b16 %v2825, %v2818
    %v3379 = vpack.c.b16 %v2826, %v2819
    %v3380 = vpack.c.b16 %v2827, %v2820
    %v3381 = vpack.c.b16 %v2828, %v2821
    %v3382 = vpack.c.b16 %v2829, %v2822
    %v3383 = vpack.c.b16 %v2830, %v2823
    %v3384 = vpack.c.b16 %v2838, %v2831
    %v3385 = vpack.c.b16 %v2839, %v2832
    %v3386 = vpack.c.b16 %v2840, %v2833
    %v3387 = vpack.c.b16 %v2841, %v2834
    %v3388 = vpack.c.b16 %v2842, %v2835
    %v3389 = vpack.c.b16 %v2843, %v2836
    %v3390 = vpack.c.b16 %v2844, %v2837
    %v3391 = vpack.c.b16 %v2852, %v2845
    %v3392 = vpack.c.b16 %v2853, %v2846
    %v3393 = vpack.c.b16 %v2854, %v2847
    %v3394 = vpack.c.b16 %v2855, %v2848
    %v3395 = vpack.c.b16 %v2856, %v2849
    %v3396 = vpack.c.b16 %v2857, %v2850
    %v3397 = vpack.c.b16 %v2858, %v2851
    %v3398 = vpack.c.b16 %v2866, %v2859
    %v3399 = vpack.c.b16 %v2867, %v2860
    %v3400 = vpack.c.b16 %v2868, %v2861
    %v3401 = vpack.c.b16 %v2869, %v2862
    %v3402 = vpack.c.b16 %v2870, %v2863
    %v3403 = vpack.c.b16 %v2871, %v2864
    %v3404 = vpack.c.b16 %v2872, %v2865
    %v3405 = vpack.c.b16 %v2880, %v2873
    %v3406 = vpack.c.b16 %v2881, %v2874
    %v3407 = vpack.c.b16 %v2882, %v2875
    %v3408 = vpack.c.b16 %v2883, %v2876
    %v3409 = vpack.c.b16 %v2884, %v2877
    %v3410 = vpack.c.b16 %v2885, %v2878
    %v3411 = vpack.c.b16 %v2886, %v2879
    %v3412 = vpack.c.b16 %v2894, %v2887
    %v3413 = vpack.c.b16 %v2895, %v2888
    %v3414 = vpack.c.b16 %v2896, %v2889
    %v3415 = vpack.c.b16 %v2897, %v2890
    %v3416 = vpack.c.b16 %v2898, %v2891
    %v3417 = vpack.c.b16 %v2899, %v2892
    %v3418 = vpack.c.b16 %v2900, %v2893
    %v3419 = vpack.c.b16 %v2908, %v2901
    %v3420 = vpack.c.b16 %v2909, %v2902
    %v3421 = vpack.c.b16 %v2910, %v2903
    %v3422 = vpack.c.b16 %v2911, %v2904
    %v3423 = vpack.c.b16 %v2912, %v2905
    %v3424 = vpack.c.b16 %v2913, %v2906
    %v3425 = vpack.c.b16 %v2914, %v2907
    %v3426 = vpack.c.b16 %v2922, %v2915
    %v3427 = vpack.c.b16 %v2923, %v2916
    %v3428 = vpack.c.b16 %v2924, %v2917
    %v3429 = vpack.c.b16 %v2925, %v2918
    %v3430 = vpack.c.b16 %v2926, %v2919
    %v3431 = vpack.c.b16 %v2927, %v2920
    %v3432 = vpack.c.b16 %v2928, %v2921
    %v3433 = vpack.c.b16 %v2936, %v2929
    %v3434 = vpack.c.b16 %v2937, %v2930
    %v3435 = vpack.c.b16 %v2938, %v2931
    %v3436 = vpack.c.b16 %v2939, %v2932
    %v3437 = vpack.c.b16 %v2940, %v2933
    %v3438 = vpack.c.b16 %v2941, %v2934
    %v3439 = vpack.c.b16 %v2942, %v2935
    %v3440 = vpack.c.b16 %v2950, %v2943
    %v3441 = vpack.c.b16 %v2951, %v2944
    %v3442 = vpack.c.b16 %v2952, %v2945
    %v3443 = vpack.c.b16 %v2953, %v2946
    %v3444 = vpack.c.b16 %v2954, %v2947
    %v3445 = vpack.c.b16 %v2955, %v2948
    %v3446 = vpack.c.b16 %v2956, %v2949
    %v3447 = vpack.c.b16 %v2964, %v2957
    %v3448 = vpack.c.b16 %v2965, %v2958
    %v3449 = vpack.c.b16 %v2966, %v2959
    %v3450 = vpack.c.b16 %v2967, %v2960
    %v3451 = vpack.c.b16 %v2968, %v2961
    %v3452 = vpack.c.b16 %v2969, %v2962
    %v3453 = vpack.c.b16 %v2970, %v2963
    %v3454 = vpack.c.b16 %v2978, %v2971
    %v3455 = vpack.c.b16 %v2979, %v2972
    %v3456 = vpack.c.b16 %v2980, %v2973
    %v3457 = vpack.c.b16 %v2981, %v2974
    %v3458 = vpack.c.b16 %v2982, %v2975
    %v3459 = vpack.c.b16 %v2983, %v2976
    %v3460 = vpack.c.b16 %v2984, %v2977
    %v3461 = vpack.c.b16 %v2992, %v2985
    %v3462 = vpack.c.b16 %v2993, %v2986
    %v3463 = vpack.c.b16 %v2994, %v2987
    %v3464 = vpack.c.b16 %v2995, %v2988
    %v3465 = vpack.c.b16 %v2996, %v2989
    %v3466 = vpack.c.b16 %v2997, %v2990
    %v3467 = vpack.c.b16 %v2998, %v2991
    %v3468 = vpack.c.b16 %v3006, %v2999
    %v3469 = vpack.c.b16 %v3007, %v3000
    %v3470 = vpack.c.b16 %v3008, %v3001
    %v3471 = vpack.c.b16 %v3009, %v3002
    %v3472 = vpack.c.b16 %v3010, %v3003
    %v3473 = vpack.c.b16 %v3011, %v3004
    %v3474 = vpack.c.b16 %v3012, %v3005
    %v3475 = vpack.c.b16 %v3020, %v3013
    %v3476 = vpack.c.b16 %v3021, %v3014
    %v3477 = vpack.c.b16 %v3022, %v3015
    %v3478 = vpack.c.b16 %v3023, %v3016
    %v3479 = vpack.c.b16 %v3024, %v3017
    %v3480 = vpack.c.b16 %v3025, %v3018
    %v3481 = vpack.c.b16 %v3026, %v3019
    %v3482 = vpack.c.b16 %v3034, %v3027
    %v3483 = vpack.c.b16 %v3035, %v3028
    %v3484 = vpack.c.b16 %v3036, %v3029
    %v3485 = vpack.c.b16 %v3037, %v3030
    %v3486 = vpack.c.b16 %v3038, %v3031
    %v3487 = vpack.c.b16 %v3039, %v3032
    %v3488 = vpack.c.b16 %v3040, %v3033
    %v3489 = vpack.c.b16 %v3048, %v3041
    %v3490 = vpack.c.b16 %v3049, %v3042
    %v3491 = vpack.c.b16 %v3050, %v3043
    %v3492 = vpack.c.b16 %v3051, %v3044
    %v3493 = vpack.c.b16 %v3052, %v3045
    %v3494 = vpack.c.b16 %v3053, %v3046
    %v3495 = vpack.c.b16 %v3054, %v3047
    %v3496 = vpack.c.b16 %v3062, %v3055
    %v3497 = vpack.c.b16 %v3063, %v3056
    %v3498 = vpack.c.b16 %v3064, %v3057
    %v3499 = vpack.c.b16 %v3065, %v3058
    %v3500 = vpack.c.b16 %v3066, %v3059
    %v3501 = vpack.c.b16 %v3067, %v3060
    %v3502 = vpack.c.b16 %v3068, %v3061
    %v3503 = vpack.c.b16 %v3076, %v3069
    %v3504 = vpack.c.b16 %v3077, %v3070
    %v3505 = vpack.c.b16 %v3078, %v3071
    %v3506 = vpack.c.b16 %v3079, %v3072
    %v3507 = vpack.c.b16 %v3080, %v3073
    %v3508 = vpack.c.b16 %v3081, %v3074
    %v3509 = vpack.c.b16 %v3082, %v3075
    %v3510 = vpack.c.b16 %v3090, %v3083
    %v3511 = vpack.c.b16 %v3091, %v3084
    %v3512 = vpack.c.b16 %v3092, %v3085
    %v3513 = vpack.c.b16 %v3093, %v3086
    %v3514 = vpack.c.b16 %v3094, %v3087
    %v3515 = vpack.c.b16 %v3095, %v3088
    %v3516 = vpack.c.b16 %v3096, %v3089
    %v3517 = vpack.c.b16 %v3104, %v3097
    %v3518 = vpack.c.b16 %v3105, %v3098
    %v3519 = vpack.c.b16 %v3106, %v3099
    %v3520 = vpack.c.b16 %v3107, %v3100
    %v3521 = vpack.c.b16 %v3108, %v3101
    %v3522 = vpack.c.b16 %v3109, %v3102
    %v3523 = vpack.c.b16 %v3110, %v3103
    %v3524 = vpack.c.b16 %v3118, %v3111
    %v3525 = vpack.c.b16 %v3119, %v3112
    %v3526 = vpack.c.b16 %v3120, %v3113
    %v3527 = vpack.c.b16 %v3121, %v3114
    %v3528 = vpack.c.b16 %v3122, %v3115
    %v3529 = vpack.c.b16 %v3123, %v3116
    %v3530 = vpack.c.b16 %v3124, %v3117
    %v3531 = vpack.c.b16 %v3132, %v3125
    %v3532 = vpack.c.b16 %v3133, %v3126
    %v3533 = vpack.c.b16 %v3134, %v3127
    %v3534 = vpack.c.b16 %v3135, %v3128
    %v3535 = vpack.c.b16 %v3136, %v3129
    %v3536 = vpack.c.b16 %v3137, %v3130
    %v3537 = vpack.c.b16 %v3138, %v3131
    %v3538 = vpack.c.b16 %v3146, %v3139
    %v3539 = vpack.c.b16 %v3147, %v3140
    %v3540 = vpack.c.b16 %v3148, %v3141
    %v3541 = vpack.c.b16 %v3149, %v3142
    %v3542 = vpack.c.b16 %v3150, %v3143
    %v3543 = vpack.c.b16 %v3151, %v3144
    %v3544 = vpack.c.b16 %v3152, %v3145
    %v3545 = vpack.c.b16 %v3160, %v3153
    %v3546 = vpack.c.b16 %v3161, %v3154
    %v3547 = vpack.c.b16 %v3162, %v3155
    %v3548 = vpack.c.b16 %v3163, %v3156
    %v3549 = vpack.c.b16 %v3164, %v3157
    %v3550 = vpack.c.b16 %v3165, %v3158
    %v3551 = vpack.c.b16 %v3166, %v3159
    %v3552 = vpack.c.b16 %v3174, %v3167
    %v3553 = vpack.c.b16 %v3175, %v3168
    %v3554 = vpack.c.b16 %v3176, %v3169
    %v3555 = vpack.c.b16 %v3177, %v3170
    %v3556 = vpack.c.b16 %v3178, %v3171
    %v3557 = vpack.c.b16 %v3179, %v3172
    %v3558 = vpack.c.b16 %v3180, %v3173
    %v3559 = vpack.c.b16 %v3188, %v3181
    %v3560 = vpack.c.b16 %v3189, %v3182
    %v3561 = vpack.c.b16 %v3190, %v3183
    %v3562 = vpack.c.b16 %v3191, %v3184
    %v3563 = vpack.c.b16 %v3192, %v3185
    %v3564 = vpack.c.b16 %v3193, %v3186
    %v3565 = vpack.c.b16 %v3194, %v3187
    %v3566 = vpack.c.b16 %v3202, %v3195
    %v3567 = vpack.c.b16 %v3203, %v3196
    %v3568 = vpack.c.b16 %v3204, %v3197
    %v3569 = vpack.c.b16 %v3205, %v3198
    %v3570 = vpack.c.b16 %v3206, %v3199
    %v3571 = vpack.c.b16 %v3207, %v3200
    %v3572 = vpack.c.b16 %v3208, %v3201
    %v3573 = vpack.c.b16 %v3216, %v3209
    %v3574 = vpack.c.b16 %v3217, %v3210
    %v3575 = vpack.c.b16 %v3218, %v3211
    %v3576 = vpack.c.b16 %v3219, %v3212
    %v3577 = vpack.c.b16 %v3220, %v3213
    %v3578 = vpack.c.b16 %v3221, %v3214
    %v3579 = vpack.c.b16 %v3222, %v3215
    %v3580 = vpack.c.b16 %v3230, %v3223
    %v3581 = vpack.c.b16 %v3231, %v3224
    %v3582 = vpack.c.b16 %v3232, %v3225
    %v3583 = vpack.c.b16 %v3233, %v3226
    %v3584 = vpack.c.b16 %v3234, %v3227
    %v3585 = vpack.c.b16 %v3235, %v3228
    %v3586 = vpack.c.b16 %v3236, %v3229
    %v3587 = vpack.c.b16 %v3244, %v3237
    %v3588 = vpack.c.b16 %v3245, %v3238
    %v3589 = vpack.c.b16 %v3246, %v3239
    %v3590 = vpack.c.b16 %v3247, %v3240
    %v3591 = vpack.c.b16 %v3248, %v3241
    %v3592 = vpack.c.b16 %v3249, %v3242
    %v3593 = vpack.c.b16 %v3250, %v3243
    %v3931 = vsel %vm1524, %v1780, 0
    %vm3933 = vcmask 1045504
    %v3935 = vsel %vm3933, %v3587, 0
    %v3938 = vsel %vm3933, %v3588, 0
    %v3941 = vsel %vm3933, %v3589, 0
    %v3944 = vsel %vm3933, %v3590, 0
    %v3947 = vsel %vm3933, %v3591, 0
    %v3950 = vsel %vm3933, %v3592, 0
    %v3953 = vsel %vm3933, %v3593, 0
    %3955 = vmatprep.subr.bf16.mxu0 %v3252
    %3956 = vmatpush1.bf16.msra.mxu0 %v3251
    %3957 = vmatprep.subr.bf16.mxu0 %v3259
    %3958 = vmatpush1.bf16.msra.mxu0 %v3258
    %3959 = vmatprep.subr.bf16.mxu0 %v3266
    %3960 = vmatpush1.bf16.msra.mxu0 %v3265
    %3961 = vmatprep.subr.bf16.mxu0 %v3273
    %3962 = vmatpush1.bf16.msra.mxu0 %v3272
    %3963 = vmatprep.subr.bf16.mxu0 %v3280
    %3964 = vmatpush1.bf16.msra.mxu0 %v3279
    %3965 = vmatprep.subr.bf16.mxu0 %v3287
    %3966 = vmatpush1.bf16.msra.mxu0 %v3286
    %3967 = vmatprep.subr.bf16.mxu0 %v3294
    %3968 = vmatpush1.bf16.msra.mxu0 %v3293
    %3969 = vmatprep.subr.bf16.mxu0 %v3301
    %3970 = vmatpush1.bf16.msra.mxu0 %v3300
    %3971 = vmatprep.subr.bf16.mxu0 %v3308
    %3972 = vmatpush1.bf16.msra.mxu0 %v3307
    %3973 = vmatprep.subr.bf16.mxu0 %v3315
    %3974 = vmatpush1.bf16.msra.mxu0 %v3314
    %3975 = vmatprep.subr.bf16.mxu0 %v3322
    %3976 = vmatpush1.bf16.msra.mxu0 %v3321
    %3977 = vmatprep.subr.bf16.mxu0 %v3329
    %3978 = vmatpush1.bf16.msra.mxu0 %v3328
    %3979 = vmatprep.subr.bf16.mxu0 %v3336
    %3980 = vmatpush1.bf16.msra.mxu0 %v3335
    %3981 = vmatprep.subr.bf16.mxu0 %v3343
    %3982 = vmatpush1.bf16.msra.mxu0 %v3342
    %3983 = vmatprep.subr.bf16.mxu0 %v3350
    %3984 = vmatpush1.bf16.msra.mxu0 %v3349
    %3985 = vmatprep.subr.bf16.mxu0 %v3357
    %3986 = vmatpush1.bf16.msra.mxu0 %v3356
    %3987 = vmatprep.mubr.bf16.mxu0 %v1775
    %3988 = vmatmul.mubr.bf16.gmra.mrb[0].mxu0 %v1774
    %v3989 = vpop.f32.mrb[0].mxu0
    %v3990 = vadd.f32 0.0, %v3989
    %v3991 = vpop.f32.mrb[0].mxu0
    %v3992 = vadd.f32 0.0, %v3991
    %v3993 = vpop.f32.mrb[0].mxu0
    %v3994 = vpop.f32.mrb[0].mxu0
    %3995 = vdwg.mxu0
    %3996 = vmatprep.subr.bf16.mxu0 %v3364
    %3997 = vmatpush1.bf16.msra.mxu0 %v3363
    %3998 = vmatprep.subr.bf16.mxu0 %v3371
    %3999 = vmatpush1.bf16.msra.mxu0 %v3370
    %4000 = vmatprep.subr.bf16.mxu0 %v3378
    %4001 = vmatpush1.bf16.msra.mxu0 %v3377
    %4002 = vmatprep.subr.bf16.mxu0 %v3385
    %4003 = vmatpush1.bf16.msra.mxu0 %v3384
    %4004 = vmatprep.subr.bf16.mxu0 %v3392
    %4005 = vmatpush1.bf16.msra.mxu0 %v3391
    %4006 = vmatprep.subr.bf16.mxu0 %v3399
    %4007 = vmatpush1.bf16.msra.mxu0 %v3398
    %4008 = vmatprep.subr.bf16.mxu0 %v3406
    %4009 = vmatpush1.bf16.msra.mxu0 %v3405
    %4010 = vmatprep.subr.bf16.mxu0 %v3413
    %4011 = vmatpush1.bf16.msra.mxu0 %v3412
    %4012 = vmatprep.subr.bf16.mxu0 %v3420
    %4013 = vmatpush1.bf16.msra.mxu0 %v3419
    %4014 = vmatprep.subr.bf16.mxu0 %v3427
    %4015 = vmatpush1.bf16.msra.mxu0 %v3426
    %4016 = vmatprep.subr.bf16.mxu0 %v3434
    %4017 = vmatpush1.bf16.msra.mxu0 %v3433
    %4018 = vmatprep.subr.bf16.mxu0 %v3441
    %4019 = vmatpush1.bf16.msra.mxu0 %v3440
    %4020 = vmatprep.subr.bf16.mxu0 %v3448
    %4021 = vmatpush1.bf16.msra.mxu0 %v3447
    %4022 = vmatprep.subr.bf16.mxu0 %v3455
    %4023 = vmatpush1.bf16.msra.mxu0 %v3454
    %4024 = vmatprep.subr.bf16.mxu0 %v3462
    %4025 = vmatpush1.bf16.msra.mxu0 %v3461
    %4026 = vmatprep.subr.bf16.mxu0 %v3469
    %4027 = vmatpush1.bf16.msra.mxu0 %v3468
    %4028 = vmatprep.mubr.bf16.mxu0 %v1777
    %4029 = vmatmul.mubr.bf16.gmra.mrb[0].mxu0 %v1776
    %v4030 = vpop.f32.mrb[0].mxu0
    %v4031 = vadd.f32 %v3990, %v4030
    %v4032 = vpop.f32.mrb[0].mxu0
    %v4033 = vadd.f32 %v3992, %v4032
    %v4034 = vpop.f32.mrb[0].mxu0
    %v4035 = vpop.f32.mrb[0].mxu0
    %4036 = vdwg.mxu0
    %4037 = vmatprep.subr.bf16.mxu0 %v3476
    %4038 = vmatpush1.bf16.msra.mxu0 %v3475
    %4039 = vmatprep.subr.bf16.mxu0 %v3483
    %4040 = vmatpush1.bf16.msra.mxu0 %v3482
    %4041 = vmatprep.subr.bf16.mxu0 %v3490
    %4042 = vmatpush1.bf16.msra.mxu0 %v3489
    %4043 = vmatprep.subr.bf16.mxu0 %v3497
    %4044 = vmatpush1.bf16.msra.mxu0 %v3496
    %4045 = vmatprep.subr.bf16.mxu0 %v3504
    %4046 = vmatpush1.bf16.msra.mxu0 %v3503
    %4047 = vmatprep.subr.bf16.mxu0 %v3511
    %4048 = vmatpush1.bf16.msra.mxu0 %v3510
    %4049 = vmatprep.subr.bf16.mxu0 %v3518
    %4050 = vmatpush1.bf16.msra.mxu0 %v3517
    %4051 = vmatprep.subr.bf16.mxu0 %v3525
    %4052 = vmatpush1.bf16.msra.mxu0 %v3524
    %4053 = vmatprep.subr.bf16.mxu0 %v3532
    %4054 = vmatpush1.bf16.msra.mxu0 %v3531
    %4055 = vmatprep.subr.bf16.mxu0 %v3539
    %4056 = vmatpush1.bf16.msra.mxu0 %v3538
    %4057 = vmatprep.subr.bf16.mxu0 %v3546
    %4058 = vmatpush1.bf16.msra.mxu0 %v3545
    %4059 = vmatprep.subr.bf16.mxu0 %v3553
    %4060 = vmatpush1.bf16.msra.mxu0 %v3552
    %4061 = vmatprep.subr.bf16.mxu0 %v3560
    %4062 = vmatpush1.bf16.msra.mxu0 %v3559
    %4063 = vmatprep.subr.bf16.mxu0 %v3567
    %4064 = vmatpush1.bf16.msra.mxu0 %v3566
    %4065 = vmatprep.subr.bf16.mxu0 %v3574
    %4066 = vmatpush1.bf16.msra.mxu0 %v3573
    %4067 = vmatprep.subr.bf16.mxu0 %v3581
    %4068 = vmatpush1.bf16.msra.mxu0 %v3580
    %4069 = vmatprep.mubr.bf16.mxu0 %v1779
    %4070 = vmatmul.mubr.bf16.gmra.mrb[0].mxu0 %v1778
    %v4071 = vpop.f32.mrb[0].mxu0
    %v4072 = vadd.f32 %v4031, %v4071
    %v4073 = vpop.f32.mrb[0].mxu0
    %v4074 = vadd.f32 %v4033, %v4073
    %v4075 = vpop.f32.mrb[0].mxu0
    %v4076 = vpop.f32.mrb[0].mxu0
    %4077 = vdwg.mxu0
    %4078 = vmatprep.subr.bf16.mxu0 %v3938
    %4079 = vmatpush1.bf16.msra.mxu0 %v3935
    %4080 = vmatprep.subr.bf16.mxu0 0
    %4081 = vmatpush1.bf16.msra.mxu0 0
    %4082 = vmatprep.subr.bf16.mxu0 0
    %4083 = vmatpush1.bf16.msra.mxu0 0
    %4084 = vmatprep.subr.bf16.mxu0 0
    %4085 = vmatpush1.bf16.msra.mxu0 0
    %4086 = vmatprep.subr.bf16.mxu0 0
    %4087 = vmatpush1.bf16.msra.mxu0 0
    %4088 = vmatprep.subr.bf16.mxu0 0
    %4089 = vmatpush1.bf16.msra.mxu0 0
    %4090 = vmatprep.subr.bf16.mxu0 0
    %4091 = vmatpush1.bf16.msra.mxu0 0
    %4092 = vmatprep.subr.bf16.mxu0 0
    %4093 = vmatpush1.bf16.msra.mxu0 0
    %4094 = vmatprep.subr.bf16.mxu0 0
    %4095 = vmatpush1.bf16.msra.mxu0 0
    %4096 = vmatprep.subr.bf16.mxu0 0
    %4097 = vmatpush1.bf16.msra.mxu0 0
    %4098 = vmatprep.subr.bf16.mxu0 0
    %4099 = vmatpush1.bf16.msra.mxu0 0
    %4100 = vmatprep.subr.bf16.mxu0 0
    %4101 = vmatpush1.bf16.msra.mxu0 0
    %4102 = vmatprep.subr.bf16.mxu0 0
    %4103 = vmatpush1.bf16.msra.mxu0 0
    %4104 = vmatprep.subr.bf16.mxu0 0
    %4105 = vmatpush1.bf16.msra.mxu0 0
    %4106 = vmatprep.subr.bf16.mxu0 0
    %4107 = vmatpush1.bf16.msra.mxu0 0
    %4108 = vmatprep.subr.bf16.mxu0 0
    %4109 = vmatpush1.bf16.msra.mxu0 0
    %4110 = vmatprep.mubr.bf16.mxu0 0
    %4111 = vmatmul.mubr.bf16.gmra.mrb[0].mxu0 %v3931
    %v4112 = vpop.f32.mrb[0].mxu0
    %v4113 = vadd.f32 %v4072, %v4112
    %v4114 = vpop.f32.mrb[0].mxu0
    %v4115 = vadd.f32 %v4074, %v4114
    %v4116 = vpop.f32.mrb[0].mxu0
    %v4117 = vpop.f32.mrb[0].mxu0
    %4118 = vdwg.mxu0
    %4119 = vmatprep.subr.bf16.mxu0 %v3254
    %4120 = vmatpush1.bf16.msra.mxu0 %v3253
    %4121 = vmatprep.subr.bf16.mxu0 %v3261
    %4122 = vmatpush1.bf16.msra.mxu0 %v3260
    %4123 = vmatprep.subr.bf16.mxu0 %v3268
    %4124 = vmatpush1.bf16.msra.mxu0 %v3267
    %4125 = vmatprep.subr.bf16.mxu0 %v3275
    %4126 = vmatpush1.bf16.msra.mxu0 %v3274
    %4127 = vmatprep.subr.bf16.mxu0 %v3282
    %4128 = vmatpush1.bf16.msra.mxu0 %v3281
    %4129 = vmatprep.subr.bf16.mxu0 %v3289
    %4130 = vmatpush1.bf16.msra.mxu0 %v3288
    %4131 = vmatprep.subr.bf16.mxu0 %v3296
    %4132 = vmatpush1.bf16.msra.mxu0 %v3295
    %4133 = vmatprep.subr.bf16.mxu0 %v3303
    %4134 = vmatpush1.bf16.msra.mxu0 %v3302
    %4135 = vmatprep.subr.bf16.mxu0 %v3310
    %4136 = vmatpush1.bf16.msra.mxu0 %v3309
    %4137 = vmatprep.subr.bf16.mxu0 %v3317
    %4138 = vmatpush1.bf16.msra.mxu0 %v3316
    %4139 = vmatprep.subr.bf16.mxu0 %v3324
    %4140 = vmatpush1.bf16.msra.mxu0 %v3323
    %4141 = vmatprep.subr.bf16.mxu0 %v3331
    %4142 = vmatpush1.bf16.msra.mxu0 %v3330
    %4143 = vmatprep.subr.bf16.mxu0 %v3338
    %4144 = vmatpush1.bf16.msra.mxu0 %v3337
    %4145 = vmatprep.subr.bf16.mxu0 %v3345
    %4146 = vmatpush1.bf16.msra.mxu0 %v3344
    %4147 = vmatprep.subr.bf16.mxu0 %v3352
    %4148 = vmatpush1.bf16.msra.mxu0 %v3351
    %4149 = vmatprep.subr.bf16.mxu0 %v3359
    %4150 = vmatpush1.bf16.msra.mxu0 %v3358
    %4151 = vmatprep.mubr.bf16.mxu0 %v1775
    %4152 = vmatmul.mubr.bf16.gmra.mrb[0].mxu0 %v1774
    %v4153 = vpop.f32.mrb[0].mxu0
    %v4154 = vadd.f32 0.0, %v4153
    %v4155 = vpop.f32.mrb[0].mxu0
    %v4156 = vadd.f32 0.0, %v4155
    %v4157 = vpop.f32.mrb[0].mxu0
    %v4158 = vpop.f32.mrb[0].mxu0
    %4159 = vdwg.mxu0
    %4160 = vmatprep.subr.bf16.mxu0 %v3366
    %4161 = vmatpush1.bf16.msra.mxu0 %v3365
    %4162 = vmatprep.subr.bf16.mxu0 %v3373
    %4163 = vmatpush1.bf16.msra.mxu0 %v3372
    %4164 = vmatprep.subr.bf16.mxu0 %v3380
    %4165 = vmatpush1.bf16.msra.mxu0 %v3379
    %4166 = vmatprep.subr.bf16.mxu0 %v3387
    %4167 = vmatpush1.bf16.msra.mxu0 %v3386
    %4168 = vmatprep.subr.bf16.mxu0 %v3394
    %4169 = vmatpush1.bf16.msra.mxu0 %v3393
    %4170 = vmatprep.subr.bf16.mxu0 %v3401
    %4171 = vmatpush1.bf16.msra.mxu0 %v3400
    %4172 = vmatprep.subr.bf16.mxu0 %v3408
    %4173 = vmatpush1.bf16.msra.mxu0 %v3407
    %4174 = vmatprep.subr.bf16.mxu0 %v3415
    %4175 = vmatpush1.bf16.msra.mxu0 %v3414
    %4176 = vmatprep.subr.bf16.mxu0 %v3422
    %4177 = vmatpush1.bf16.msra.mxu0 %v3421
    %4178 = vmatprep.subr.bf16.mxu0 %v3429
    %4179 = vmatpush1.bf16.msra.mxu0 %v3428
    %4180 = vmatprep.subr.bf16.mxu0 %v3436
    %4181 = vmatpush1.bf16.msra.mxu0 %v3435
    %4182 = vmatprep.subr.bf16.mxu0 %v3443
    %4183 = vmatpush1.bf16.msra.mxu0 %v3442
    %4184 = vmatprep.subr.bf16.mxu0 %v3450
    %4185 = vmatpush1.bf16.msra.mxu0 %v3449
    %4186 = vmatprep.subr.bf16.mxu0 %v3457
    %4187 = vmatpush1.bf16.msra.mxu0 %v3456
    %4188 = vmatprep.subr.bf16.mxu0 %v3464
    %4189 = vmatpush1.bf16.msra.mxu0 %v3463
    %4190 = vmatprep.subr.bf16.mxu0 %v3471
    %4191 = vmatpush1.bf16.msra.mxu0 %v3470
    %4192 = vmatprep.mubr.bf16.mxu0 %v1777
    %4193 = vmatmul.mubr.bf16.gmra.mrb[0].mxu0 %v1776
    %v4194 = vpop.f32.mrb[0].mxu0
    %v4195 = vadd.f32 %v4154, %v4194
    %v4196 = vpop.f32.mrb[0].mxu0
    %v4197 = vadd.f32 %v4156, %v4196
    %v4198 = vpop.f32.mrb[0].mxu0
    %v4199 = vpop.f32.mrb[0].mxu0
    %4200 = vdwg.mxu0
    %4201 = vmatprep.subr.bf16.mxu0 %v3478
    %4202 = vmatpush1.bf16.msra.mxu0 %v3477
    %4203 = vmatprep.subr.bf16.mxu0 %v3485
    %4204 = vmatpush1.bf16.msra.mxu0 %v3484
    %4205 = vmatprep.subr.bf16.mxu0 %v3492
    %4206 = vmatpush1.bf16.msra.mxu0 %v3491
    %4207 = vmatprep.subr.bf16.mxu0 %v3499
    %4208 = vmatpush1.bf16.msra.mxu0 %v3498
    %4209 = vmatprep.subr.bf16.mxu0 %v3506
    %4210 = vmatpush1.bf16.msra.mxu0 %v3505
    %4211 = vmatprep.subr.bf16.mxu0 %v3513
    %4212 = vmatpush1.bf16.msra.mxu0 %v3512
    %4213 = vmatprep.subr.bf16.mxu0 %v3520
    %4214 = vmatpush1.bf16.msra.mxu0 %v3519
    %4215 = vmatprep.subr.bf16.mxu0 %v3527
    %4216 = vmatpush1.bf16.msra.mxu0 %v3526
    %4217 = vmatprep.subr.bf16.mxu0 %v3534
    %4218 = vmatpush1.bf16.msra.mxu0 %v3533
    %4219 = vmatprep.subr.bf16.mxu0 %v3541
    %4220 = vmatpush1.bf16.msra.mxu0 %v3540
    %4221 = vmatprep.subr.bf16.mxu0 %v3548
    %4222 = vmatpush1.bf16.msra.mxu0 %v3547
    %4223 = vmatprep.subr.bf16.mxu0 %v3555
    %4224 = vmatpush1.bf16.msra.mxu0 %v3554
    %4225 = vmatprep.subr.bf16.mxu0 %v3562
    %4226 = vmatpush1.bf16.msra.mxu0 %v3561
    %4227 = vmatprep.subr.bf16.mxu0 %v3569
    %4228 = vmatpush1.bf16.msra.mxu0 %v3568
    %4229 = vmatprep.subr.bf16.mxu0 %v3576
    %4230 = vmatpush1.bf16.msra.mxu0 %v3575
    %4231 = vmatprep.subr.bf16.mxu0 %v3583
    %4232 = vmatpush1.bf16.msra.mxu0 %v3582
    %4233 = vmatprep.mubr.bf16.mxu0 %v1779
    %4234 = vmatmul.mubr.bf16.gmra.mrb[0].mxu0 %v1778
    %v4235 = vpop.f32.mrb[0].mxu0
    %v4236 = vadd.f32 %v4195, %v4235
    %v4237 = vpop.f32.mrb[0].mxu0
    %v4238 = vadd.f32 %v4197, %v4237
    %v4239 = vpop.f32.mrb[0].mxu0
    %v4240 = vpop.f32.mrb[0].mxu0
    %4241 = vdwg.mxu0
    %4242 = vmatprep.subr.bf16.mxu0 %v3944
    %4243 = vmatpush1.bf16.msra.mxu0 %v3941
    %4244 = vmatprep.subr.bf16.mxu0 0
    %4245 = vmatpush1.bf16.msra.mxu0 0
    %4246 = vmatprep.subr.bf16.mxu0 0
    %4247 = vmatpush1.bf16.msra.mxu0 0
    %4248 = vmatprep.subr.bf16.mxu0 0
    %4249 = vmatpush1.bf16.msra.mxu0 0
    %4250 = vmatprep.subr.bf16.mxu0 0
    %4251 = vmatpush1.bf16.msra.mxu0 0
    %4252 = vmatprep.subr.bf16.mxu0 0
    %4253 = vmatpush1.bf16.msra.mxu0 0
    %4254 = vmatprep.subr.bf16.mxu0 0
    %4255 = vmatpush1.bf16.msra.mxu0 0
    %4256 = vmatprep.subr.bf16.mxu0 0
    %4257 = vmatpush1.bf16.msra.mxu0 0
    %4258 = vmatprep.subr.bf16.mxu0 0
    %4259 = vmatpush1.bf16.msra.mxu0 0
    %4260 = vmatprep.subr.bf16.mxu0 0
    %4261 = vmatpush1.bf16.msra.mxu0 0
    %4262 = vmatprep.subr.bf16.mxu0 0
    %4263 = vmatpush1.bf16.msra.mxu0 0
    %4264 = vmatprep.subr.bf16.mxu0 0
    %4265 = vmatpush1.bf16.msra.mxu0 0
    %4266 = vmatprep.subr.bf16.mxu0 0
    %4267 = vmatpush1.bf16.msra.mxu0 0
    %4268 = vmatprep.subr.bf16.mxu0 0
    %4269 = vmatpush1.bf16.msra.mxu0 0
    %4270 = vmatprep.subr.bf16.mxu0 0
    %4271 = vmatpush1.bf16.msra.mxu0 0
    %4272 = vmatprep.subr.bf16.mxu0 0
    %4273 = vmatpush1.bf16.msra.mxu0 0
    %4274 = vmatprep.mubr.bf16.mxu0 0
    %4275 = vmatmul.mubr.bf16.gmra.mrb[0].mxu0 %v3931
    %v4276 = vpop.f32.mrb[0].mxu0
    %v4277 = vadd.f32 %v4236, %v4276
    %v4278 = vpop.f32.mrb[0].mxu0
    %v4279 = vadd.f32 %v4238, %v4278
    %v4280 = vpop.f32.mrb[0].mxu0
    %v4281 = vpop.f32.mrb[0].mxu0
    %4282 = vdwg.mxu0
    %4283 = vmatprep.subr.bf16.mxu0 %v3256
    %4284 = vmatpush1.bf16.msra.mxu0 %v3255
    %4285 = vmatprep.subr.bf16.mxu0 %v3263
    %4286 = vmatpush1.bf16.msra.mxu0 %v3262
    %4287 = vmatprep.subr.bf16.mxu0 %v3270
    %4288 = vmatpush1.bf16.msra.mxu0 %v3269
    %4289 = vmatprep.subr.bf16.mxu0 %v3277
    %4290 = vmatpush1.bf16.msra.mxu0 %v3276
    %4291 = vmatprep.subr.bf16.mxu0 %v3284
    %4292 = vmatpush1.bf16.msra.mxu0 %v3283
    %4293 = vmatprep.subr.bf16.mxu0 %v3291
    %4294 = vmatpush1.bf16.msra.mxu0 %v3290
    %4295 = vmatprep.subr.bf16.mxu0 %v3298
    %4296 = vmatpush1.bf16.msra.mxu0 %v3297
    %4297 = vmatprep.subr.bf16.mxu0 %v3305
    %4298 = vmatpush1.bf16.msra.mxu0 %v3304
    %4299 = vmatprep.subr.bf16.mxu0 %v3312
    %4300 = vmatpush1.bf16.msra.mxu0 %v3311
    %4301 = vmatprep.subr.bf16.mxu0 %v3319
    %4302 = vmatpush1.bf16.msra.mxu0 %v3318
    %4303 = vmatprep.subr.bf16.mxu0 %v3326
    %4304 = vmatpush1.bf16.msra.mxu0 %v3325
    %4305 = vmatprep.subr.bf16.mxu0 %v3333
    %4306 = vmatpush1.bf16.msra.mxu0 %v3332
    %4307 = vmatprep.subr.bf16.mxu0 %v3340
    %4308 = vmatpush1.bf16.msra.mxu0 %v3339
    %4309 = vmatprep.subr.bf16.mxu0 %v3347
    %4310 = vmatpush1.bf16.msra.mxu0 %v3346
    %4311 = vmatprep.subr.bf16.mxu0 %v3354
    %4312 = vmatpush1.bf16.msra.mxu0 %v3353
    %4313 = vmatprep.subr.bf16.mxu0 %v3361
    %4314 = vmatpush1.bf16.msra.mxu0 %v3360
    %4315 = vmatprep.mubr.bf16.mxu0 %v1775
    %4316 = vmatmul.mubr.bf16.gmra.mrb[0].mxu0 %v1774
    %v4317 = vpop.f32.mrb[0].mxu0
    %v4318 = vadd.f32 0.0, %v4317
    %v4319 = vpop.f32.mrb[0].mxu0
    %v4320 = vadd.f32 0.0, %v4319
    %v4321 = vpop.f32.mrb[0].mxu0
    %v4322 = vpop.f32.mrb[0].mxu0
    %4323 = vdwg.mxu0
    %4324 = vmatprep.subr.bf16.mxu0 %v3368
    %4325 = vmatpush1.bf16.msra.mxu0 %v3367
    %4326 = vmatprep.subr.bf16.mxu0 %v3375
    %4327 = vmatpush1.bf16.msra.mxu0 %v3374
    %4328 = vmatprep.subr.bf16.mxu0 %v3382
    %4329 = vmatpush1.bf16.msra.mxu0 %v3381
    %4330 = vmatprep.subr.bf16.mxu0 %v3389
    %4331 = vmatpush1.bf16.msra.mxu0 %v3388
    %4332 = vmatprep.subr.bf16.mxu0 %v3396
    %4333 = vmatpush1.bf16.msra.mxu0 %v3395
    %4334 = vmatprep.subr.bf16.mxu0 %v3403
    %4335 = vmatpush1.bf16.msra.mxu0 %v3402
    %4336 = vmatprep.subr.bf16.mxu0 %v3410
    %4337 = vmatpush1.bf16.msra.mxu0 %v3409
    %4338 = vmatprep.subr.bf16.mxu0 %v3417
    %4339 = vmatpush1.bf16.msra.mxu0 %v3416
    %4340 = vmatprep.subr.bf16.mxu0 %v3424
    %4341 = vmatpush1.bf16.msra.mxu0 %v3423
    %4342 = vmatprep.subr.bf16.mxu0 %v3431
    %4343 = vmatpush1.bf16.msra.mxu0 %v3430
    %4344 = vmatprep.subr.bf16.mxu0 %v3438
    %4345 = vmatpush1.bf16.msra.mxu0 %v3437
    %4346 = vmatprep.subr.bf16.mxu0 %v3445
    %4347 = vmatpush1.bf16.msra.mxu0 %v3444
    %4348 = vmatprep.subr.bf16.mxu0 %v3452
    %4349 = vmatpush1.bf16.msra.mxu0 %v3451
    %4350 = vmatprep.subr.bf16.mxu0 %v3459
    %4351 = vmatpush1.bf16.msra.mxu0 %v3458
    %4352 = vmatprep.subr.bf16.mxu0 %v3466
    %4353 = vmatpush1.bf16.msra.mxu0 %v3465
    %4354 = vmatprep.subr.bf16.mxu0 %v3473
    %4355 = vmatpush1.bf16.msra.mxu0 %v3472
    %4356 = vmatprep.mubr.bf16.mxu0 %v1777
    %4357 = vmatmul.mubr.bf16.gmra.mrb[0].mxu0 %v1776
    %v4358 = vpop.f32.mrb[0].mxu0
    %v4359 = vadd.f32 %v4318, %v4358
    %v4360 = vpop.f32.mrb[0].mxu0
    %v4361 = vadd.f32 %v4320, %v4360
    %v4362 = vpop.f32.mrb[0].mxu0
    %v4363 = vpop.f32.mrb[0].mxu0
    %4364 = vdwg.mxu0
    %4365 = vmatprep.subr.bf16.mxu0 %v3480
    %4366 = vmatpush1.bf16.msra.mxu0 %v3479
    %4367 = vmatprep.subr.bf16.mxu0 %v3487
    %4368 = vmatpush1.bf16.msra.mxu0 %v3486
    %4369 = vmatprep.subr.bf16.mxu0 %v3494
    %4370 = vmatpush1.bf16.msra.mxu0 %v3493
    %4371 = vmatprep.subr.bf16.mxu0 %v3501
    %4372 = vmatpush1.bf16.msra.mxu0 %v3500
    %4373 = vmatprep.subr.bf16.mxu0 %v3508
    %4374 = vmatpush1.bf16.msra.mxu0 %v3507
    %4375 = vmatprep.subr.bf16.mxu0 %v3515
    %4376 = vmatpush1.bf16.msra.mxu0 %v3514
    %4377 = vmatprep.subr.bf16.mxu0 %v3522
    %4378 = vmatpush1.bf16.msra.mxu0 %v3521
    %4379 = vmatprep.subr.bf16.mxu0 %v3529
    %4380 = vmatpush1.bf16.msra.mxu0 %v3528
    %4381 = vmatprep.subr.bf16.mxu0 %v3536
    %4382 = vmatpush1.bf16.msra.mxu0 %v3535
    %4383 = vmatprep.subr.bf16.mxu0 %v3543
    %4384 = vmatpush1.bf16.msra.mxu0 %v3542
    %4385 = vmatprep.subr.bf16.mxu0 %v3550
    %4386 = vmatpush1.bf16.msra.mxu0 %v3549
    %4387 = vmatprep.subr.bf16.mxu0 %v3557
    %4388 = vmatpush1.bf16.msra.mxu0 %v3556
    %4389 = vmatprep.subr.bf16.mxu0 %v3564
    %4390 = vmatpush1.bf16.msra.mxu0 %v3563
    %4391 = vmatprep.subr.bf16.mxu0 %v3571
    %4392 = vmatpush1.bf16.msra.mxu0 %v3570
    %4393 = vmatprep.subr.bf16.mxu0 %v3578
    %4394 = vmatpush1.bf16.msra.mxu0 %v3577
    %4395 = vmatprep.subr.bf16.mxu0 %v3585
    %4396 = vmatpush1.bf16.msra.mxu0 %v3584
    %4397 = vmatprep.mubr.bf16.mxu0 %v1779
    %4398 = vmatmul.mubr.bf16.gmra.mrb[0].mxu0 %v1778
    %v4399 = vpop.f32.mrb[0].mxu0
    %v4400 = vadd.f32 %v4359, %v4399
    %v4401 = vpop.f32.mrb[0].mxu0
    %v4402 = vadd.f32 %v4361, %v4401
    %v4403 = vpop.f32.mrb[0].mxu0
    %v4404 = vpop.f32.mrb[0].mxu0
    %4405 = vdwg.mxu0
    %4406 = vmatprep.subr.bf16.mxu0 %v3950
    %4407 = vmatpush1.bf16.msra.mxu0 %v3947
    %4408 = vmatprep.subr.bf16.mxu0 0
    %4409 = vmatpush1.bf16.msra.mxu0 0
    %4410 = vmatprep.subr.bf16.mxu0 0
    %4411 = vmatpush1.bf16.msra.mxu0 0
    %4412 = vmatprep.subr.bf16.mxu0 0
    %4413 = vmatpush1.bf16.msra.mxu0 0
    %4414 = vmatprep.subr.bf16.mxu0 0
    %4415 = vmatpush1.bf16.msra.mxu0 0
    %4416 = vmatprep.subr.bf16.mxu0 0
    %4417 = vmatpush1.bf16.msra.mxu0 0
    %4418 = vmatprep.subr.bf16.mxu0 0
    %4419 = vmatpush1.bf16.msra.mxu0 0
    %4420 = vmatprep.subr.bf16.mxu0 0
    %4421 = vmatpush1.bf16.msra.mxu0 0
    %4422 = vmatprep.subr.bf16.mxu0 0
    %4423 = vmatpush1.bf16.msra.mxu0 0
    %4424 = vmatprep.subr.bf16.mxu0 0
    %4425 = vmatpush1.bf16.msra.mxu0 0
    %4426 = vmatprep.subr.bf16.mxu0 0
    %4427 = vmatpush1.bf16.msra.mxu0 0
    %4428 = vmatprep.subr.bf16.mxu0 0
    %4429 = vmatpush1.bf16.msra.mxu0 0
    %4430 = vmatprep.subr.bf16.mxu0 0
    %4431 = vmatpush1.bf16.msra.mxu0 0
    %4432 = vmatprep.subr.bf16.mxu0 0
    %4433 = vmatpush1.bf16.msra.mxu0 0
    %4434 = vmatprep.subr.bf16.mxu0 0
    %4435 = vmatpush1.bf16.msra.mxu0 0
    %4436 = vmatprep.subr.bf16.mxu0 0
    %4437 = vmatpush1.bf16.msra.mxu0 0
    %4438 = vmatprep.mubr.bf16.mxu0 0
    %4439 = vmatmul.mubr.bf16.gmra.mrb[0].mxu0 %v3931
    %v4440 = vpop.f32.mrb[0].mxu0
    %v4441 = vadd.f32 %v4400, %v4440
    %v4442 = vpop.f32.mrb[0].mxu0
    %v4443 = vadd.f32 %v4402, %v4442
    %v4444 = vpop.f32.mrb[0].mxu0
    %v4445 = vpop.f32.mrb[0].mxu0
    %4446 = vdwg.mxu0
    %4447 = vmatprep.subr.bf16.mxu0 0
    %4448 = vmatpush1.bf16.msra.mxu0 %v3257
    %4449 = vmatprep.subr.bf16.mxu0 0
    %4450 = vmatpush1.bf16.msra.mxu0 %v3264
    %4451 = vmatprep.subr.bf16.mxu0 0
    %4452 = vmatpush1.bf16.msra.mxu0 %v3271
    %4453 = vmatprep.subr.bf16.mxu0 0
    %4454 = vmatpush1.bf16.msra.mxu0 %v3278
    %4455 = vmatprep.subr.bf16.mxu0 0
    %4456 = vmatpush1.bf16.msra.mxu0 %v3285
    %4457 = vmatprep.subr.bf16.mxu0 0
    %4458 = vmatpush1.bf16.msra.mxu0 %v3292
    %4459 = vmatprep.subr.bf16.mxu0 0
    %4460 = vmatpush1.bf16.msra.mxu0 %v3299
    %4461 = vmatprep.subr.bf16.mxu0 0
    %4462 = vmatpush1.bf16.msra.mxu0 %v3306
    %4463 = vmatprep.subr.bf16.mxu0 0
    %4464 = vmatpush1.bf16.msra.mxu0 %v3313
    %4465 = vmatprep.subr.bf16.mxu0 0
    %4466 = vmatpush1.bf16.msra.mxu0 %v3320
    %4467 = vmatprep.subr.bf16.mxu0 0
    %4468 = vmatpush1.bf16.msra.mxu0 %v3327
    %4469 = vmatprep.subr.bf16.mxu0 0
    %4470 = vmatpush1.bf16.msra.mxu0 %v3334
    %4471 = vmatprep.subr.bf16.mxu0 0
    %4472 = vmatpush1.bf16.msra.mxu0 %v3341
    %4473 = vmatprep.subr.bf16.mxu0 0
    %4474 = vmatpush1.bf16.msra.mxu0 %v3348
    %4475 = vmatprep.subr.bf16.mxu0 0
    %4476 = vmatpush1.bf16.msra.mxu0 %v3355
    %4477 = vmatprep.subr.bf16.mxu0 0
    %4478 = vmatpush1.bf16.msra.mxu0 %v3362
    %4479 = vmatprep.mubr.bf16.mxu0 %v1775
    %4480 = vmatmul.mubr.bf16.gmra.mrb[0].mxu0 %v1774
    %v4481 = vpop.f32.mrb[0].mxu0
    %v4482 = vadd.f32 0.0, %v4481
    %v4483 = vpop.f32.mrb[0].mxu0
    %v4484 = vpop.f32.mrb[0].mxu0
    %v4485 = vpop.f32.mrb[0].mxu0
    %4486 = vdwg.mxu0
    %4487 = vmatprep.subr.bf16.mxu0 0
    %4488 = vmatpush1.bf16.msra.mxu0 %v3369
    %4489 = vmatprep.subr.bf16.mxu0 0
    %4490 = vmatpush1.bf16.msra.mxu0 %v3376
    %4491 = vmatprep.subr.bf16.mxu0 0
    %4492 = vmatpush1.bf16.msra.mxu0 %v3383
    %4493 = vmatprep.subr.bf16.mxu0 0
    %4494 = vmatpush1.bf16.msra.mxu0 %v3390
    %4495 = vmatprep.subr.bf16.mxu0 0
    %4496 = vmatpush1.bf16.msra.mxu0 %v3397
    %4497 = vmatprep.subr.bf16.mxu0 0
    %4498 = vmatpush1.bf16.msra.mxu0 %v3404
    %4499 = vmatprep.subr.bf16.mxu0 0
    %4500 = vmatpush1.bf16.msra.mxu0 %v3411
    %4501 = vmatprep.subr.bf16.mxu0 0
    %4502 = vmatpush1.bf16.msra.mxu0 %v3418
    %4503 = vmatprep.subr.bf16.mxu0 0
    %4504 = vmatpush1.bf16.msra.mxu0 %v3425
    %4505 = vmatprep.subr.bf16.mxu0 0
    %4506 = vmatpush1.bf16.msra.mxu0 %v3432
    %4507 = vmatprep.subr.bf16.mxu0 0
    %4508 = vmatpush1.bf16.msra.mxu0 %v3439
    %4509 = vmatprep.subr.bf16.mxu0 0
    %4510 = vmatpush1.bf16.msra.mxu0 %v3446
    %4511 = vmatprep.subr.bf16.mxu0 0
    %4512 = vmatpush1.bf16.msra.mxu0 %v3453
    %4513 = vmatprep.subr.bf16.mxu0 0
    %4514 = vmatpush1.bf16.msra.mxu0 %v3460
    %4515 = vmatprep.subr.bf16.mxu0 0
    %4516 = vmatpush1.bf16.msra.mxu0 %v3467
    %4517 = vmatprep.subr.bf16.mxu0 0
    %4518 = vmatpush1.bf16.msra.mxu0 %v3474
    %4519 = vmatprep.mubr.bf16.mxu0 %v1777
    %4520 = vmatmul.mubr.bf16.gmra.mrb[0].mxu0 %v1776
    %v4521 = vpop.f32.mrb[0].mxu0
    %v4522 = vadd.f32 %v4482, %v4521
    %v4523 = vpop.f32.mrb[0].mxu0
    %v4524 = vpop.f32.mrb[0].mxu0
    %v4525 = vpop.f32.mrb[0].mxu0
    %4526 = vdwg.mxu0
    %4527 = vmatprep.subr.bf16.mxu0 0
    %4528 = vmatpush1.bf16.msra.mxu0 %v3481
    %4529 = vmatprep.subr.bf16.mxu0 0
    %4530 = vmatpush1.bf16.msra.mxu0 %v3488
    %4531 = vmatprep.subr.bf16.mxu0 0
    %4532 = vmatpush1.bf16.msra.mxu0 %v3495
    %4533 = vmatprep.subr.bf16.mxu0 0
    %4534 = vmatpush1.bf16.msra.mxu0 %v3502
    %4535 = vmatprep.subr.bf16.mxu0 0
    %4536 = vmatpush1.bf16.msra.mxu0 %v3509
    %4537 = vmatprep.subr.bf16.mxu0 0
    %4538 = vmatpush1.bf16.msra.mxu0 %v3516
    %4539 = vmatprep.subr.bf16.mxu0 0
    %4540 = vmatpush1.bf16.msra.mxu0 %v3523
    %4541 = vmatprep.subr.bf16.mxu0 0
    %4542 = vmatpush1.bf16.msra.mxu0 %v3530
    %4543 = vmatprep.subr.bf16.mxu0 0
    %4544 = vmatpush1.bf16.msra.mxu0 %v3537
    %4545 = vmatprep.subr.bf16.mxu0 0
    %4546 = vmatpush1.bf16.msra.mxu0 %v3544
    %4547 = vmatprep.subr.bf16.mxu0 0
    %4548 = vmatpush1.bf16.msra.mxu0 %v3551
    %4549 = vmatprep.subr.bf16.mxu0 0
    %4550 = vmatpush1.bf16.msra.mxu0 %v3558
    %4551 = vmatprep.subr.bf16.mxu0 0
    %4552 = vmatpush1.bf16.msra.mxu0 %v3565
    %4553 = vmatprep.subr.bf16.mxu0 0
    %4554 = vmatpush1.bf16.msra.mxu0 %v3572
    %4555 = vmatprep.subr.bf16.mxu0 0
    %4556 = vmatpush1.bf16.msra.mxu0 %v3579
    %4557 = vmatprep.subr.bf16.mxu0 0
    %4558 = vmatpush1.bf16.msra.mxu0 %v3586
    %4559 = vmatprep.mubr.bf16.mxu0 %v1779
    %4560 = vmatmul.mubr.bf16.gmra.mrb[0].mxu0 %v1778
    %v4561 = vpop.f32.mrb[0].mxu0
    %v4562 = vadd.f32 %v4522, %v4561
    %v4563 = vpop.f32.mrb[0].mxu0
    %v4564 = vpop.f32.mrb[0].mxu0
    %v4565 = vpop.f32.mrb[0].mxu0
    %4566 = vdwg.mxu0
    %4567 = vmatprep.subr.bf16.mxu0 0
    %4568 = vmatpush1.bf16.msra.mxu0 %v3953
    %4569 = vmatprep.subr.bf16.mxu0 0
    %4570 = vmatpush1.bf16.msra.mxu0 0
    %4571 = vmatprep.subr.bf16.mxu0 0
    %4572 = vmatpush1.bf16.msra.mxu0 0
    %4573 = vmatprep.subr.bf16.mxu0 0
    %4574 = vmatpush1.bf16.msra.mxu0 0
    %4575 = vmatprep.subr.bf16.mxu0 0
    %4576 = vmatpush1.bf16.msra.mxu0 0
    %4577 = vmatprep.subr.bf16.mxu0 0
    %4578 = vmatpush1.bf16.msra.mxu0 0
    %4579 = vmatprep.subr.bf16.mxu0 0
    %4580 = vmatpush1.bf16.msra.mxu0 0
    %4581 = vmatprep.subr.bf16.mxu0 0
    %4582 = vmatpush1.bf16.msra.mxu0 0
    %4583 = vmatprep.subr.bf16.mxu0 0
    %4584 = vmatpush1.bf16.msra.mxu0 0
    %4585 = vmatprep.subr.bf16.mxu0 0
    %4586 = vmatpush1.bf16.msra.mxu0 0
    %4587 = vmatprep.subr.bf16.mxu0 0
    %4588 = vmatpush1.bf16.msra.mxu0 0
    %4589 = vmatprep.subr.bf16.mxu0 0
    %4590 = vmatpush1.bf16.msra.mxu0 0
    %4591 = vmatprep.subr.bf16.mxu0 0
    %4592 = vmatpush1.bf16.msra.mxu0 0
    %4593 = vmatprep.subr.bf16.mxu0 0
    %4594 = vmatpush1.bf16.msra.mxu0 0
    %4595 = vmatprep.subr.bf16.mxu0 0
    %4596 = vmatpush1.bf16.msra.mxu0 0
    %4597 = vmatprep.subr.bf16.mxu0 0
    %4598 = vmatpush1.bf16.msra.mxu0 0
    %4599 = vmatprep.mubr.bf16.mxu0 0
    %4600 = vmatmul.mubr.bf16.gmra.mrb[0].mxu0 %v3931
    %v4601 = vpop.f32.mrb[0].mxu0
    %v4602 = vadd.f32 %v4562, %v4601
    %v4603 = vpop.f32.mrb[0].mxu0
    %v4604 = vpop.f32.mrb[0].mxu0
    %v4605 = vpop.f32.mrb[0].mxu0
    %4606 = vdwg.mxu0
    %v4607 = vld [vmem:[%s4] sm:$0xff]
    %v4608 = vld [vmem:[%s4 + $0x8] sm:$0x3f]
    %v4609 = vrot.slane %v4113, 4
    %v4610 = vadd.f32 %v4113, %v4609
    %v4611 = vrot.slane %v4610, 2
    %v4612 = vadd.f32 %v4610, %v4611
    %v4613 = vrot.slane %v4612, 1
    %v4614 = vadd.f32 %v4612, %v4613
    %v4615 = vrot.slane %v4115, 4
    %v4616 = vadd.f32 %v4115, %v4615
    %v4617 = vrot.slane %v4616, 2
    %v4618 = vadd.f32 %v4616, %v4617
    %v4619 = vrot.slane %v4618, 1
    %v4620 = vadd.f32 %v4618, %v4619
    %v4621 = vrot.slane %v4277, 4
    %v4622 = vadd.f32 %v4277, %v4621
    %v4623 = vrot.slane %v4622, 2
    %v4624 = vadd.f32 %v4622, %v4623
    %v4625 = vrot.slane %v4624, 1
    %v4626 = vadd.f32 %v4624, %v4625
    %v4627 = vrot.slane %v4279, 4
    %v4628 = vadd.f32 %v4279, %v4627
    %v4629 = vrot.slane %v4628, 2
    %v4630 = vadd.f32 %v4628, %v4629
    %v4631 = vrot.slane %v4630, 1
    %v4632 = vadd.f32 %v4630, %v4631
    %v4633 = vrot.slane %v4441, 4
    %v4634 = vadd.f32 %v4441, %v4633
    %v4635 = vrot.slane %v4634, 2
    %v4636 = vadd.f32 %v4634, %v4635
    %v4637 = vrot.slane %v4636, 1
    %v4638 = vadd.f32 %v4636, %v4637
    %v4639 = vrot.slane %v4443, 4
    %v4640 = vadd.f32 %v4443, %v4639
    %v4641 = vrot.slane %v4640, 2
    %v4642 = vadd.f32 %v4640, %v4641
    %v4643 = vrot.slane %v4642, 1
    %v4644 = vadd.f32 %v4642, %v4643
    %v4645 = vsel %vm1524, %v4602, 0.0
    %v4646 = vrot.slane %v4645, 4
    %v4647 = vadd.f32 %v4645, %v4646
    %v4648 = vrot.slane %v4647, 2
    %v4649 = vadd.f32 %v4647, %v4648
    %v4650 = vrot.slane %v4649, 1
    %v4651 = vadd.f32 %v4649, %v4650
    %v4652 = vmul.f32 %v4614, %v1532
    %v4653 = vmul.f32 %v4620, %v1532
    %v4654 = vmul.f32 %v4626, %v1532
    %v4655 = vmul.f32 %v4632, %v1532
    %v4656 = vmul.f32 %v4638, %v1532
    %v4657 = vmul.f32 %v4644, %v1532
    %v4658 = vmul.f32 %v4651, %v1532
    %v4659 = vsub.f32 %v4113, %v4652
    %v4660 = vsub.f32 %v4115, %v4653
    %v4661 = vsub.f32 %v4277, %v4654
    %v4662 = vsub.f32 %v4279, %v4655
    %v4663 = vsub.f32 %v4441, %v4656
    %v4664 = vsub.f32 %v4443, %v4657
    %v4665 = vsub.f32 %v4602, %v4658
    %v4666 = vmul.f32 %v4659, %v4659
    %v4667 = vmul.f32 %v4660, %v4660
    %v4668 = vmul.f32 %v4661, %v4661
    %v4669 = vmul.f32 %v4662, %v4662
    %v4670 = vmul.f32 %v4663, %v4663
    %v4671 = vmul.f32 %v4664, %v4664
    %v4672 = vmul.f32 %v4665, %v4665
    %v4673 = vrot.slane %v4666, 4
    %v4674 = vadd.f32 %v4666, %v4673
    %v4675 = vrot.slane %v4674, 2
    %v4676 = vadd.f32 %v4674, %v4675
    %v4677 = vrot.slane %v4676, 1
    %v4678 = vadd.f32 %v4676, %v4677
    %v4679 = vrot.slane %v4667, 4
    %v4680 = vadd.f32 %v4667, %v4679
    %v4681 = vrot.slane %v4680, 2
    %v4682 = vadd.f32 %v4680, %v4681
    %v4683 = vrot.slane %v4682, 1
    %v4684 = vadd.f32 %v4682, %v4683
    %v4685 = vrot.slane %v4668, 4
    %v4686 = vadd.f32 %v4668, %v4685
    %v4687 = vrot.slane %v4686, 2
    %v4688 = vadd.f32 %v4686, %v4687
    %v4689 = vrot.slane %v4688, 1
    %v4690 = vadd.f32 %v4688, %v4689
    %v4691 = vrot.slane %v4669, 4
    %v4692 = vadd.f32 %v4669, %v4691
    %v4693 = vrot.slane %v4692, 2
    %v4694 = vadd.f32 %v4692, %v4693
    %v4695 = vrot.slane %v4694, 1
    %v4696 = vadd.f32 %v4694, %v4695
    %v4697 = vrot.slane %v4670, 4
    %v4698 = vadd.f32 %v4670, %v4697
    %v4699 = vrot.slane %v4698, 2
    %v4700 = vadd.f32 %v4698, %v4699
    %v4701 = vrot.slane %v4700, 1
    %v4702 = vadd.f32 %v4700, %v4701
    %v4703 = vrot.slane %v4671, 4
    %v4704 = vadd.f32 %v4671, %v4703
    %v4705 = vrot.slane %v4704, 2
    %v4706 = vadd.f32 %v4704, %v4705
    %v4707 = vrot.slane %v4706, 1
    %v4708 = vadd.f32 %v4706, %v4707
    %v4709 = vsel %vm1524, %v4672, 0.0
    %v4710 = vrot.slane %v4709, 4
    %v4711 = vadd.f32 %v4709, %v4710
    %v4712 = vrot.slane %v4711, 2
    %v4713 = vadd.f32 %v4711, %v4712
    %v4714 = vrot.slane %v4713, 1
    %v4715 = vadd.f32 %v4713, %v4714
    %v4716 = vmul.f32 %v4678, %v1532
    %v4717 = vmul.f32 %v4684, %v1532
    %v4718 = vmul.f32 %v4690, %v1532
    %v4719 = vmul.f32 %v4696, %v1532
    %v4720 = vmul.f32 %v4702, %v1532
    %v4721 = vmul.f32 %v4708, %v1532
    %v4722 = vmul.f32 %v4715, %v1532
    %v4723 = vadd.f32 %v4716, 1e-05
    %v4724 = vadd.f32 %v4717, 1e-05
    %v4725 = vadd.f32 %v4718, 1e-05
    %v4726 = vadd.f32 %v4719, 1e-05
    %v4727 = vadd.f32 %v4720, 1e-05
    %v4728 = vadd.f32 %v4721, 1e-05
    %v4729 = vadd.f32 %v4722, 1e-05
    %v4730 = vrsqrt.pop %v4723
    %v4731 = vrsqrt.pop %v4724
    %v4732 = vrsqrt.pop %v4725
    %v4733 = vrsqrt.pop %v4726
    %v4734 = vrsqrt.pop %v4727
    %v4735 = vrsqrt.pop %v4728
    %v4736 = vrsqrt.pop %v4729
    %v4737 = vmul.f32 %v4659, %v4730
    %v4738 = vmul.f32 %v4660, %v4731
    %v4739 = vmul.f32 %v4661, %v4732
    %v4740 = vmul.f32 %v4662, %v4733
    %v4741 = vmul.f32 %v4663, %v4734
    %v4742 = vmul.f32 %v4664, %v4735
    %v4743 = vmul.f32 %v4665, %v4736
    %v4746 = vlaneseq
    %v4747 = vshrl.u32 %v4746, 7
    %v4748 = vsub.s32 0, %v4747
    %v4749 = vrot.slane %v4607, %v4748
    %v4750 = vlaneseq
    %v4751 = vshrl.u32 %v4750, 7
    %v4752 = vsub.s32 2, %v4751
    %v4753 = vrot.slane %v4607, %v4752
    %v4754 = vlaneseq
    %v4755 = vshrl.u32 %v4754, 7
    %v4756 = vsub.s32 4, %v4755
    %v4757 = vrot.slane %v4607, %v4756
    %v4758 = vlaneseq
    %v4759 = vshrl.u32 %v4758, 7
    %v4760 = vsub.s32 6, %v4759
    %v4761 = vrot.slane %v4607, %v4760
    %v4762 = vlaneseq
    %v4763 = vshrl.u32 %v4762, 7
    %v4764 = vsub.s32 0, %v4763
    %v4765 = vrot.slane %v4608, %v4764
    %v4766 = vlaneseq
    %v4767 = vshrl.u32 %v4766, 7
    %v4768 = vsub.s32 2, %v4767
    %v4769 = vrot.slane %v4608, %v4768
    %v4770 = vlaneseq
    %v4771 = vshrl.u32 %v4770, 7
    %v4772 = vsub.s32 4, %v4771
    %v4773 = vrot.slane %v4608, %v4772
    %v4781 = vlaneseq
    %v4782 = vshrl.u32 %v4781, 7
    %v4783 = vsub.s32 0, %v4782
    %v4784 = vrot.slane %v4749, %v4783
    %v4785 = vlaneseq
    %v4786 = vshrl.u32 %v4785, 7
    %v4787 = vsub.s32 0, %v4786
    %v4788 = vrot.slane %v4753, %v4787
    %v4789 = vlaneseq
    %v4790 = vshrl.u32 %v4789, 7
    %v4791 = vsub.s32 0, %v4790
    %v4792 = vrot.slane %v4757, %v4791
    %v4793 = vlaneseq
    %v4794 = vshrl.u32 %v4793, 7
    %v4795 = vsub.s32 0, %v4794
    %v4796 = vrot.slane %v4761, %v4795
    %v4797 = vlaneseq
    %v4798 = vshrl.u32 %v4797, 7
    %v4799 = vsub.s32 0, %v4798
    %v4800 = vrot.slane %v4765, %v4799
    %v4801 = vlaneseq
    %v4802 = vshrl.u32 %v4801, 7
    %v4803 = vsub.s32 0, %v4802
    %v4804 = vrot.slane %v4769, %v4803
    %v4805 = vlaneseq
    %v4806 = vshrl.u32 %v4805, 7
    %v4807 = vsub.s32 0, %v4806
    %v4808 = vrot.slane %v4773, %v4807
    %v4809 = vmul.f32 %v4737, %v4784
    %v4810 = vmul.f32 %v4738, %v4788
    %v4811 = vmul.f32 %v4739, %v4792
    %v4812 = vmul.f32 %v4740, %v4796
    %v4813 = vmul.f32 %v4741, %v4800
    %v4814 = vmul.f32 %v4742, %v4804
    %v4815 = vmul.f32 %v4743, %v4808
    %v4816 = vlaneseq
    %v4817 = vshrl.u32 %v4816, 7
    %v4818 = vsub.s32 1, %v4817
    %v4819 = vrot.slane %v4607, %v4818
    %v4820 = vlaneseq
    %v4821 = vshrl.u32 %v4820, 7
    %v4822 = vsub.s32 3, %v4821
    %v4823 = vrot.slane %v4607, %v4822
    %v4824 = vlaneseq
    %v4825 = vshrl.u32 %v4824, 7
    %v4826 = vsub.s32 5, %v4825
    %v4827 = vrot.slane %v4607, %v4826
    %v4828 = vlaneseq
    %v4829 = vshrl.u32 %v4828, 7
    %v4830 = vsub.s32 7, %v4829
    %v4831 = vrot.slane %v4607, %v4830
    %v4832 = vlaneseq
    %v4833 = vshrl.u32 %v4832, 7
    %v4834 = vsub.s32 1, %v4833
    %v4835 = vrot.slane %v4608, %v4834
    %v4836 = vlaneseq
    %v4837 = vshrl.u32 %v4836, 7
    %v4838 = vsub.s32 3, %v4837
    %v4839 = vrot.slane %v4608, %v4838
    %v4840 = vlaneseq
    %v4841 = vshrl.u32 %v4840, 7
    %v4842 = vsub.s32 5, %v4841
    %v4843 = vrot.slane %v4608, %v4842
    %v4851 = vlaneseq
    %v4852 = vshrl.u32 %v4851, 7
    %v4853 = vsub.s32 1, %v4852
    %v4854 = vrot.slane %v4819, %v4853
    %v4855 = vlaneseq
    %v4856 = vshrl.u32 %v4855, 7
    %v4857 = vsub.s32 1, %v4856
    %v4858 = vrot.slane %v4823, %v4857
    %v4859 = vlaneseq
    %v4860 = vshrl.u32 %v4859, 7
    %v4861 = vsub.s32 1, %v4860
    %v4862 = vrot.slane %v4827, %v4861
    %v4863 = vlaneseq
    %v4864 = vshrl.u32 %v4863, 7
    %v4865 = vsub.s32 1, %v4864
    %v4866 = vrot.slane %v4831, %v4865
    %v4867 = vlaneseq
    %v4868 = vshrl.u32 %v4867, 7
    %v4869 = vsub.s32 1, %v4868
    %v4870 = vrot.slane %v4835, %v4869
    %v4871 = vlaneseq
    %v4872 = vshrl.u32 %v4871, 7
    %v4873 = vsub.s32 1, %v4872
    %v4874 = vrot.slane %v4839, %v4873
    %v4875 = vlaneseq
    %v4876 = vshrl.u32 %v4875, 7
    %v4877 = vsub.s32 1, %v4876
    %v4878 = vrot.slane %v4843, %v4877
    %v4879 = vadd.f32 %v4809, %v4854
    %v4880 = vadd.f32 %v4810, %v4858
    %v4881 = vadd.f32 %v4811, %v4862
    %v4882 = vadd.f32 %v4812, %v4866
    %v4883 = vadd.f32 %v4813, %v4870
    %v4884 = vadd.f32 %v4814, %v4874
    %v4885 = vadd.f32 %v4815, %v4878
    %v4886 = vmax.f32 %v4879, 0.0
    %v4887 = vmax.f32 %v4880, 0.0
    %v4888 = vmax.f32 %v4881, 0.0
    %v4889 = vmax.f32 %v4882, 0.0
    %v4890 = vmax.f32 %v4883, 0.0
    %v4891 = vmax.f32 %v4884, 0.0
    %v4892 = vmax.f32 %v4885, 0.0
    %v4893 = vpack.c.bf16 %v4886, %v4886
    %v4894 = vpack.c.bf16 %v4887, %v4887
    %v4895 = vpack.c.bf16 %v4888, %v4888
    %v4896 = vpack.c.bf16 %v4889, %v4889
    %v4897 = vpack.c.bf16 %v4890, %v4890
    %v4898 = vpack.c.bf16 %v4891, %v4891
    %v4899 = vpack.c.bf16 %v4892, %v4892
    %v4900 = vld [vmem:[%s5] sm:$0xff]
    %v4901 = vld [vmem:[%s5 + $0x8] sm:$0xff]
    %v4902 = vld [vmem:[%s5 + $0x10] sm:$0xff]
    %v4903 = vld [vmem:[%s5 + $0x18] sm:$0xff]
    %v4904 = vld [vmem:[%s5 + $0x20] sm:$0xff]
    %v4905 = vld [vmem:[%s5 + $0x28] sm:$0xff]
    %v4906 = vld [vmem:[%s5 + $0x30] sm:$0xff]
    %v4907 = vld [vmem:[%s5 + $0x38] sm:$0xff]
    %v4908 = vld [vmem:[%s5 + $0x40] sm:$0xff]
    %v4909 = vld [vmem:[%s5 + $0x48] sm:$0xff]
    %v4910 = vld [vmem:[%s5 + $0x50] sm:$0xff]
    %v4911 = vld [vmem:[%s5 + $0x58] sm:$0xff]
    %v4912 = vld [vmem:[%s5 + $0x60] sm:$0xff]
    %v4913 = vld [vmem:[%s5 + $0x68] sm:$0xff]
    %v4914 = vld [vmem:[%s5 + $0x70] sm:$0xff]
    %v4915 = vld [vmem:[%s5 + $0x78] sm:$0xff]
    %v4916 = vld [vmem:[%s5 + $0x80] sm:$0xff]
    %v4917 = vld [vmem:[%s5 + $0x88] sm:$0xff]
    %v4918 = vld [vmem:[%s5 + $0x90] sm:$0xff]
    %v4919 = vld [vmem:[%s5 + $0x98] sm:$0xff]
    %v4920 = vld [vmem:[%s5 + $0xa0] sm:$0xff]
    %v4921 = vld [vmem:[%s5 + $0xa8] sm:$0xff]
    %v4922 = vld [vmem:[%s5 + $0xb0] sm:$0xff]
    %v4923 = vld [vmem:[%s5 + $0xb8] sm:$0xff]
    %v4924 = vld [vmem:[%s5 + $0xc0] sm:$0xff]
    %v4925 = vld [vmem:[%s5 + $0xc8] sm:$0xff]
    %v4926 = vld [vmem:[%s5 + $0xd0] sm:$0xff]
    %v4927 = vld [vmem:[%s5 + $0xd8] sm:$0xff]
    %v4928 = vld [vmem:[%s5 + $0xe0] sm:$0xff]
    %v4929 = vld [vmem:[%s5 + $0xe8] sm:$0xff]
    %v4930 = vld [vmem:[%s5 + $0xf0] sm:$0xff]
    %v4931 = vld [vmem:[%s5 + $0xf8] sm:$0xff]
    %v4932 = vld [vmem:[%s5 + $0x100] sm:$0xff]
    %v4933 = vld [vmem:[%s5 + $0x108] sm:$0xff]
    %v4934 = vld [vmem:[%s5 + $0x110] sm:$0xff]
    %v4935 = vld [vmem:[%s5 + $0x118] sm:$0xff]
    %v4936 = vld [vmem:[%s5 + $0x120] sm:$0xff]
    %v4937 = vld [vmem:[%s5 + $0x128] sm:$0xff]
    %v4938 = vld [vmem:[%s5 + $0x130] sm:$0xff]
    %v4939 = vld [vmem:[%s5 + $0x138] sm:$0xff]
    %v4940 = vld [vmem:[%s5 + $0x140] sm:$0xff]
    %v4941 = vld [vmem:[%s5 + $0x148] sm:$0xff]
    %v4942 = vld [vmem:[%s5 + $0x150] sm:$0xff]
    %v4943 = vld [vmem:[%s5 + $0x158] sm:$0xff]
    %v4944 = vld [vmem:[%s5 + $0x160] sm:$0xff]
    %v4945 = vld [vmem:[%s5 + $0x168] sm:$0xff]
    %v4946 = vld [vmem:[%s5 + $0x170] sm:$0xff]
    %v4947 = vld [vmem:[%s5 + $0x178] sm:$0xff]
    %v4948 = vld [vmem:[%s5 + $0x180] sm:$0xff]
    %v4949 = vld [vmem:[%s5 + $0x188] sm:$0xff]
    %v4950 = vld [vmem:[%s5 + $0x190] sm:$0xff]
    %v4951 = vld [vmem:[%s5 + $0x198] sm:$0xff]
    %v4952 = vld [vmem:[%s5 + $0x1a0] sm:$0xff]
    %v4953 = vld [vmem:[%s5 + $0x1a8] sm:$0xff]
    %v4954 = vld [vmem:[%s5 + $0x1b0] sm:$0xff]
    %v4955 = vld [vmem:[%s5 + $0x1b8] sm:$0xff]
    %v4956 = vld [vmem:[%s5 + $0x1c0] sm:$0xff]
    %v4957 = vld [vmem:[%s5 + $0x1c8] sm:$0xff]
    %v4958 = vld [vmem:[%s5 + $0x1d0] sm:$0xff]
    %v4959 = vld [vmem:[%s5 + $0x1d8] sm:$0xff]
    %v4960 = vld [vmem:[%s5 + $0x1e0] sm:$0xff]
    %v4961 = vld [vmem:[%s5 + $0x1e8] sm:$0xff]
    %v4962 = vld [vmem:[%s5 + $0x1f0] sm:$0xff]
    %v4963 = vld [vmem:[%s5 + $0x1f8] sm:$0xff]
    %v4964 = vld [vmem:[%s5 + $0x200] sm:$0xff]
    %v4965 = vld [vmem:[%s5 + $0x208] sm:$0xff]
    %v4966 = vld [vmem:[%s5 + $0x210] sm:$0xff]
    %v4967 = vld [vmem:[%s5 + $0x218] sm:$0xff]
    %v4968 = vld [vmem:[%s5 + $0x220] sm:$0xff]
    %v4969 = vld [vmem:[%s5 + $0x228] sm:$0xff]
    %v4970 = vld [vmem:[%s5 + $0x230] sm:$0xff]
    %v4971 = vld [vmem:[%s5 + $0x238] sm:$0xff]
    %v4972 = vld [vmem:[%s5 + $0x240] sm:$0xff]
    %v4973 = vld [vmem:[%s5 + $0x248] sm:$0xff]
    %v4974 = vld [vmem:[%s5 + $0x250] sm:$0xff]
    %v4975 = vld [vmem:[%s5 + $0x258] sm:$0xff]
    %v4976 = vld [vmem:[%s5 + $0x260] sm:$0xff]
    %v4977 = vld [vmem:[%s5 + $0x268] sm:$0xff]
    %v4978 = vld [vmem:[%s5 + $0x270] sm:$0xff]
    %v4979 = vld [vmem:[%s5 + $0x278] sm:$0xff]
    %v4980 = vld [vmem:[%s5 + $0x280] sm:$0xff]
    %v4981 = vld [vmem:[%s5 + $0x288] sm:$0xff]
    %v4982 = vld [vmem:[%s5 + $0x290] sm:$0xff]
    %v4983 = vld [vmem:[%s5 + $0x298] sm:$0xff]
    %v4984 = vld [vmem:[%s5 + $0x2a0] sm:$0xff]
    %v4985 = vld [vmem:[%s5 + $0x2a8] sm:$0xff]
    %v4986 = vld [vmem:[%s5 + $0x2b0] sm:$0xff]
    %v4987 = vld [vmem:[%s5 + $0x2b8] sm:$0xff]
    %v4988 = vld [vmem:[%s5 + $0x2c0] sm:$0xff]
    %v4989 = vld [vmem:[%s5 + $0x2c8] sm:$0xff]
    %v4990 = vld [vmem:[%s5 + $0x2d0] sm:$0xff]
    %v4991 = vld [vmem:[%s5 + $0x2d8] sm:$0xff]
    %v4992 = vld [vmem:[%s5 + $0x2e0] sm:$0xff]
    %v4993 = vld [vmem:[%s5 + $0x2e8] sm:$0xff]
    %v4994 = vld [vmem:[%s5 + $0x2f0] sm:$0xff]
    %v4995 = vld [vmem:[%s5 + $0x2f8] sm:$0xff]
    %v4996 = vld [vmem:[%s5 + $0x300] sm:$0xff]
    %v4997 = vld [vmem:[%s5 + $0x308] sm:$0xff]
    %v4998 = vld [vmem:[%s5 + $0x310] sm:$0xff]
    %v4999 = vld [vmem:[%s5 + $0x318] sm:$0xff]
    %v5000 = vld [vmem:[%s5 + $0x320] sm:$0xff]
    %v5001 = vld [vmem:[%s5 + $0x328] sm:$0xff]
    %v5002 = vld [vmem:[%s5 + $0x330] sm:$0xff]
    %v5003 = vld [vmem:[%s5 + $0x338] sm:$0xff]
    %v5004 = vld [vmem:[%s5 + $0x340] sm:$0xff]
    %v5005 = vld [vmem:[%s5 + $0x348] sm:$0xff]
    %v5006 = vld [vmem:[%s5 + $0x350] sm:$0xff]
    %v5007 = vld [vmem:[%s5 + $0x358] sm:$0xff]
    %v5008 = vld [vmem:[%s5 + $0x360] sm:$0xff]
    %v5009 = vld [vmem:[%s5 + $0x368] sm:$0xff]
    %v5010 = vld [vmem:[%s5 + $0x370] sm:$0xff]
    %v5011 = vld [vmem:[%s5 + $0x378] sm:$0xff]
    %v5012 = vld [vmem:[%s5 + $0x380] sm:$0xff]
    %v5013 = vld [vmem:[%s5 + $0x388] sm:$0xff]
    %v5014 = vld [vmem:[%s5 + $0x390] sm:$0xff]
    %v5015 = vld [vmem:[%s5 + $0x398] sm:$0xff]
    %v5016 = vld [vmem:[%s5 + $0x3a0] sm:$0xff]
    %v5017 = vld [vmem:[%s5 + $0x3a8] sm:$0xff]
    %v5018 = vld [vmem:[%s5 + $0x3b0] sm:$0xff]
    %v5019 = vld [vmem:[%s5 + $0x3b8] sm:$0xff]
    %v5020 = vld [vmem:[%s5 + $0x3c0] sm:$0xff]
    %v5021 = vld [vmem:[%s5 + $0x3c8] sm:$0xff]
    %v5022 = vld [vmem:[%s5 + $0x3d0] sm:$0xff]
    %v5023 = vld [vmem:[%s5 + $0x3d8] sm:$0xff]
    %v5024 = vld [vmem:[%s5 + $0x3e0] sm:$0xff]
    %v5025 = vld [vmem:[%s5 + $0x3e8] sm:$0xff]
    %v5026 = vld [vmem:[%s5 + $0x3f0] sm:$0xff]
    %v5027 = vld [vmem:[%s5 + $0x3f8] sm:$0xff]
    %v5028 = vld [vmem:[%s5 + $0x400] sm:$0xff]
    %v5029 = vld [vmem:[%s5 + $0x408] sm:$0xff]
    %v5030 = vld [vmem:[%s5 + $0x410] sm:$0xff]
    %v5031 = vld [vmem:[%s5 + $0x418] sm:$0xff]
    %v5032 = vld [vmem:[%s5 + $0x420] sm:$0xff]
    %v5033 = vld [vmem:[%s5 + $0x428] sm:$0xff]
    %v5034 = vld [vmem:[%s5 + $0x430] sm:$0xff]
    %v5035 = vld [vmem:[%s5 + $0x438] sm:$0xff]
    %v5036 = vld [vmem:[%s5 + $0x440] sm:$0xff]
    %v5037 = vld [vmem:[%s5 + $0x448] sm:$0xff]
    %v5038 = vld [vmem:[%s5 + $0x450] sm:$0xff]
    %v5039 = vld [vmem:[%s5 + $0x458] sm:$0xff]
    %v5040 = vld [vmem:[%s5 + $0x460] sm:$0xff]
    %v5041 = vld [vmem:[%s5 + $0x468] sm:$0xff]
    %v5042 = vld [vmem:[%s5 + $0x470] sm:$0xff]
    %v5043 = vld [vmem:[%s5 + $0x478] sm:$0xff]
    %v5044 = vld [vmem:[%s5 + $0x480] sm:$0xff]
    %v5045 = vld [vmem:[%s5 + $0x488] sm:$0xff]
    %v5046 = vld [vmem:[%s5 + $0x490] sm:$0xff]
    %v5047 = vld [vmem:[%s5 + $0x498] sm:$0xff]
    %v5048 = vld [vmem:[%s5 + $0x4a0] sm:$0xff]
    %v5049 = vld [vmem:[%s5 + $0x4a8] sm:$0xff]
    %v5050 = vld [vmem:[%s5 + $0x4b0] sm:$0xff]
    %v5051 = vld [vmem:[%s5 + $0x4b8] sm:$0xff]
    %v5052 = vld [vmem:[%s5 + $0x4c0] sm:$0xff]
    %v5053 = vld [vmem:[%s5 + $0x4c8] sm:$0xff]
    %v5054 = vld [vmem:[%s5 + $0x4d0] sm:$0xff]
    %v5055 = vld [vmem:[%s5 + $0x4d8] sm:$0xff]
    %v5056 = vld [vmem:[%s5 + $0x4e0] sm:$0xff]
    %v5057 = vld [vmem:[%s5 + $0x4e8] sm:$0xff]
    %v5058 = vld [vmem:[%s5 + $0x4f0] sm:$0xff]
    %v5059 = vld [vmem:[%s5 + $0x4f8] sm:$0xff]
    %v5060 = vld [vmem:[%s5 + $0x500] sm:$0xff]
    %v5061 = vld [vmem:[%s5 + $0x508] sm:$0xff]
    %v5062 = vld [vmem:[%s5 + $0x510] sm:$0xff]
    %v5063 = vld [vmem:[%s5 + $0x518] sm:$0xff]
    %v5064 = vld [vmem:[%s5 + $0x520] sm:$0xff]
    %v5065 = vld [vmem:[%s5 + $0x528] sm:$0xff]
    %v5066 = vld [vmem:[%s5 + $0x530] sm:$0xff]
    %v5067 = vld [vmem:[%s5 + $0x538] sm:$0xff]
    %v5068 = vld [vmem:[%s5 + $0x540] sm:$0xff]
    %v5069 = vld [vmem:[%s5 + $0x548] sm:$0xff]
    %v5070 = vld [vmem:[%s5 + $0x550] sm:$0xff]
    %v5071 = vld [vmem:[%s5 + $0x558] sm:$0xff]
    %v5072 = vld [vmem:[%s5 + $0x560] sm:$0xff]
    %v5073 = vld [vmem:[%s5 + $0x568] sm:$0xff]
    %v5074 = vld [vmem:[%s5 + $0x570] sm:$0xff]
    %v5075 = vld [vmem:[%s5 + $0x578] sm:$0xff]
    %v5076 = vld [vmem:[%s5 + $0x580] sm:$0xff]
    %v5077 = vld [vmem:[%s5 + $0x588] sm:$0xff]
    %v5078 = vld [vmem:[%s5 + $0x590] sm:$0xff]
    %v5079 = vld [vmem:[%s5 + $0x598] sm:$0xff]
    %v5080 = vld [vmem:[%s5 + $0x5a0] sm:$0xff]
    %v5081 = vld [vmem:[%s5 + $0x5a8] sm:$0xff]
    %v5082 = vld [vmem:[%s5 + $0x5b0] sm:$0xff]
    %v5083 = vld [vmem:[%s5 + $0x5b8] sm:$0xff]
    %v5084 = vld [vmem:[%s5 + $0x5c0] sm:$0xff]
    %v5085 = vld [vmem:[%s5 + $0x5c8] sm:$0xff]
    %v5086 = vld [vmem:[%s5 + $0x5d0] sm:$0xff]
    %v5087 = vld [vmem:[%s5 + $0x5d8] sm:$0xff]
    %v5088 = vld [vmem:[%s5 + $0x5e0] sm:$0xff]
    %v5089 = vld [vmem:[%s5 + $0x5e8] sm:$0xff]
    %v5090 = vld [vmem:[%s5 + $0x5f0] sm:$0xff]
    %v5091 = vld [vmem:[%s5 + $0x5f8] sm:$0xff]
    %v5092 = vld [vmem:[%s5 + $0x600] sm:$0xff]
    %v5093 = vld [vmem:[%s5 + $0x608] sm:$0xff]
    %v5094 = vld [vmem:[%s5 + $0x610] sm:$0x33]
    %v5095 = vld [vmem:[%s5 + $0x618] sm:$0x33]
    %v5292 = vunpack.c.l.b16 %v4900
    %v5293 = vunpack.c.h.b16 %v4900
    %v5294 = vunpack.c.l.b16 %v4901
    %v5295 = vunpack.c.h.b16 %v4901
    %v5296 = vunpack.c.l.b16 %v4902
    %v5297 = vunpack.c.h.b16 %v4902
    %v5298 = vunpack.c.l.b16 %v4903
    %v5299 = vunpack.c.h.b16 %v4903
    %v5300 = vunpack.c.l.b16 %v4904
    %v5301 = vunpack.c.h.b16 %v4904
    %v5302 = vunpack.c.l.b16 %v4905
    %v5303 = vunpack.c.h.b16 %v4905
    %v5304 = vunpack.c.l.b16 %v4906
    %v5305 = vunpack.c.h.b16 %v4906
    %v5306 = vunpack.c.l.b16 %v4907
    %v5307 = vunpack.c.h.b16 %v4907
    %v5308 = vunpack.c.l.b16 %v4908
    %v5309 = vunpack.c.h.b16 %v4908
    %v5310 = vunpack.c.l.b16 %v4909
    %v5311 = vunpack.c.h.b16 %v4909
    %v5312 = vunpack.c.l.b16 %v4910
    %v5313 = vunpack.c.h.b16 %v4910
    %v5314 = vunpack.c.l.b16 %v4911
    %v5315 = vunpack.c.h.b16 %v4911
    %v5316 = vunpack.c.l.b16 %v4912
    %v5317 = vunpack.c.h.b16 %v4912
    %v5318 = vunpack.c.l.b16 %v4913
    %v5319 = vunpack.c.h.b16 %v4913
    %v5320 = vunpack.c.l.b16 %v4914
    %v5321 = vunpack.c.h.b16 %v4914
    %v5322 = vunpack.c.l.b16 %v4915
    %v5323 = vunpack.c.h.b16 %v4915
    %v5324 = vunpack.c.l.b16 %v4916
    %v5325 = vunpack.c.h.b16 %v4916
    %v5326 = vunpack.c.l.b16 %v4917
    %v5327 = vunpack.c.h.b16 %v4917
    %v5328 = vunpack.c.l.b16 %v4918
    %v5329 = vunpack.c.h.b16 %v4918
    %v5330 = vunpack.c.l.b16 %v4919
    %v5331 = vunpack.c.h.b16 %v4919
    %v5332 = vunpack.c.l.b16 %v4920
    %v5333 = vunpack.c.h.b16 %v4920
    %v5334 = vunpack.c.l.b16 %v4921
    %v5335 = vunpack.c.h.b16 %v4921
    %v5336 = vunpack.c.l.b16 %v4922
    %v5337 = vunpack.c.h.b16 %v4922
    %v5338 = vunpack.c.l.b16 %v4923
    %v5339 = vunpack.c.h.b16 %v4923
    %v5340 = vunpack.c.l.b16 %v4924
    %v5341 = vunpack.c.h.b16 %v4924
    %v5342 = vunpack.c.l.b16 %v4925
    %v5343 = vunpack.c.h.b16 %v4925
    %v5344 = vunpack.c.l.b16 %v4926
    %v5345 = vunpack.c.h.b16 %v4926
    %v5346 = vunpack.c.l.b16 %v4927
    %v5347 = vunpack.c.h.b16 %v4927
    %v5348 = vunpack.c.l.b16 %v4928
    %v5349 = vunpack.c.h.b16 %v4928
    %v5350 = vunpack.c.l.b16 %v4929
    %v5351 = vunpack.c.h.b16 %v4929
    %v5352 = vunpack.c.l.b16 %v4930
    %v5353 = vunpack.c.h.b16 %v4930
    %v5354 = vunpack.c.l.b16 %v4931
    %v5355 = vunpack.c.h.b16 %v4931
    %v5356 = vunpack.c.l.b16 %v4932
    %v5357 = vunpack.c.h.b16 %v4932
    %v5358 = vunpack.c.l.b16 %v4933
    %v5359 = vunpack.c.h.b16 %v4933
    %v5360 = vunpack.c.l.b16 %v4934
    %v5361 = vunpack.c.h.b16 %v4934
    %v5362 = vunpack.c.l.b16 %v4935
    %v5363 = vunpack.c.h.b16 %v4935
    %v5364 = vunpack.c.l.b16 %v4936
    %v5365 = vunpack.c.h.b16 %v4936
    %v5366 = vunpack.c.l.b16 %v4937
    %v5367 = vunpack.c.h.b16 %v4937
    %v5368 = vunpack.c.l.b16 %v4938
    %v5369 = vunpack.c.h.b16 %v4938
    %v5370 = vunpack.c.l.b16 %v4939
    %v5371 = vunpack.c.h.b16 %v4939
    %v5372 = vunpack.c.l.b16 %v4940
    %v5373 = vunpack.c.h.b16 %v4940
    %v5374 = vunpack.c.l.b16 %v4941
    %v5375 = vunpack.c.h.b16 %v4941
    %v5376 = vunpack.c.l.b16 %v4942
    %v5377 = vunpack.c.h.b16 %v4942
    %v5378 = vunpack.c.l.b16 %v4943
    %v5379 = vunpack.c.h.b16 %v4943
    %v5380 = vunpack.c.l.b16 %v4944
    %v5381 = vunpack.c.h.b16 %v4944
    %v5382 = vunpack.c.l.b16 %v4945
    %v5383 = vunpack.c.h.b16 %v4945
    %v5384 = vunpack.c.l.b16 %v4946
    %v5385 = vunpack.c.h.b16 %v4946
    %v5386 = vunpack.c.l.b16 %v4947
    %v5387 = vunpack.c.h.b16 %v4947
    %v5388 = vunpack.c.l.b16 %v4948
    %v5389 = vunpack.c.h.b16 %v4948
    %v5390 = vunpack.c.l.b16 %v4949
    %v5391 = vunpack.c.h.b16 %v4949
    %v5392 = vunpack.c.l.b16 %v4950
    %v5393 = vunpack.c.h.b16 %v4950
    %v5394 = vunpack.c.l.b16 %v4951
    %v5395 = vunpack.c.h.b16 %v4951
    %v5396 = vunpack.c.l.b16 %v4952
    %v5397 = vunpack.c.h.b16 %v4952
    %v5398 = vunpack.c.l.b16 %v4953
    %v5399 = vunpack.c.h.b16 %v4953
    %v5400 = vunpack.c.l.b16 %v4954
    %v5401 = vunpack.c.h.b16 %v4954
    %v5402 = vunpack.c.l.b16 %v4955
    %v5403 = vunpack.c.h.b16 %v4955
    %v5404 = vunpack.c.l.b16 %v4956
    %v5405 = vunpack.c.h.b16 %v4956
    %v5406 = vunpack.c.l.b16 %v4957
    %v5407 = vunpack.c.h.b16 %v4957
    %v5408 = vunpack.c.l.b16 %v4958
    %v5409 = vunpack.c.h.b16 %v4958
    %v5410 = vunpack.c.l.b16 %v4959
    %v5411 = vunpack.c.h.b16 %v4959
    %v5412 = vunpack.c.l.b16 %v4960
    %v5413 = vunpack.c.h.b16 %v4960
    %v5414 = vunpack.c.l.b16 %v4961
    %v5415 = vunpack.c.h.b16 %v4961
    %v5416 = vunpack.c.l.b16 %v4962
    %v5417 = vunpack.c.h.b16 %v4962
    %v5418 = vunpack.c.l.b16 %v4963
    %v5419 = vunpack.c.h.b16 %v4963
    %v5420 = vunpack.c.l.b16 %v4964
    %v5421 = vunpack.c.h.b16 %v4964
    %v5422 = vunpack.c.l.b16 %v4965
    %v5423 = vunpack.c.h.b16 %v4965
    %v5424 = vunpack.c.l.b16 %v4966
    %v5425 = vunpack.c.h.b16 %v4966
    %v5426 = vunpack.c.l.b16 %v4967
    %v5427 = vunpack.c.h.b16 %v4967
    %v5428 = vunpack.c.l.b16 %v4968
    %v5429 = vunpack.c.h.b16 %v4968
    %v5430 = vunpack.c.l.b16 %v4969
    %v5431 = vunpack.c.h.b16 %v4969
    %v5432 = vunpack.c.l.b16 %v4970
    %v5433 = vunpack.c.h.b16 %v4970
    %v5434 = vunpack.c.l.b16 %v4971
    %v5435 = vunpack.c.h.b16 %v4971
    %v5436 = vunpack.c.l.b16 %v4972
    %v5437 = vunpack.c.h.b16 %v4972
    %v5438 = vunpack.c.l.b16 %v4973
    %v5439 = vunpack.c.h.b16 %v4973
    %v5440 = vunpack.c.l.b16 %v4974
    %v5441 = vunpack.c.h.b16 %v4974
    %v5442 = vunpack.c.l.b16 %v4975
    %v5443 = vunpack.c.h.b16 %v4975
    %v5444 = vunpack.c.l.b16 %v4976
    %v5445 = vunpack.c.h.b16 %v4976
    %v5446 = vunpack.c.l.b16 %v4977
    %v5447 = vunpack.c.h.b16 %v4977
    %v5448 = vunpack.c.l.b16 %v4978
    %v5449 = vunpack.c.h.b16 %v4978
    %v5450 = vunpack.c.l.b16 %v4979
    %v5451 = vunpack.c.h.b16 %v4979
    %v5452 = vunpack.c.l.b16 %v4980
    %v5453 = vunpack.c.h.b16 %v4980
    %v5454 = vunpack.c.l.b16 %v4981
    %v5455 = vunpack.c.h.b16 %v4981
    %v5456 = vunpack.c.l.b16 %v4982
    %v5457 = vunpack.c.h.b16 %v4982
    %v5458 = vunpack.c.l.b16 %v4983
    %v5459 = vunpack.c.h.b16 %v4983
    %v5460 = vunpack.c.l.b16 %v4984
    %v5461 = vunpack.c.h.b16 %v4984
    %v5462 = vunpack.c.l.b16 %v4985
    %v5463 = vunpack.c.h.b16 %v4985
    %v5464 = vunpack.c.l.b16 %v4986
    %v5465 = vunpack.c.h.b16 %v4986
    %v5466 = vunpack.c.l.b16 %v4987
    %v5467 = vunpack.c.h.b16 %v4987
    %v5468 = vunpack.c.l.b16 %v4988
    %v5469 = vunpack.c.h.b16 %v4988
    %v5470 = vunpack.c.l.b16 %v4989
    %v5471 = vunpack.c.h.b16 %v4989
    %v5472 = vunpack.c.l.b16 %v4990
    %v5473 = vunpack.c.h.b16 %v4990
    %v5474 = vunpack.c.l.b16 %v4991
    %v5475 = vunpack.c.h.b16 %v4991
    %v5476 = vunpack.c.l.b16 %v4992
    %v5477 = vunpack.c.h.b16 %v4992
    %v5478 = vunpack.c.l.b16 %v4993
    %v5479 = vunpack.c.h.b16 %v4993
    %v5480 = vunpack.c.l.b16 %v4994
    %v5481 = vunpack.c.h.b16 %v4994
    %v5482 = vunpack.c.l.b16 %v4995
    %v5483 = vunpack.c.h.b16 %v4995
    %v5484 = vunpack.c.l.b16 %v4996
    %v5485 = vunpack.c.h.b16 %v4996
    %v5486 = vunpack.c.l.b16 %v4997
    %v5487 = vunpack.c.h.b16 %v4997
    %v5488 = vunpack.c.l.b16 %v4998
    %v5489 = vunpack.c.h.b16 %v4998
    %v5490 = vunpack.c.l.b16 %v4999
    %v5491 = vunpack.c.h.b16 %v4999
    %v5492 = vunpack.c.l.b16 %v5000
    %v5493 = vunpack.c.h.b16 %v5000
    %v5494 = vunpack.c.l.b16 %v5001
    %v5495 = vunpack.c.h.b16 %v5001
    %v5496 = vunpack.c.l.b16 %v5002
    %v5497 = vunpack.c.h.b16 %v5002
    %v5498 = vunpack.c.l.b16 %v5003
    %v5499 = vunpack.c.h.b16 %v5003
    %v5500 = vunpack.c.l.b16 %v5004
    %v5501 = vunpack.c.h.b16 %v5004
    %v5502 = vunpack.c.l.b16 %v5005
    %v5503 = vunpack.c.h.b16 %v5005
    %v5504 = vunpack.c.l.b16 %v5006
    %v5505 = vunpack.c.h.b16 %v5006
    %v5506 = vunpack.c.l.b16 %v5007
    %v5507 = vunpack.c.h.b16 %v5007
    %v5508 = vunpack.c.l.b16 %v5008
    %v5509 = vunpack.c.h.b16 %v5008
    %v5510 = vunpack.c.l.b16 %v5009
    %v5511 = vunpack.c.h.b16 %v5009
    %v5512 = vunpack.c.l.b16 %v5010
    %v5513 = vunpack.c.h.b16 %v5010
    %v5514 = vunpack.c.l.b16 %v5011
    %v5515 = vunpack.c.h.b16 %v5011
    %v5516 = vunpack.c.l.b16 %v5012
    %v5517 = vunpack.c.h.b16 %v5012
    %v5518 = vunpack.c.l.b16 %v5013
    %v5519 = vunpack.c.h.b16 %v5013
    %v5520 = vunpack.c.l.b16 %v5014
    %v5521 = vunpack.c.h.b16 %v5014
    %v5522 = vunpack.c.l.b16 %v5015
    %v5523 = vunpack.c.h.b16 %v5015
    %v5524 = vunpack.c.l.b16 %v5016
    %v5525 = vunpack.c.h.b16 %v5016
    %v5526 = vunpack.c.l.b16 %v5017
    %v5527 = vunpack.c.h.b16 %v5017
    %v5528 = vunpack.c.l.b16 %v5018
    %v5529 = vunpack.c.h.b16 %v5018
    %v5530 = vunpack.c.l.b16 %v5019
    %v5531 = vunpack.c.h.b16 %v5019
    %v5532 = vunpack.c.l.b16 %v5020
    %v5533 = vunpack.c.h.b16 %v5020
    %v5534 = vunpack.c.l.b16 %v5021
    %v5535 = vunpack.c.h.b16 %v5021
    %v5536 = vunpack.c.l.b16 %v5022
    %v5537 = vunpack.c.h.b16 %v5022
    %v5538 = vunpack.c.l.b16 %v5023
    %v5539 = vunpack.c.h.b16 %v5023
    %v5540 = vunpack.c.l.b16 %v5024
    %v5541 = vunpack.c.h.b16 %v5024
    %v5542 = vunpack.c.l.b16 %v5025
    %v5543 = vunpack.c.h.b16 %v5025
    %v5544 = vunpack.c.l.b16 %v5026
    %v5545 = vunpack.c.h.b16 %v5026
    %v5546 = vunpack.c.l.b16 %v5027
    %v5547 = vunpack.c.h.b16 %v5027
    %v5548 = vunpack.c.l.b16 %v5028
    %v5549 = vunpack.c.h.b16 %v5028
    %v5550 = vunpack.c.l.b16 %v5029
    %v5551 = vunpack.c.h.b16 %v5029
    %v5552 = vunpack.c.l.b16 %v5030
    %v5553 = vunpack.c.h.b16 %v5030
    %v5554 = vunpack.c.l.b16 %v5031
    %v5555 = vunpack.c.h.b16 %v5031
    %v5556 = vunpack.c.l.b16 %v5032
    %v5557 = vunpack.c.h.b16 %v5032
    %v5558 = vunpack.c.l.b16 %v5033
    %v5559 = vunpack.c.h.b16 %v5033
    %v5560 = vunpack.c.l.b16 %v5034
    %v5561 = vunpack.c.h.b16 %v5034
    %v5562 = vunpack.c.l.b16 %v5035
    %v5563 = vunpack.c.h.b16 %v5035
    %v5564 = vunpack.c.l.b16 %v5036
    %v5565 = vunpack.c.h.b16 %v5036
    %v5566 = vunpack.c.l.b16 %v5037
    %v5567 = vunpack.c.h.b16 %v5037
    %v5568 = vunpack.c.l.b16 %v5038
    %v5569 = vunpack.c.h.b16 %v5038
    %v5570 = vunpack.c.l.b16 %v5039
    %v5571 = vunpack.c.h.b16 %v5039
    %v5572 = vunpack.c.l.b16 %v5040
    %v5573 = vunpack.c.h.b16 %v5040
    %v5574 = vunpack.c.l.b16 %v5041
    %v5575 = vunpack.c.h.b16 %v5041
    %v5576 = vunpack.c.l.b16 %v5042
    %v5577 = vunpack.c.h.b16 %v5042
    %v5578 = vunpack.c.l.b16 %v5043
    %v5579 = vunpack.c.h.b16 %v5043
    %v5580 = vunpack.c.l.b16 %v5044
    %v5581 = vunpack.c.h.b16 %v5044
    %v5582 = vunpack.c.l.b16 %v5045
    %v5583 = vunpack.c.h.b16 %v5045
    %v5584 = vunpack.c.l.b16 %v5046
    %v5585 = vunpack.c.h.b16 %v5046
    %v5586 = vunpack.c.l.b16 %v5047
    %v5587 = vunpack.c.h.b16 %v5047
    %v5588 = vunpack.c.l.b16 %v5048
    %v5589 = vunpack.c.h.b16 %v5048
    %v5590 = vunpack.c.l.b16 %v5049
    %v5591 = vunpack.c.h.b16 %v5049
    %v5592 = vunpack.c.l.b16 %v5050
    %v5593 = vunpack.c.h.b16 %v5050
    %v5594 = vunpack.c.l.b16 %v5051
    %v5595 = vunpack.c.h.b16 %v5051
    %v5596 = vunpack.c.l.b16 %v5052
    %v5597 = vunpack.c.h.b16 %v5052
    %v5598 = vunpack.c.l.b16 %v5053
    %v5599 = vunpack.c.h.b16 %v5053
    %v5600 = vunpack.c.l.b16 %v5054
    %v5601 = vunpack.c.h.b16 %v5054
    %v5602 = vunpack.c.l.b16 %v5055
    %v5603 = vunpack.c.h.b16 %v5055
    %v5604 = vunpack.c.l.b16 %v5056
    %v5605 = vunpack.c.h.b16 %v5056
    %v5606 = vunpack.c.l.b16 %v5057
    %v5607 = vunpack.c.h.b16 %v5057
    %v5608 = vunpack.c.l.b16 %v5058
    %v5609 = vunpack.c.h.b16 %v5058
    %v5610 = vunpack.c.l.b16 %v5059
    %v5611 = vunpack.c.h.b16 %v5059
    %v5612 = vunpack.c.l.b16 %v5060
    %v5613 = vunpack.c.h.b16 %v5060
    %v5614 = vunpack.c.l.b16 %v5061
    %v5615 = vunpack.c.h.b16 %v5061
    %v5616 = vunpack.c.l.b16 %v5062
    %v5617 = vunpack.c.h.b16 %v5062
    %v5618 = vunpack.c.l.b16 %v5063
    %v5619 = vunpack.c.h.b16 %v5063
    %v5620 = vunpack.c.l.b16 %v5064
    %v5621 = vunpack.c.h.b16 %v5064
    %v5622 = vunpack.c.l.b16 %v5065
    %v5623 = vunpack.c.h.b16 %v5065
    %v5624 = vunpack.c.l.b16 %v5066
    %v5625 = vunpack.c.h.b16 %v5066
    %v5626 = vunpack.c.l.b16 %v5067
    %v5627 = vunpack.c.h.b16 %v5067
    %v5628 = vunpack.c.l.b16 %v5068
    %v5629 = vunpack.c.h.b16 %v5068
    %v5630 = vunpack.c.l.b16 %v5069
    %v5631 = vunpack.c.h.b16 %v5069
    %v5632 = vunpack.c.l.b16 %v5070
    %v5633 = vunpack.c.h.b16 %v5070
    %v5634 = vunpack.c.l.b16 %v5071
    %v5635 = vunpack.c.h.b16 %v5071
    %v5636 = vunpack.c.l.b16 %v5072
    %v5637 = vunpack.c.h.b16 %v5072
    %v5638 = vunpack.c.l.b16 %v5073
    %v5639 = vunpack.c.h.b16 %v5073
    %v5640 = vunpack.c.l.b16 %v5074
    %v5641 = vunpack.c.h.b16 %v5074
    %v5642 = vunpack.c.l.b16 %v5075
    %v5643 = vunpack.c.h.b16 %v5075
    %v5644 = vunpack.c.l.b16 %v5076
    %v5645 = vunpack.c.h.b16 %v5076
    %v5646 = vunpack.c.l.b16 %v5077
    %v5647 = vunpack.c.h.b16 %v5077
    %v5648 = vunpack.c.l.b16 %v5078
    %v5649 = vunpack.c.h.b16 %v5078
    %v5650 = vunpack.c.l.b16 %v5079
    %v5651 = vunpack.c.h.b16 %v5079
    %v5652 = vunpack.c.l.b16 %v5080
    %v5653 = vunpack.c.h.b16 %v5080
    %v5654 = vunpack.c.l.b16 %v5081
    %v5655 = vunpack.c.h.b16 %v5081
    %v5656 = vunpack.c.l.b16 %v5082
    %v5657 = vunpack.c.h.b16 %v5082
    %v5658 = vunpack.c.l.b16 %v5083
    %v5659 = vunpack.c.h.b16 %v5083
    %v5660 = vunpack.c.l.b16 %v5084
    %v5661 = vunpack.c.h.b16 %v5084
    %v5662 = vunpack.c.l.b16 %v5085
    %v5663 = vunpack.c.h.b16 %v5085
    %v5664 = vunpack.c.l.b16 %v5086
    %v5665 = vunpack.c.h.b16 %v5086
    %v5666 = vunpack.c.l.b16 %v5087
    %v5667 = vunpack.c.h.b16 %v5087
    %v5668 = vunpack.c.l.b16 %v5088
    %v5669 = vunpack.c.h.b16 %v5088
    %v5670 = vunpack.c.l.b16 %v5089
    %v5671 = vunpack.c.h.b16 %v5089
    %v5672 = vunpack.c.l.b16 %v5090
    %v5673 = vunpack.c.h.b16 %v5090
    %v5674 = vunpack.c.l.b16 %v5091
    %v5675 = vunpack.c.h.b16 %v5091
    %v5676 = vunpack.c.l.b16 %v5092
    %v5677 = vunpack.c.h.b16 %v5092
    %v5678 = vunpack.c.l.b16 %v5093
    %v5679 = vunpack.c.h.b16 %v5093
    %v5680 = vunpack.c.l.b16 %v5094
    %v5681 = vunpack.c.h.b16 %v5094
    %v5682 = vunpack.c.l.b16 %v5095
    %v5683 = vunpack.c.h.b16 %v5095
    %v5684 = vpack.c.b16 %v5296, %v5292
    %v5685 = vpack.c.b16 %v5297, %v5293
    %v5686 = vpack.c.b16 %v5298, %v5294
    %v5687 = vpack.c.b16 %v5299, %v5295
    %v5688 = vpack.c.b16 %v5304, %v5300
    %v5689 = vpack.c.b16 %v5305, %v5301
    %v5690 = vpack.c.b16 %v5306, %v5302
    %v5691 = vpack.c.b16 %v5307, %v5303
    %v5692 = vpack.c.b16 %v5312, %v5308
    %v5693 = vpack.c.b16 %v5313, %v5309
    %v5694 = vpack.c.b16 %v5314, %v5310
    %v5695 = vpack.c.b16 %v5315, %v5311
    %v5696 = vpack.c.b16 %v5320, %v5316
    %v5697 = vpack.c.b16 %v5321, %v5317
    %v5698 = vpack.c.b16 %v5322, %v5318
    %v5699 = vpack.c.b16 %v5323, %v5319
    %v5700 = vpack.c.b16 %v5328, %v5324
    %v5701 = vpack.c.b16 %v5329, %v5325
    %v5702 = vpack.c.b16 %v5330, %v5326
    %v5703 = vpack.c.b16 %v5331, %v5327
    %v5704 = vpack.c.b16 %v5336, %v5332
    %v5705 = vpack.c.b16 %v5337, %v5333
    %v5706 = vpack.c.b16 %v5338, %v5334
    %v5707 = vpack.c.b16 %v5339, %v5335
    %v5708 = vpack.c.b16 %v5344, %v5340
    %v5709 = vpack.c.b16 %v5345, %v5341
    %v5710 = vpack.c.b16 %v5346, %v5342
    %v5711 = vpack.c.b16 %v5347, %v5343
    %v5712 = vpack.c.b16 %v5352, %v5348
    %v5713 = vpack.c.b16 %v5353, %v5349
    %v5714 = vpack.c.b16 %v5354, %v5350
    %v5715 = vpack.c.b16 %v5355, %v5351
    %v5716 = vpack.c.b16 %v5360, %v5356
    %v5717 = vpack.c.b16 %v5361, %v5357
    %v5718 = vpack.c.b16 %v5362, %v5358
    %v5719 = vpack.c.b16 %v5363, %v5359
    %v5720 = vpack.c.b16 %v5368, %v5364
    %v5721 = vpack.c.b16 %v5369, %v5365
    %v5722 = vpack.c.b16 %v5370, %v5366
    %v5723 = vpack.c.b16 %v5371, %v5367
    %v5724 = vpack.c.b16 %v5376, %v5372
    %v5725 = vpack.c.b16 %v5377, %v5373
    %v5726 = vpack.c.b16 %v5378, %v5374
    %v5727 = vpack.c.b16 %v5379, %v5375
    %v5728 = vpack.c.b16 %v5384, %v5380
    %v5729 = vpack.c.b16 %v5385, %v5381
    %v5730 = vpack.c.b16 %v5386, %v5382
    %v5731 = vpack.c.b16 %v5387, %v5383
    %v5732 = vpack.c.b16 %v5392, %v5388
    %v5733 = vpack.c.b16 %v5393, %v5389
    %v5734 = vpack.c.b16 %v5394, %v5390
    %v5735 = vpack.c.b16 %v5395, %v5391
    %v5736 = vpack.c.b16 %v5400, %v5396
    %v5737 = vpack.c.b16 %v5401, %v5397
    %v5738 = vpack.c.b16 %v5402, %v5398
    %v5739 = vpack.c.b16 %v5403, %v5399
    %v5740 = vpack.c.b16 %v5408, %v5404
    %v5741 = vpack.c.b16 %v5409, %v5405
    %v5742 = vpack.c.b16 %v5410, %v5406
    %v5743 = vpack.c.b16 %v5411, %v5407
    %v5744 = vpack.c.b16 %v5416, %v5412
    %v5745 = vpack.c.b16 %v5417, %v5413
    %v5746 = vpack.c.b16 %v5418, %v5414
    %v5747 = vpack.c.b16 %v5419, %v5415
    %v5748 = vpack.c.b16 %v5424, %v5420
    %v5749 = vpack.c.b16 %v5425, %v5421
    %v5750 = vpack.c.b16 %v5426, %v5422
    %v5751 = vpack.c.b16 %v5427, %v5423
    %v5752 = vpack.c.b16 %v5432, %v5428
    %v5753 = vpack.c.b16 %v5433, %v5429
    %v5754 = vpack.c.b16 %v5434, %v5430
    %v5755 = vpack.c.b16 %v5435, %v5431
    %v5756 = vpack.c.b16 %v5440, %v5436
    %v5757 = vpack.c.b16 %v5441, %v5437
    %v5758 = vpack.c.b16 %v5442, %v5438
    %v5759 = vpack.c.b16 %v5443, %v5439
    %v5760 = vpack.c.b16 %v5448, %v5444
    %v5761 = vpack.c.b16 %v5449, %v5445
    %v5762 = vpack.c.b16 %v5450, %v5446
    %v5763 = vpack.c.b16 %v5451, %v5447
    %v5764 = vpack.c.b16 %v5456, %v5452
    %v5765 = vpack.c.b16 %v5457, %v5453
    %v5766 = vpack.c.b16 %v5458, %v5454
    %v5767 = vpack.c.b16 %v5459, %v5455
    %v5768 = vpack.c.b16 %v5464, %v5460
    %v5769 = vpack.c.b16 %v5465, %v5461
    %v5770 = vpack.c.b16 %v5466, %v5462
    %v5771 = vpack.c.b16 %v5467, %v5463
    %v5772 = vpack.c.b16 %v5472, %v5468
    %v5773 = vpack.c.b16 %v5473, %v5469
    %v5774 = vpack.c.b16 %v5474, %v5470
    %v5775 = vpack.c.b16 %v5475, %v5471
    %v5776 = vpack.c.b16 %v5480, %v5476
    %v5777 = vpack.c.b16 %v5481, %v5477
    %v5778 = vpack.c.b16 %v5482, %v5478
    %v5779 = vpack.c.b16 %v5483, %v5479
    %v5780 = vpack.c.b16 %v5488, %v5484
    %v5781 = vpack.c.b16 %v5489, %v5485
    %v5782 = vpack.c.b16 %v5490, %v5486
    %v5783 = vpack.c.b16 %v5491, %v5487
    %v5784 = vpack.c.b16 %v5496, %v5492
    %v5785 = vpack.c.b16 %v5497, %v5493
    %v5786 = vpack.c.b16 %v5498, %v5494
    %v5787 = vpack.c.b16 %v5499, %v5495
    %v5788 = vpack.c.b16 %v5504, %v5500
    %v5789 = vpack.c.b16 %v5505, %v5501
    %v5790 = vpack.c.b16 %v5506, %v5502
    %v5791 = vpack.c.b16 %v5507, %v5503
    %v5792 = vpack.c.b16 %v5512, %v5508
    %v5793 = vpack.c.b16 %v5513, %v5509
    %v5794 = vpack.c.b16 %v5514, %v5510
    %v5795 = vpack.c.b16 %v5515, %v5511
    %v5796 = vpack.c.b16 %v5520, %v5516
    %v5797 = vpack.c.b16 %v5521, %v5517
    %v5798 = vpack.c.b16 %v5522, %v5518
    %v5799 = vpack.c.b16 %v5523, %v5519
    %v5800 = vpack.c.b16 %v5528, %v5524
    %v5801 = vpack.c.b16 %v5529, %v5525
    %v5802 = vpack.c.b16 %v5530, %v5526
    %v5803 = vpack.c.b16 %v5531, %v5527
    %v5804 = vpack.c.b16 %v5536, %v5532
    %v5805 = vpack.c.b16 %v5537, %v5533
    %v5806 = vpack.c.b16 %v5538, %v5534
    %v5807 = vpack.c.b16 %v5539, %v5535
    %v5808 = vpack.c.b16 %v5544, %v5540
    %v5809 = vpack.c.b16 %v5545, %v5541
    %v5810 = vpack.c.b16 %v5546, %v5542
    %v5811 = vpack.c.b16 %v5547, %v5543
    %v5812 = vpack.c.b16 %v5552, %v5548
    %v5813 = vpack.c.b16 %v5553, %v5549
    %v5814 = vpack.c.b16 %v5554, %v5550
    %v5815 = vpack.c.b16 %v5555, %v5551
    %v5816 = vpack.c.b16 %v5560, %v5556
    %v5817 = vpack.c.b16 %v5561, %v5557
    %v5818 = vpack.c.b16 %v5562, %v5558
    %v5819 = vpack.c.b16 %v5563, %v5559
    %v5820 = vpack.c.b16 %v5568, %v5564
    %v5821 = vpack.c.b16 %v5569, %v5565
    %v5822 = vpack.c.b16 %v5570, %v5566
    %v5823 = vpack.c.b16 %v5571, %v5567
    %v5824 = vpack.c.b16 %v5576, %v5572
    %v5825 = vpack.c.b16 %v5577, %v5573
    %v5826 = vpack.c.b16 %v5578, %v5574
    %v5827 = vpack.c.b16 %v5579, %v5575
    %v5828 = vpack.c.b16 %v5584, %v5580
    %v5829 = vpack.c.b16 %v5585, %v5581
    %v5830 = vpack.c.b16 %v5586, %v5582
    %v5831 = vpack.c.b16 %v5587, %v5583
    %v5832 = vpack.c.b16 %v5592, %v5588
    %v5833 = vpack.c.b16 %v5593, %v5589
    %v5834 = vpack.c.b16 %v5594, %v5590
    %v5835 = vpack.c.b16 %v5595, %v5591
    %v5836 = vpack.c.b16 %v5600, %v5596
    %v5837 = vpack.c.b16 %v5601, %v5597
    %v5838 = vpack.c.b16 %v5602, %v5598
    %v5839 = vpack.c.b16 %v5603, %v5599
    %v5840 = vpack.c.b16 %v5608, %v5604
    %v5841 = vpack.c.b16 %v5609, %v5605
    %v5842 = vpack.c.b16 %v5610, %v5606
    %v5843 = vpack.c.b16 %v5611, %v5607
    %v5844 = vpack.c.b16 %v5616, %v5612
    %v5845 = vpack.c.b16 %v5617, %v5613
    %v5846 = vpack.c.b16 %v5618, %v5614
    %v5847 = vpack.c.b16 %v5619, %v5615
    %v5848 = vpack.c.b16 %v5624, %v5620
    %v5849 = vpack.c.b16 %v5625, %v5621
    %v5850 = vpack.c.b16 %v5626, %v5622
    %v5851 = vpack.c.b16 %v5627, %v5623
    %v5852 = vpack.c.b16 %v5632, %v5628
    %v5853 = vpack.c.b16 %v5633, %v5629
    %v5854 = vpack.c.b16 %v5634, %v5630
    %v5855 = vpack.c.b16 %v5635, %v5631
    %v5856 = vpack.c.b16 %v5640, %v5636
    %v5857 = vpack.c.b16 %v5641, %v5637
    %v5858 = vpack.c.b16 %v5642, %v5638
    %v5859 = vpack.c.b16 %v5643, %v5639
    %v5860 = vpack.c.b16 %v5648, %v5644
    %v5861 = vpack.c.b16 %v5649, %v5645
    %v5862 = vpack.c.b16 %v5650, %v5646
    %v5863 = vpack.c.b16 %v5651, %v5647
    %v5864 = vpack.c.b16 %v5656, %v5652
    %v5865 = vpack.c.b16 %v5657, %v5653
    %v5866 = vpack.c.b16 %v5658, %v5654
    %v5867 = vpack.c.b16 %v5659, %v5655
    %v5868 = vpack.c.b16 %v5664, %v5660
    %v5869 = vpack.c.b16 %v5665, %v5661
    %v5870 = vpack.c.b16 %v5666, %v5662
    %v5871 = vpack.c.b16 %v5667, %v5663
    %v5872 = vpack.c.b16 %v5672, %v5668
    %v5873 = vpack.c.b16 %v5673, %v5669
    %v5874 = vpack.c.b16 %v5674, %v5670
    %v5875 = vpack.c.b16 %v5675, %v5671
    %v5876 = vpack.c.b16 %v5680, %v5676
    %v5877 = vpack.c.b16 %v5681, %v5677
    %v5878 = vpack.c.b16 %v5682, %v5678
    %v5879 = vpack.c.b16 %v5683, %v5679
    %v6073 = vsel %vm1524, %v4899, 0
    %v6076 = vsel %vm3933, %v5876, 0
    %v6079 = vsel %vm3933, %v5877, 0
    %v6082 = vsel %vm3933, %v5878, 0
    %v6085 = vsel %vm3933, %v5879, 0
    %6087 = vmatprep.subr.bf16.mxu0 %v5685
    %6088 = vmatpush1.bf16.msra.mxu0 %v5684
    %6089 = vmatprep.subr.bf16.mxu0 %v5689
    %6090 = vmatpush1.bf16.msra.mxu0 %v5688
    %6091 = vmatprep.subr.bf16.mxu0 %v5693
    %6092 = vmatpush1.bf16.msra.mxu0 %v5692
    %6093 = vmatprep.subr.bf16.mxu0 %v5697
    %6094 = vmatpush1.bf16.msra.mxu0 %v5696
    %6095 = vmatprep.subr.bf16.mxu0 %v5701
    %6096 = vmatpush1.bf16.msra.mxu0 %v5700
    %6097 = vmatprep.subr.bf16.mxu0 %v5705
    %6098 = vmatpush1.bf16.msra.mxu0 %v5704
    %6099 = vmatprep.subr.bf16.mxu0 %v5709
    %6100 = vmatpush1.bf16.msra.mxu0 %v5708
    %6101 = vmatprep.subr.bf16.mxu0 %v5713
    %6102 = vmatpush1.bf16.msra.mxu0 %v5712
    %6103 = vmatprep.subr.bf16.mxu0 %v5717
    %6104 = vmatpush1.bf16.msra.mxu0 %v5716
    %6105 = vmatprep.subr.bf16.mxu0 %v5721
    %6106 = vmatpush1.bf16.msra.mxu0 %v5720
    %6107 = vmatprep.subr.bf16.mxu0 %v5725
    %6108 = vmatpush1.bf16.msra.mxu0 %v5724
    %6109 = vmatprep.subr.bf16.mxu0 %v5729
    %6110 = vmatpush1.bf16.msra.mxu0 %v5728
    %6111 = vmatprep.subr.bf16.mxu0 %v5733
    %6112 = vmatpush1.bf16.msra.mxu0 %v5732
    %6113 = vmatprep.subr.bf16.mxu0 %v5737
    %6114 = vmatpush1.bf16.msra.mxu0 %v5736
    %6115 = vmatprep.subr.bf16.mxu0 %v5741
    %6116 = vmatpush1.bf16.msra.mxu0 %v5740
    %6117 = vmatprep.subr.bf16.mxu0 %v5745
    %6118 = vmatpush1.bf16.msra.mxu0 %v5744
    %6119 = vmatprep.mubr.bf16.mxu0 %v4894
    %6120 = vmatmul.mubr.bf16.gmra.mrb[0].mxu0 %v4893
    %v6121 = vpop.f32.mrb[0].mxu0
    %v6122 = vadd.f32 0.0, %v6121
    %v6123 = vpop.f32.mrb[0].mxu0
    %v6124 = vadd.f32 0.0, %v6123
    %v6125 = vpop.f32.mrb[0].mxu0
    %v6126 = vpop.f32.mrb[0].mxu0
    %6127 = vdwg.mxu0
    %6128 = vmatprep.subr.bf16.mxu0 %v5749
    %6129 = vmatpush1.bf16.msra.mxu0 %v5748
    %6130 = vmatprep.subr.bf16.mxu0 %v5753
    %6131 = vmatpush1.bf16.msra.mxu0 %v5752
    %6132 = vmatprep.subr.bf16.mxu0 %v5757
    %6133 = vmatpush1.bf16.msra.mxu0 %v5756
    %6134 = vmatprep.subr.bf16.mxu0 %v5761
    %6135 = vmatpush1.bf16.msra.mxu0 %v5760
    %6136 = vmatprep.subr.bf16.mxu0 %v5765
    %6137 = vmatpush1.bf16.msra.mxu0 %v5764
    %6138 = vmatprep.subr.bf16.mxu0 %v5769
    %6139 = vmatpush1.bf16.msra.mxu0 %v5768
    %6140 = vmatprep.subr.bf16.mxu0 %v5773
    %6141 = vmatpush1.bf16.msra.mxu0 %v5772
    %6142 = vmatprep.subr.bf16.mxu0 %v5777
    %6143 = vmatpush1.bf16.msra.mxu0 %v5776
    %6144 = vmatprep.subr.bf16.mxu0 %v5781
    %6145 = vmatpush1.bf16.msra.mxu0 %v5780
    %6146 = vmatprep.subr.bf16.mxu0 %v5785
    %6147 = vmatpush1.bf16.msra.mxu0 %v5784
    %6148 = vmatprep.subr.bf16.mxu0 %v5789
    %6149 = vmatpush1.bf16.msra.mxu0 %v5788
    %6150 = vmatprep.subr.bf16.mxu0 %v5793
    %6151 = vmatpush1.bf16.msra.mxu0 %v5792
    %6152 = vmatprep.subr.bf16.mxu0 %v5797
    %6153 = vmatpush1.bf16.msra.mxu0 %v5796
    %6154 = vmatprep.subr.bf16.mxu0 %v5801
    %6155 = vmatpush1.bf16.msra.mxu0 %v5800
    %6156 = vmatprep.subr.bf16.mxu0 %v5805
    %6157 = vmatpush1.bf16.msra.mxu0 %v5804
    %6158 = vmatprep.subr.bf16.mxu0 %v5809
    %6159 = vmatpush1.bf16.msra.mxu0 %v5808
    %6160 = vmatprep.mubr.bf16.mxu0 %v4896
    %6161 = vmatmul.mubr.bf16.gmra.mrb[0].mxu0 %v4895
    %v6162 = vpop.f32.mrb[0].mxu0
    %v6163 = vadd.f32 %v6122, %v6162
    %v6164 = vpop.f32.mrb[0].mxu0
    %v6165 = vadd.f32 %v6124, %v6164
    %v6166 = vpop.f32.mrb[0].mxu0
    %v6167 = vpop.f32.mrb[0].mxu0
    %6168 = vdwg.mxu0
    %6169 = vmatprep.subr.bf16.mxu0 %v5813
    %6170 = vmatpush1.bf16.msra.mxu0 %v5812
    %6171 = vmatprep.subr.bf16.mxu0 %v5817
    %6172 = vmatpush1.bf16.msra.mxu0 %v5816
    %6173 = vmatprep.subr.bf16.mxu0 %v5821
    %6174 = vmatpush1.bf16.msra.mxu0 %v5820
    %6175 = vmatprep.subr.bf16.mxu0 %v5825
    %6176 = vmatpush1.bf16.msra.mxu0 %v5824
    %6177 = vmatprep.subr.bf16.mxu0 %v5829
    %6178 = vmatpush1.bf16.msra.mxu0 %v5828
    %6179 = vmatprep.subr.bf16.mxu0 %v5833
    %6180 = vmatpush1.bf16.msra.mxu0 %v5832
    %6181 = vmatprep.subr.bf16.mxu0 %v5837
    %6182 = vmatpush1.bf16.msra.mxu0 %v5836
    %6183 = vmatprep.subr.bf16.mxu0 %v5841
    %6184 = vmatpush1.bf16.msra.mxu0 %v5840
    %6185 = vmatprep.subr.bf16.mxu0 %v5845
    %6186 = vmatpush1.bf16.msra.mxu0 %v5844
    %6187 = vmatprep.subr.bf16.mxu0 %v5849
    %6188 = vmatpush1.bf16.msra.mxu0 %v5848
    %6189 = vmatprep.subr.bf16.mxu0 %v5853
    %6190 = vmatpush1.bf16.msra.mxu0 %v5852
    %6191 = vmatprep.subr.bf16.mxu0 %v5857
    %6192 = vmatpush1.bf16.msra.mxu0 %v5856
    %6193 = vmatprep.subr.bf16.mxu0 %v5861
    %6194 = vmatpush1.bf16.msra.mxu0 %v5860
    %6195 = vmatprep.subr.bf16.mxu0 %v5865
    %6196 = vmatpush1.bf16.msra.mxu0 %v5864
    %6197 = vmatprep.subr.bf16.mxu0 %v5869
    %6198 = vmatpush1.bf16.msra.mxu0 %v5868
    %6199 = vmatprep.subr.bf16.mxu0 %v5873
    %6200 = vmatpush1.bf16.msra.mxu0 %v5872
    %6201 = vmatprep.mubr.bf16.mxu0 %v4898
    %6202 = vmatmul.mubr.bf16.gmra.mrb[0].mxu0 %v4897
    %v6203 = vpop.f32.mrb[0].mxu0
    %v6204 = vadd.f32 %v6163, %v6203
    %v6205 = vpop.f32.mrb[0].mxu0
    %v6206 = vadd.f32 %v6165, %v6205
    %v6207 = vpop.f32.mrb[0].mxu0
    %v6208 = vpop.f32.mrb[0].mxu0
    %6209 = vdwg.mxu0
    %6210 = vmatprep.subr.bf16.mxu0 %v6079
    %6211 = vmatpush1.bf16.msra.mxu0 %v6076
    %6212 = vmatprep.subr.bf16.mxu0 0
    %6213 = vmatpush1.bf16.msra.mxu0 0
    %6214 = vmatprep.subr.bf16.mxu0 0
    %6215 = vmatpush1.bf16.msra.mxu0 0
    %6216 = vmatprep.subr.bf16.mxu0 0
    %6217 = vmatpush1.bf16.msra.mxu0 0
    %6218 = vmatprep.subr.bf16.mxu0 0
    %6219 = vmatpush1.bf16.msra.mxu0 0
    %6220 = vmatprep.subr.bf16.mxu0 0
    %6221 = vmatpush1.bf16.msra.mxu0 0
    %6222 = vmatprep.subr.bf16.mxu0 0
    %6223 = vmatpush1.bf16.msra.mxu0 0
    %6224 = vmatprep.subr.bf16.mxu0 0
    %6225 = vmatpush1.bf16.msra.mxu0 0
    %6226 = vmatprep.subr.bf16.mxu0 0
    %6227 = vmatpush1.bf16.msra.mxu0 0
    %6228 = vmatprep.subr.bf16.mxu0 0
    %6229 = vmatpush1.bf16.msra.mxu0 0
    %6230 = vmatprep.subr.bf16.mxu0 0
    %6231 = vmatpush1.bf16.msra.mxu0 0
    %6232 = vmatprep.subr.bf16.mxu0 0
    %6233 = vmatpush1.bf16.msra.mxu0 0
    %6234 = vmatprep.subr.bf16.mxu0 0
    %6235 = vmatpush1.bf16.msra.mxu0 0
    %6236 = vmatprep.subr.bf16.mxu0 0
    %6237 = vmatpush1.bf16.msra.mxu0 0
    %6238 = vmatprep.subr.bf16.mxu0 0
    %6239 = vmatpush1.bf16.msra.mxu0 0
    %6240 = vmatprep.subr.bf16.mxu0 0
    %6241 = vmatpush1.bf16.msra.mxu0 0
    %6242 = vmatprep.mubr.bf16.mxu0 0
    %6243 = vmatmul.mubr.bf16.gmra.mrb[0].mxu0 %v6073
    %v6244 = vpop.f32.mrb[0].mxu0
    %v6245 = vadd.f32 %v6204, %v6244
    %v6246 = vpop.f32.mrb[0].mxu0
    %v6247 = vadd.f32 %v6206, %v6246
    %v6248 = vpop.f32.mrb[0].mxu0
    %v6249 = vpop.f32.mrb[0].mxu0
    %6250 = vdwg.mxu0
    %6251 = vmatprep.subr.bf16.mxu0 %v5687
    %6252 = vmatpush1.bf16.msra.mxu0 %v5686
    %6253 = vmatprep.subr.bf16.mxu0 %v5691
    %6254 = vmatpush1.bf16.msra.mxu0 %v5690
    %6255 = vmatprep.subr.bf16.mxu0 %v5695
    %6256 = vmatpush1.bf16.msra.mxu0 %v5694
    %6257 = vmatprep.subr.bf16.mxu0 %v5699
    %6258 = vmatpush1.bf16.msra.mxu0 %v5698
    %6259 = vmatprep.subr.bf16.mxu0 %v5703
    %6260 = vmatpush1.bf16.msra.mxu0 %v5702
    %6261 = vmatprep.subr.bf16.mxu0 %v5707
    %6262 = vmatpush1.bf16.msra.mxu0 %v5706
    %6263 = vmatprep.subr.bf16.mxu0 %v5711
    %6264 = vmatpush1.bf16.msra.mxu0 %v5710
    %6265 = vmatprep.subr.bf16.mxu0 %v5715
    %6266 = vmatpush1.bf16.msra.mxu0 %v5714
    %6267 = vmatprep.subr.bf16.mxu0 %v5719
    %6268 = vmatpush1.bf16.msra.mxu0 %v5718
    %6269 = vmatprep.subr.bf16.mxu0 %v5723
    %6270 = vmatpush1.bf16.msra.mxu0 %v5722
    %6271 = vmatprep.subr.bf16.mxu0 %v5727
    %6272 = vmatpush1.bf16.msra.mxu0 %v5726
    %6273 = vmatprep.subr.bf16.mxu0 %v5731
    %6274 = vmatpush1.bf16.msra.mxu0 %v5730
    %6275 = vmatprep.subr.bf16.mxu0 %v5735
    %6276 = vmatpush1.bf16.msra.mxu0 %v5734
    %6277 = vmatprep.subr.bf16.mxu0 %v5739
    %6278 = vmatpush1.bf16.msra.mxu0 %v5738
    %6279 = vmatprep.subr.bf16.mxu0 %v5743
    %6280 = vmatpush1.bf16.msra.mxu0 %v5742
    %6281 = vmatprep.subr.bf16.mxu0 %v5747
    %6282 = vmatpush1.bf16.msra.mxu0 %v5746
    %6283 = vmatprep.mubr.bf16.mxu0 %v4894
    %6284 = vmatmul.mubr.bf16.gmra.mrb[0].mxu0 %v4893
    %v6285 = vpop.f32.mrb[0].mxu0
    %v6286 = vadd.f32 0.0, %v6285
    %v6287 = vpop.f32.mrb[0].mxu0
    %v6288 = vadd.f32 0.0, %v6287
    %v6289 = vpop.f32.mrb[0].mxu0
    %v6290 = vpop.f32.mrb[0].mxu0
    %6291 = vdwg.mxu0
    %6292 = vmatprep.subr.bf16.mxu0 %v5751
    %6293 = vmatpush1.bf16.msra.mxu0 %v5750
    %6294 = vmatprep.subr.bf16.mxu0 %v5755
    %6295 = vmatpush1.bf16.msra.mxu0 %v5754
    %6296 = vmatprep.subr.bf16.mxu0 %v5759
    %6297 = vmatpush1.bf16.msra.mxu0 %v5758
    %6298 = vmatprep.subr.bf16.mxu0 %v5763
    %6299 = vmatpush1.bf16.msra.mxu0 %v5762
    %6300 = vmatprep.subr.bf16.mxu0 %v5767
    %6301 = vmatpush1.bf16.msra.mxu0 %v5766
    %6302 = vmatprep.subr.bf16.mxu0 %v5771
    %6303 = vmatpush1.bf16.msra.mxu0 %v5770
    %6304 = vmatprep.subr.bf16.mxu0 %v5775
    %6305 = vmatpush1.bf16.msra.mxu0 %v5774
    %6306 = vmatprep.subr.bf16.mxu0 %v5779
    %6307 = vmatpush1.bf16.msra.mxu0 %v5778
    %6308 = vmatprep.subr.bf16.mxu0 %v5783
    %6309 = vmatpush1.bf16.msra.mxu0 %v5782
    %6310 = vmatprep.subr.bf16.mxu0 %v5787
    %6311 = vmatpush1.bf16.msra.mxu0 %v5786
    %6312 = vmatprep.subr.bf16.mxu0 %v5791
    %6313 = vmatpush1.bf16.msra.mxu0 %v5790
    %6314 = vmatprep.subr.bf16.mxu0 %v5795
    %6315 = vmatpush1.bf16.msra.mxu0 %v5794
    %6316 = vmatprep.subr.bf16.mxu0 %v5799
    %6317 = vmatpush1.bf16.msra.mxu0 %v5798
    %6318 = vmatprep.subr.bf16.mxu0 %v5803
    %6319 = vmatpush1.bf16.msra.mxu0 %v5802
    %6320 = vmatprep.subr.bf16.mxu0 %v5807
    %6321 = vmatpush1.bf16.msra.mxu0 %v5806
    %6322 = vmatprep.subr.bf16.mxu0 %v5811
    %6323 = vmatpush1.bf16.msra.mxu0 %v5810
    %6324 = vmatprep.mubr.bf16.mxu0 %v4896
    %6325 = vmatmul.mubr.bf16.gmra.mrb[0].mxu0 %v4895
    %v6326 = vpop.f32.mrb[0].mxu0
    %v6327 = vadd.f32 %v6286, %v6326
    %v6328 = vpop.f32.mrb[0].mxu0
    %v6329 = vadd.f32 %v6288, %v6328
    %v6330 = vpop.f32.mrb[0].mxu0
    %v6331 = vpop.f32.mrb[0].mxu0
    %6332 = vdwg.mxu0
    %6333 = vmatprep.subr.bf16.mxu0 %v5815
    %6334 = vmatpush1.bf16.msra.mxu0 %v5814
    %6335 = vmatprep.subr.bf16.mxu0 %v5819
    %6336 = vmatpush1.bf16.msra.mxu0 %v5818
    %6337 = vmatprep.subr.bf16.mxu0 %v5823
    %6338 = vmatpush1.bf16.msra.mxu0 %v5822
    %6339 = vmatprep.subr.bf16.mxu0 %v5827
    %6340 = vmatpush1.bf16.msra.mxu0 %v5826
    %6341 = vmatprep.subr.bf16.mxu0 %v5831
    %6342 = vmatpush1.bf16.msra.mxu0 %v5830
    %6343 = vmatprep.subr.bf16.mxu0 %v5835
    %6344 = vmatpush1.bf16.msra.mxu0 %v5834
    %6345 = vmatprep.subr.bf16.mxu0 %v5839
    %6346 = vmatpush1.bf16.msra.mxu0 %v5838
    %6347 = vmatprep.subr.bf16.mxu0 %v5843
    %6348 = vmatpush1.bf16.msra.mxu0 %v5842
    %6349 = vmatprep.subr.bf16.mxu0 %v5847
    %6350 = vmatpush1.bf16.msra.mxu0 %v5846
    %6351 = vmatprep.subr.bf16.mxu0 %v5851
    %6352 = vmatpush1.bf16.msra.mxu0 %v5850
    %6353 = vmatprep.subr.bf16.mxu0 %v5855
    %6354 = vmatpush1.bf16.msra.mxu0 %v5854
    %6355 = vmatprep.subr.bf16.mxu0 %v5859
    %6356 = vmatpush1.bf16.msra.mxu0 %v5858
    %6357 = vmatprep.subr.bf16.mxu0 %v5863
    %6358 = vmatpush1.bf16.msra.mxu0 %v5862
    %6359 = vmatprep.subr.bf16.mxu0 %v5867
    %6360 = vmatpush1.bf16.msra.mxu0 %v5866
    %6361 = vmatprep.subr.bf16.mxu0 %v5871
    %6362 = vmatpush1.bf16.msra.mxu0 %v5870
    %6363 = vmatprep.subr.bf16.mxu0 %v5875
    %6364 = vmatpush1.bf16.msra.mxu0 %v5874
    %6365 = vmatprep.mubr.bf16.mxu0 %v4898
    %6366 = vmatmul.mubr.bf16.gmra.mrb[0].mxu0 %v4897
    %v6367 = vpop.f32.mrb[0].mxu0
    %v6368 = vadd.f32 %v6327, %v6367
    %v6369 = vpop.f32.mrb[0].mxu0
    %v6370 = vadd.f32 %v6329, %v6369
    %v6371 = vpop.f32.mrb[0].mxu0
    %v6372 = vpop.f32.mrb[0].mxu0
    %6373 = vdwg.mxu0
    %6374 = vmatprep.subr.bf16.mxu0 %v6085
    %6375 = vmatpush1.bf16.msra.mxu0 %v6082
    %6376 = vmatprep.subr.bf16.mxu0 0
    %6377 = vmatpush1.bf16.msra.mxu0 0
    %6378 = vmatprep.subr.bf16.mxu0 0
    %6379 = vmatpush1.bf16.msra.mxu0 0
    %6380 = vmatprep.subr.bf16.mxu0 0
    %6381 = vmatpush1.bf16.msra.mxu0 0
    %6382 = vmatprep.subr.bf16.mxu0 0
    %6383 = vmatpush1.bf16.msra.mxu0 0
    %6384 = vmatprep.subr.bf16.mxu0 0
    %6385 = vmatpush1.bf16.msra.mxu0 0
    %6386 = vmatprep.subr.bf16.mxu0 0
    %6387 = vmatpush1.bf16.msra.mxu0 0
    %6388 = vmatprep.subr.bf16.mxu0 0
    %6389 = vmatpush1.bf16.msra.mxu0 0
    %6390 = vmatprep.subr.bf16.mxu0 0
    %6391 = vmatpush1.bf16.msra.mxu0 0
    %6392 = vmatprep.subr.bf16.mxu0 0
    %6393 = vmatpush1.bf16.msra.mxu0 0
    %6394 = vmatprep.subr.bf16.mxu0 0
    %6395 = vmatpush1.bf16.msra.mxu0 0
    %6396 = vmatprep.subr.bf16.mxu0 0
    %6397 = vmatpush1.bf16.msra.mxu0 0
    %6398 = vmatprep.subr.bf16.mxu0 0
    %6399 = vmatpush1.bf16.msra.mxu0 0
    %6400 = vmatprep.subr.bf16.mxu0 0
    %6401 = vmatpush1.bf16.msra.mxu0 0
    %6402 = vmatprep.subr.bf16.mxu0 0
    %6403 = vmatpush1.bf16.msra.mxu0 0
    %6404 = vmatprep.subr.bf16.mxu0 0
    %6405 = vmatpush1.bf16.msra.mxu0 0
    %6406 = vmatprep.mubr.bf16.mxu0 0
    %6407 = vmatmul.mubr.bf16.gmra.mrb[0].mxu0 %v6073
    %v6408 = vpop.f32.mrb[0].mxu0
    %v6409 = vadd.f32 %v6368, %v6408
    %v6410 = vpop.f32.mrb[0].mxu0
    %v6411 = vadd.f32 %v6370, %v6410
    %v6412 = vpop.f32.mrb[0].mxu0
    %v6413 = vpop.f32.mrb[0].mxu0
    %6414 = vdwg.mxu0
    %v6415 = vld [vmem:[%s6] sm:$0xff]
    %v6416 = vrot.slane %v6245, 4
    %v6417 = vadd.f32 %v6245, %v6416
    %v6418 = vrot.slane %v6417, 2
    %v6419 = vadd.f32 %v6417, %v6418
    %v6420 = vrot.slane %v6419, 1
    %v6421 = vadd.f32 %v6419, %v6420
    %v6422 = vrot.slane %v6247, 4
    %v6423 = vadd.f32 %v6247, %v6422
    %v6424 = vrot.slane %v6423, 2
    %v6425 = vadd.f32 %v6423, %v6424
    %v6426 = vrot.slane %v6425, 1
    %v6427 = vadd.f32 %v6425, %v6426
    %v6428 = vrot.slane %v6409, 4
    %v6429 = vadd.f32 %v6409, %v6428
    %v6430 = vrot.slane %v6429, 2
    %v6431 = vadd.f32 %v6429, %v6430
    %v6432 = vrot.slane %v6431, 1
    %v6433 = vadd.f32 %v6431, %v6432
    %v6434 = vsel %vm1134, %v6411, 0.0
    %v6435 = vrot.slane %v6434, 4
    %v6436 = vadd.f32 %v6434, %v6435
    %v6437 = vrot.slane %v6436, 2
    %v6438 = vadd.f32 %v6436, %v6437
    %v6439 = vrot.slane %v6438, 1
    %v6440 = vadd.f32 %v6438, %v6439
    %v6441 = vmul.f32 %v6421, %v1532
    %v6442 = vmul.f32 %v6427, %v1532
    %v6443 = vmul.f32 %v6433, %v1532
    %v6444 = vmul.f32 %v6440, %v1532
    %v6445 = vsub.f32 %v6245, %v6441
    %v6446 = vsub.f32 %v6247, %v6442
    %v6447 = vsub.f32 %v6409, %v6443
    %v6448 = vsub.f32 %v6411, %v6444
    %v6449 = vmul.f32 %v6445, %v6445
    %v6450 = vmul.f32 %v6446, %v6446
    %v6451 = vmul.f32 %v6447, %v6447
    %v6452 = vmul.f32 %v6448, %v6448
    %v6453 = vrot.slane %v6449, 4
    %v6454 = vadd.f32 %v6449, %v6453
    %v6455 = vrot.slane %v6454, 2
    %v6456 = vadd.f32 %v6454, %v6455
    %v6457 = vrot.slane %v6456, 1
    %v6458 = vadd.f32 %v6456, %v6457
    %v6459 = vrot.slane %v6450, 4
    %v6460 = vadd.f32 %v6450, %v6459
    %v6461 = vrot.slane %v6460, 2
    %v6462 = vadd.f32 %v6460, %v6461
    %v6463 = vrot.slane %v6462, 1
    %v6464 = vadd.f32 %v6462, %v6463
    %v6465 = vrot.slane %v6451, 4
    %v6466 = vadd.f32 %v6451, %v6465
    %v6467 = vrot.slane %v6466, 2
    %v6468 = vadd.f32 %v6466, %v6467
    %v6469 = vrot.slane %v6468, 1
    %v6470 = vadd.f32 %v6468, %v6469
    %v6471 = vsel %vm1134, %v6452, 0.0
    %v6472 = vrot.slane %v6471, 4
    %v6473 = vadd.f32 %v6471, %v6472
    %v6474 = vrot.slane %v6473, 2
    %v6475 = vadd.f32 %v6473, %v6474
    %v6476 = vrot.slane %v6475, 1
    %v6477 = vadd.f32 %v6475, %v6476
    %v6478 = vmul.f32 %v6458, %v1532
    %v6479 = vmul.f32 %v6464, %v1532
    %v6480 = vmul.f32 %v6470, %v1532
    %v6481 = vmul.f32 %v6477, %v1532
    %v6482 = vadd.f32 %v6478, 1e-05
    %v6483 = vadd.f32 %v6479, 1e-05
    %v6484 = vadd.f32 %v6480, 1e-05
    %v6485 = vadd.f32 %v6481, 1e-05
    %v6486 = vrsqrt.pop %v6482
    %v6487 = vrsqrt.pop %v6483
    %v6488 = vrsqrt.pop %v6484
    %v6489 = vrsqrt.pop %v6485
    %v6490 = vmul.f32 %v6445, %v6486
    %v6491 = vmul.f32 %v6446, %v6487
    %v6492 = vmul.f32 %v6447, %v6488
    %v6493 = vmul.f32 %v6448, %v6489
    %v6495 = vlaneseq
    %v6496 = vshrl.u32 %v6495, 7
    %v6497 = vsub.s32 0, %v6496
    %v6498 = vrot.slane %v6415, %v6497
    %v6499 = vlaneseq
    %v6500 = vshrl.u32 %v6499, 7
    %v6501 = vsub.s32 2, %v6500
    %v6502 = vrot.slane %v6415, %v6501
    %v6503 = vlaneseq
    %v6504 = vshrl.u32 %v6503, 7
    %v6505 = vsub.s32 4, %v6504
    %v6506 = vrot.slane %v6415, %v6505
    %v6507 = vlaneseq
    %v6508 = vshrl.u32 %v6507, 7
    %v6509 = vsub.s32 6, %v6508
    %v6510 = vrot.slane %v6415, %v6509
    %v6515 = vlaneseq
    %v6516 = vshrl.u32 %v6515, 7
    %v6517 = vsub.s32 0, %v6516
    %v6518 = vrot.slane %v6498, %v6517
    %v6519 = vlaneseq
    %v6520 = vshrl.u32 %v6519, 7
    %v6521 = vsub.s32 0, %v6520
    %v6522 = vrot.slane %v6502, %v6521
    %v6523 = vlaneseq
    %v6524 = vshrl.u32 %v6523, 7
    %v6525 = vsub.s32 0, %v6524
    %v6526 = vrot.slane %v6506, %v6525
    %v6527 = vlaneseq
    %v6528 = vshrl.u32 %v6527, 7
    %v6529 = vsub.s32 0, %v6528
    %v6530 = vrot.slane %v6510, %v6529
    %v6531 = vmul.f32 %v6490, %v6518
    %v6532 = vmul.f32 %v6491, %v6522
    %v6533 = vmul.f32 %v6492, %v6526
    %v6534 = vmul.f32 %v6493, %v6530
    %v6535 = vlaneseq
    %v6536 = vshrl.u32 %v6535, 7
    %v6537 = vsub.s32 1, %v6536
    %v6538 = vrot.slane %v6415, %v6537
    %v6539 = vlaneseq
    %v6540 = vshrl.u32 %v6539, 7
    %v6541 = vsub.s32 3, %v6540
    %v6542 = vrot.slane %v6415, %v6541
    %v6543 = vlaneseq
    %v6544 = vshrl.u32 %v6543, 7
    %v6545 = vsub.s32 5, %v6544
    %v6546 = vrot.slane %v6415, %v6545
    %v6547 = vlaneseq
    %v6548 = vshrl.u32 %v6547, 7
    %v6549 = vsub.s32 7, %v6548
    %v6550 = vrot.slane %v6415, %v6549
    %v6555 = vlaneseq
    %v6556 = vshrl.u32 %v6555, 7
    %v6557 = vsub.s32 1, %v6556
    %v6558 = vrot.slane %v6538, %v6557
    %v6559 = vlaneseq
    %v6560 = vshrl.u32 %v6559, 7
    %v6561 = vsub.s32 1, %v6560
    %v6562 = vrot.slane %v6542, %v6561
    %v6563 = vlaneseq
    %v6564 = vshrl.u32 %v6563, 7
    %v6565 = vsub.s32 1, %v6564
    %v6566 = vrot.slane %v6546, %v6565
    %v6567 = vlaneseq
    %v6568 = vshrl.u32 %v6567, 7
    %v6569 = vsub.s32 1, %v6568
    %v6570 = vrot.slane %v6550, %v6569
    %v6571 = vadd.f32 %v6531, %v6558
    %v6572 = vadd.f32 %v6532, %v6562
    %v6573 = vadd.f32 %v6533, %v6566
    %v6574 = vadd.f32 %v6534, %v6570
    %v6575 = vmax.f32 %v6571, 0.0
    %v6576 = vmax.f32 %v6572, 0.0
    %v6577 = vmax.f32 %v6573, 0.0
    %v6578 = vmax.f32 %v6574, 0.0
    %v6579 = vpack.c.bf16 %v6575, %v6575
    %v6580 = vpack.c.bf16 %v6576, %v6576
    %v6581 = vpack.c.bf16 %v6577, %v6577
    %v6582 = vpack.c.bf16 %v6578, %v6578
    %v6583 = vld [vmem:[%s7] sm:$0xf]
    %v6584 = vld [vmem:[%s7 + $0x4] sm:$0xf]
    %v6585 = vld [vmem:[%s7 + $0x8] sm:$0xf]
    %v6586 = vld [vmem:[%s7 + $0xc] sm:$0xf]
    %v6587 = vld [vmem:[%s7 + $0x10] sm:$0xf]
    %v6588 = vld [vmem:[%s7 + $0x14] sm:$0xf]
    %v6589 = vld [vmem:[%s7 + $0x18] sm:$0xf]
    %v6590 = vld [vmem:[%s7 + $0x1c] sm:$0xf]
    %v6591 = vld [vmem:[%s7 + $0x20] sm:$0xf]
    %v6592 = vld [vmem:[%s7 + $0x24] sm:$0xf]
    %v6593 = vld [vmem:[%s7 + $0x28] sm:$0xf]
    %v6594 = vld [vmem:[%s7 + $0x2c] sm:$0xf]
    %v6595 = vld [vmem:[%s7 + $0x30] sm:$0xf]
    %v6596 = vld [vmem:[%s7 + $0x34] sm:$0xf]
    %v6597 = vld [vmem:[%s7 + $0x38] sm:$0xf]
    %v6598 = vld [vmem:[%s7 + $0x3c] sm:$0xf]
    %v6599 = vld [vmem:[%s7 + $0x40] sm:$0xf]
    %v6600 = vld [vmem:[%s7 + $0x44] sm:$0xf]
    %v6601 = vld [vmem:[%s7 + $0x48] sm:$0xf]
    %v6602 = vld [vmem:[%s7 + $0x4c] sm:$0xf]
    %v6603 = vld [vmem:[%s7 + $0x50] sm:$0xf]
    %v6604 = vld [vmem:[%s7 + $0x54] sm:$0xf]
    %v6605 = vld [vmem:[%s7 + $0x58] sm:$0xf]
    %v6606 = vld [vmem:[%s7 + $0x5c] sm:$0xf]
    %v6607 = vld [vmem:[%s7 + $0x60] sm:$0xf]
    %v6608 = vld [vmem:[%s7 + $0x64] sm:$0xf]
    %v6609 = vld [vmem:[%s7 + $0x68] sm:$0xf]
    %v6610 = vld [vmem:[%s7 + $0x6c] sm:$0xf]
    %v6611 = vld [vmem:[%s7 + $0x70] sm:$0xf]
    %v6612 = vld [vmem:[%s7 + $0x74] sm:$0xf]
    %v6613 = vld [vmem:[%s7 + $0x78] sm:$0xf]
    %v6614 = vld [vmem:[%s7 + $0x7c] sm:$0xf]
    %v6615 = vld [vmem:[%s7 + $0x80] sm:$0xf]
    %v6616 = vld [vmem:[%s7 + $0x84] sm:$0xf]
    %v6617 = vld [vmem:[%s7 + $0x88] sm:$0xf]
    %v6618 = vld [vmem:[%s7 + $0x8c] sm:$0xf]
    %v6619 = vld [vmem:[%s7 + $0x90] sm:$0xf]
    %v6620 = vld [vmem:[%s7 + $0x94] sm:$0xf]
    %v6621 = vld [vmem:[%s7 + $0x98] sm:$0xf]
    %v6622 = vld [vmem:[%s7 + $0x9c] sm:$0xf]
    %v6623 = vld [vmem:[%s7 + $0xa0] sm:$0xf]
    %v6624 = vld [vmem:[%s7 + $0xa4] sm:$0xf]
    %v6625 = vld [vmem:[%s7 + $0xa8] sm:$0xf]
    %v6626 = vld [vmem:[%s7 + $0xac] sm:$0xf]
    %v6627 = vld [vmem:[%s7 + $0xb0] sm:$0xf]
    %v6628 = vld [vmem:[%s7 + $0xb4] sm:$0xf]
    %v6629 = vld [vmem:[%s7 + $0xb8] sm:$0xf]
    %v6630 = vld [vmem:[%s7 + $0xbc] sm:$0xf]
    %v6631 = vld [vmem:[%s7 + $0xc0] sm:$0x7]
    %v6632 = vld [vmem:[%s8] sm:$0x1]
    %v6634 = vlaneseq
    %v6635 = vshrl.u32 %v6634, 7
    %v6636 = vsub.s32 0, %v6635
    %v6637 = vrot.slane %v6632, %v6636
    %v6688 = vunpack.c.l.b16 %v6583
    %v6689 = vunpack.c.l.b16 %v6584
    %v6690 = vunpack.c.l.b16 %v6585
    %v6691 = vunpack.c.l.b16 %v6586
    %v6692 = vunpack.c.l.b16 %v6587
    %v6693 = vunpack.c.l.b16 %v6588
    %v6694 = vunpack.c.l.b16 %v6589
    %v6695 = vunpack.c.l.b16 %v6590
    %v6696 = vunpack.c.l.b16 %v6591
    %v6697 = vunpack.c.l.b16 %v6592
    %v6698 = vunpack.c.l.b16 %v6593
    %v6699 = vunpack.c.l.b16 %v6594
    %v6700 = vunpack.c.l.b16 %v6595
    %v6701 = vunpack.c.l.b16 %v6596
    %v6702 = vunpack.c.l.b16 %v6597
    %v6703 = vunpack.c.l.b16 %v6598
    %v6704 = vunpack.c.l.b16 %v6599
    %v6705 = vunpack.c.l.b16 %v6600
    %v6706 = vunpack.c.l.b16 %v6601
    %v6707 = vunpack.c.l.b16 %v6602
    %v6708 = vunpack.c.l.b16 %v6603
    %v6709 = vunpack.c.l.b16 %v6604
    %v6710 = vunpack.c.l.b16 %v6605
    %v6711 = vunpack.c.l.b16 %v6606
    %v6712 = vunpack.c.l.b16 %v6607
    %v6713 = vunpack.c.l.b16 %v6608
    %v6714 = vunpack.c.l.b16 %v6609
    %v6715 = vunpack.c.l.b16 %v6610
    %v6716 = vunpack.c.l.b16 %v6611
    %v6717 = vunpack.c.l.b16 %v6612
    %v6718 = vunpack.c.l.b16 %v6613
    %v6719 = vunpack.c.l.b16 %v6614
    %v6720 = vunpack.c.l.b16 %v6615
    %v6721 = vunpack.c.l.b16 %v6616
    %v6722 = vunpack.c.l.b16 %v6617
    %v6723 = vunpack.c.l.b16 %v6618
    %v6724 = vunpack.c.l.b16 %v6619
    %v6725 = vunpack.c.l.b16 %v6620
    %v6726 = vunpack.c.l.b16 %v6621
    %v6727 = vunpack.c.l.b16 %v6622
    %v6728 = vunpack.c.l.b16 %v6623
    %v6729 = vunpack.c.l.b16 %v6624
    %v6730 = vunpack.c.l.b16 %v6625
    %v6731 = vunpack.c.l.b16 %v6626
    %v6732 = vunpack.c.l.b16 %v6627
    %v6733 = vunpack.c.l.b16 %v6628
    %v6734 = vunpack.c.l.b16 %v6629
    %v6735 = vunpack.c.l.b16 %v6630
    %v6736 = vunpack.c.l.b16 %v6631
    %v6737 = vpack.c.b16 %v6689, %v6688
    %v6738 = vpack.c.b16 %v6691, %v6690
    %v6739 = vpack.c.b16 %v6693, %v6692
    %v6740 = vpack.c.b16 %v6695, %v6694
    %v6741 = vpack.c.b16 %v6697, %v6696
    %v6742 = vpack.c.b16 %v6699, %v6698
    %v6743 = vpack.c.b16 %v6701, %v6700
    %v6744 = vpack.c.b16 %v6703, %v6702
    %v6745 = vpack.c.b16 %v6705, %v6704
    %v6746 = vpack.c.b16 %v6707, %v6706
    %v6747 = vpack.c.b16 %v6709, %v6708
    %v6748 = vpack.c.b16 %v6711, %v6710
    %v6749 = vpack.c.b16 %v6713, %v6712
    %v6750 = vpack.c.b16 %v6715, %v6714
    %v6751 = vpack.c.b16 %v6717, %v6716
    %v6752 = vpack.c.b16 %v6719, %v6718
    %v6753 = vpack.c.b16 %v6721, %v6720
    %v6754 = vpack.c.b16 %v6723, %v6722
    %v6755 = vpack.c.b16 %v6725, %v6724
    %v6756 = vpack.c.b16 %v6727, %v6726
    %v6757 = vpack.c.b16 %v6729, %v6728
    %v6758 = vpack.c.b16 %v6731, %v6730
    %v6759 = vpack.c.b16 %v6733, %v6732
    %v6760 = vpack.c.b16 %v6735, %v6734
    %v6761 = vpack.c.b16 %v6736, %v6736
    %v6787 = vsel %vm1134, %v6582, 0
    %v6790 = vsel %vm1138, %v6761, 0
    %6792 = vmatprep.subr.bf16.mxu0 0
    %6793 = vmatpush1.bf16.msra.mxu0 %v6737
    %6794 = vmatprep.subr.bf16.mxu0 0
    %6795 = vmatpush1.bf16.msra.mxu0 %v6738
    %6796 = vmatprep.subr.bf16.mxu0 0
    %6797 = vmatpush1.bf16.msra.mxu0 %v6739
    %6798 = vmatprep.subr.bf16.mxu0 0
    %6799 = vmatpush1.bf16.msra.mxu0 %v6740
    %6800 = vmatprep.subr.bf16.mxu0 0
    %6801 = vmatpush1.bf16.msra.mxu0 %v6741
    %6802 = vmatprep.subr.bf16.mxu0 0
    %6803 = vmatpush1.bf16.msra.mxu0 %v6742
    %6804 = vmatprep.subr.bf16.mxu0 0
    %6805 = vmatpush1.bf16.msra.mxu0 %v6743
    %6806 = vmatprep.subr.bf16.mxu0 0
    %6807 = vmatpush1.bf16.msra.mxu0 %v6744
    %6808 = vmatprep.subr.bf16.mxu0 0
    %6809 = vmatpush1.bf16.msra.mxu0 %v6745
    %6810 = vmatprep.subr.bf16.mxu0 0
    %6811 = vmatpush1.bf16.msra.mxu0 %v6746
    %6812 = vmatprep.subr.bf16.mxu0 0
    %6813 = vmatpush1.bf16.msra.mxu0 %v6747
    %6814 = vmatprep.subr.bf16.mxu0 0
    %6815 = vmatpush1.bf16.msra.mxu0 %v6748
    %6816 = vmatprep.subr.bf16.mxu0 0
    %6817 = vmatpush1.bf16.msra.mxu0 %v6749
    %6818 = vmatprep.subr.bf16.mxu0 0
    %6819 = vmatpush1.bf16.msra.mxu0 %v6750
    %6820 = vmatprep.subr.bf16.mxu0 0
    %6821 = vmatpush1.bf16.msra.mxu0 %v6751
    %6822 = vmatprep.subr.bf16.mxu0 0
    %6823 = vmatpush1.bf16.msra.mxu0 %v6752
    %6824 = vmatprep.mubr.bf16.mxu0 %v6580
    %6825 = vmatmul.mubr.bf16.gmra.mrb[0].mxu0 %v6579
    %v6826 = vpop.f32.mrb[0].mxu0
    %v6827 = vadd.f32 %v6637, %v6826
    %v6828 = vpop.f32.mrb[0].mxu0
    %v6829 = vpop.f32.mrb[0].mxu0
    %v6830 = vpop.f32.mrb[0].mxu0
    %6831 = vdwg.mxu0
    %6832 = vmatprep.subr.bf16.mxu0 0
    %6833 = vmatpush1.bf16.msra.mxu0 %v6753
    %6834 = vmatprep.subr.bf16.mxu0 0
    %6835 = vmatpush1.bf16.msra.mxu0 %v6754
    %6836 = vmatprep.subr.bf16.mxu0 0
    %6837 = vmatpush1.bf16.msra.mxu0 %v6755
    %6838 = vmatprep.subr.bf16.mxu0 0
    %6839 = vmatpush1.bf16.msra.mxu0 %v6756
    %6840 = vmatprep.subr.bf16.mxu0 0
    %6841 = vmatpush1.bf16.msra.mxu0 %v6757
    %6842 = vmatprep.subr.bf16.mxu0 0
    %6843 = vmatpush1.bf16.msra.mxu0 %v6758
    %6844 = vmatprep.subr.bf16.mxu0 0
    %6845 = vmatpush1.bf16.msra.mxu0 %v6759
    %6846 = vmatprep.subr.bf16.mxu0 0
    %6847 = vmatpush1.bf16.msra.mxu0 %v6760
    %6848 = vmatprep.subr.bf16.mxu0 0
    %6849 = vmatpush1.bf16.msra.mxu0 %v6790
    %6850 = vmatprep.subr.bf16.mxu0 0
    %6851 = vmatpush1.bf16.msra.mxu0 0
    %6852 = vmatprep.subr.bf16.mxu0 0
    %6853 = vmatpush1.bf16.msra.mxu0 0
    %6854 = vmatprep.subr.bf16.mxu0 0
    %6855 = vmatpush1.bf16.msra.mxu0 0
    %6856 = vmatprep.subr.bf16.mxu0 0
    %6857 = vmatpush1.bf16.msra.mxu0 0
    %6858 = vmatprep.subr.bf16.mxu0 0
    %6859 = vmatpush1.bf16.msra.mxu0 0
    %6860 = vmatprep.subr.bf16.mxu0 0
    %6861 = vmatpush1.bf16.msra.mxu0 0
    %6862 = vmatprep.subr.bf16.mxu0 0
    %6863 = vmatpush1.bf16.msra.mxu0 0
    %6864 = vmatprep.mubr.bf16.mxu0 %v6787
    %6865 = vmatmul.mubr.bf16.gmra.mrb[0].mxu0 %v6581
    %v6866 = vpop.f32.mrb[0].mxu0
    %v6867 = vadd.f32 %v6827, %v6866
    %v6868 = vpop.f32.mrb[0].mxu0
    %v6869 = vpop.f32.mrb[0].mxu0
    %v6870 = vpop.f32.mrb[0].mxu0
    %6871 = vdwg.mxu0
    %6872 = vst.msk [vmem:[#allocation5] sm:$0xff] %vm1134, %v6867
    // Predicated region
    $region42: #{tpu_custom_call.1} parent=1 // pred_check
      _
    $region43: #{tpu_custom_call.1} parent=1 // pred_check_branch
      %6874 = sbr.rel (0) target = $region45
    $region44: #{tpu_custom_call.1} parent=1 // pred_region
      %s6876 = ssub.s32 128, 128
      %6877 = vsyncadd [#allocation4], %s6876
      %s6879 = sshll.u32 [#allocation5], 4
      %s6880 = int_to_ptr.vmem [resolvable:$true] %s6879
      %6882 = dma.vmem_to_hbm [thread:$0]  %s6880, 128, %s9, [#allocation4]
    $region45: #{tpu_custom_call.1} parent=1 // pred_fallthru
      _
    // Predicated region
    $region46: #{tpu_custom_call.1} parent=1 // pred_check
      _
    $region47: #{tpu_custom_call.1} parent=1 // pred_check_branch
      %6884 = sbr.rel (0) target = $region49
    $region48: #{tpu_custom_call.1} parent=1 // pred_region
      %6885 = dma.done [#allocation4], 128
    $region49: #{tpu_custom_call.1} parent=1 // pred_fallthru
      _
    %6886 = vsyncpa [#allocation3], 1
    %6887 = vsyncpa [#allocation4], 1

</llo_original>
